<compile_context>
chip_gen: v6e
topology: v6e:2x2x1
jax: 0.10.0
libtpu: 0.0.40
codegen_flags: <defaults>
</compile_context>

<pallas_src>
import jax
import jax.numpy as jnp
from jax.experimental import pallas as pl
from jax.experimental.pallas import tpu as pltpu

_EPS = 1e-5


def _vmem_limit_bytes():
    """Scoped-VMEM cap adapted to the chip (feedback: raise it on v5e/v6e)."""
    try:
        cap = pltpu.get_tpu_info().vmem_capacity_bytes
    except Exception:
        cap = 128 * 1024 * 1024
    return int(min(cap * 3 // 4, 96 * 1024 * 1024))


# --------------------- kernel A: maxpool(2) + conv1 + BN1 stats ----------------

def _pool_conv1_kernel(xw_ref, w1_ref, z1_ref, st1_ref, pad_ref, col_ref):
    # xw_ref : (1, Hp, Wp, 4*Cin) bf16 -- 2x2 pool window folded into lanes
    # w1_ref : (9*Cin, Co) bf16        -- conv1 weights, taps flattened into K
    # z1_ref : (1, Hp, Wp*Co) bf16     -- lane-dense pre-BN conv1 output
    # st1_ref: (1, 2, Co) f32          -- per-sample [sum, centered sumsq]
    # pad_ref: (Hp+2, Wp+2, Cin) bf16  -- zero halo + pooled interior
    # col_ref: (Hp, Wp, 9*Cin) bf16    -- im2col buffer
    Hp2, Wp2, Cin = pad_ref.shape
    Hp, Wp = Hp2 - 2, Wp2 - 2
    Co = st1_ref.shape[-1]

    # ---- MaxPool2d(2): the four window taps are static lane slices.
    xw = xw_ref[0]                                         # (Hp, Wp, 4*Cin)
    a = jnp.maximum(xw[:, :, 0 * Cin:1 * Cin], xw[:, :, 1 * Cin:2 * Cin])
    b = jnp.maximum(xw[:, :, 2 * Cin:3 * Cin], xw[:, :, 3 * Cin:4 * Cin])
    pooled = jnp.maximum(a, b)                             # (Hp, Wp, Cin) bf16

    # ---- zero only the 1-pixel halo; interior is overwritten every step.
    pad_ref[0:1, :, :] = jnp.zeros((1, Wp + 2, Cin), pad_ref.dtype)
    pad_ref[Hp + 1:Hp + 2, :, :] = jnp.zeros((1, Wp + 2, Cin), pad_ref.dtype)
    pad_ref[:, 0:1, :] = jnp.zeros((Hp + 2, 1, Cin), pad_ref.dtype)
    pad_ref[:, Wp + 1:Wp + 2, :] = jnp.zeros((Hp + 2, 1, Cin), pad_ref.dtype)
    pad_ref[1:Hp + 1, 1:Wp + 1, :] = pooled.astype(pad_ref.dtype)

    # ---- im2col: 9 plain 3-D slice copies, then ONE K = 9*Cin matmul.
    for t in range(9):
        dh, dw = t // 3, t % 3
        col_ref[:, :, t * Cin:(t + 1) * Cin] = pad_ref[dh:dh + Hp, dw:dw + Wp, :]

    col = col_ref[...].reshape(Hp * Wp, 9 * Cin)           # minor dim unchanged
    acc = jnp.dot(col, w1_ref[...], preferred_element_type=jnp.float32)
    # NOTE: conv1 bias omitted -- it cancels exactly under training-mode BN.

    # ---- per-sample BN1 statistics (mean-centered for numerical safety).
    s = jnp.sum(acc, axis=0, keepdims=True)                # (1, Co)
    mu = s * (1.0 / float(Hp * Wp))
    d = acc - mu
    st1_ref[0, 0:1, :] = s
    st1_ref[0, 1:2, :] = jnp.sum(d * d, axis=0, keepdims=True)

    # ---- lane-dense bf16 store of z1 as (Hp, Wp*Co) via Wp chunked copies.
    acc3 = acc.reshape(Hp, Wp, Co).astype(z1_ref.dtype)
    for w in range(Wp):
        z1_ref[0, :, w * Co:(w + 1) * Co] = acc3[:, w, :]


# ------------------ kernel B: BN1 + ReLU + conv2 + BN2 stats -------------------

def _bn_relu_conv2_kernel(z1_ref, s1_ref, t1_ref, w2_ref,
                          z2_ref, st2_ref, pad_ref, col_ref):
    # z1_ref : (1, Hp, Wp*Co) bf16     -- lane-dense conv1 output
    # s1_ref, t1_ref: (1, Wp*Co) f32   -- folded BN1 scale/shift, tiled over Wp
    # w2_ref : (9*Co, Co) bf16
    # z2_ref : (1, Hp, Wp*Co) f32      -- lane-dense pre-BN conv2 output
    # st2_ref: (1, 2, Co) f32
    # pad_ref: (Hp+2, Wp+2, Co) bf16 ; col_ref: (Hp, Wp, 9*Co) bf16
    Hp2, Wp2, Co = pad_ref.shape
    Hp, Wp = Hp2 - 2, Wp2 - 2

    # ---- BN1 (folded, training-mode stats) + ReLU on the dense layout.
    y1 = jnp.maximum(z1_ref[0].astype(jnp.float32) * s1_ref[...] + t1_ref[...],
                     0.0)                                  # (Hp, Wp*Co)
    y1b = y1.astype(pad_ref.dtype)

    pad_ref[0:1, :, :] = jnp.zeros((1, Wp + 2, Co), pad_ref.dtype)
    pad_ref[Hp + 1:Hp + 2, :, :] = jnp.zeros((1, Wp + 2, Co), pad_ref.dtype)
    pad_ref[:, 0:1, :] = jnp.zeros((Hp + 2, 1, Co), pad_ref.dtype)
    pad_ref[:, Wp + 1:Wp + 2, :] = jnp.zeros((Hp + 2, 1, Co), pad_ref.dtype)
    # interior: per-column chunks of the dense layout (static slices only).
    for w in range(Wp):
        pad_ref[1:Hp + 1, w + 1:w + 2, :] = (
            y1b[:, w * Co:(w + 1) * Co].reshape(Hp, 1, Co))

    # ---- im2col + ONE K = 9*Co matmul.
    for t in range(9):
        dh, dw = t // 3, t % 3
        col_ref[:, :, t * Co:(t + 1) * Co] = pad_ref[dh:dh + Hp, dw:dw + Wp, :]

    col = col_ref[...].reshape(Hp * Wp, 9 * Co)
    acc = jnp.dot(col, w2_ref[...], preferred_element_type=jnp.float32)
    # NOTE: conv2 bias omitted -- cancels under training-mode BN2.

    s = jnp.sum(acc, axis=0, keepdims=True)
    mu = s * (1.0 / float(Hp * Wp))
    d = acc - mu
    st2_ref[0, 0:1, :] = s
    st2_ref[0, 1:2, :] = jnp.sum(d * d, axis=0, keepdims=True)

    acc3 = acc.reshape(Hp, Wp, Co)
    for w in range(Wp):
        z2_ref[0, :, w * Co:(w + 1) * Co] = acc3[:, w, :]


# --------------------------------- wrapper -------------------------------------

def _bn_fold(stats, gamma, beta, per_sample_count, eps=_EPS):
    """Combine per-sample (sum, centered-sumsq) -> folded BN scale/shift.

    Chan-style parallel variance combine (no E[x^2]-E[x]^2 cancellation).
    """
    s_i = stats[:, 0, :]                                   # (N, Co)
    m2_i = stats[:, 1, :]                                  # (N, Co)
    cnt = float(per_sample_count)
    total = stats.shape[0] * cnt
    mean = jnp.sum(s_i, axis=0) / total
    mu_i = s_i / cnt
    var = (jnp.sum(m2_i, axis=0)
           + cnt * jnp.sum((mu_i - mean) ** 2, axis=0)) / total
    var = jnp.maximum(var, 0.0)                            # biased variance
    scale = gamma.reshape(-1) * jax.lax.rsqrt(var + eps)
    shift = beta.reshape(-1) - mean * scale
    return scale.reshape(1, -1), shift.reshape(1, -1)


def down_forward(x, params):
    """x: (N, Cin, H, W) NCHW -> (N, Co, H//2, W//2) NCHW."""
    (w1, _b1, g1, bt1, w2, _b2, g2, bt2) = params  # conv biases cancel under BN
    N, Cin, H, W = x.shape
    Hp, Wp = H // 2, W // 2
    Co = w1.shape[-1]

    # One NCHW -> channels-minor relayout (unavoidable) that also folds the
    # entire 2x2 pooling window into the lane axis: (N, Hp, Wp, 4*Cin).
    xw = jnp.transpose(x.reshape(N, Cin, Hp, 2, Wp, 2),
                       (0, 2, 4, 3, 5, 1)).reshape(N, Hp, Wp, 4 * Cin)
    xw = xw.astype(jnp.bfloat16)                           # halves input DMA

    w1r = w1.reshape(9 * Cin, Co).astype(jnp.bfloat16)     # taps flattened to K
    w2r = w2.reshape(9 * Co, Co).astype(jnp.bfloat16)

    cparams = pltpu.CompilerParams(
        dimension_semantics=("parallel",),                 # samples across TCs
        vmem_limit_bytes=_vmem_limit_bytes())

    def const_spec(shape):
        # Grid-invariant block; single-buffered (no point double-buffering it).
        return pl.BlockSpec(shape, lambda n, _r=len(shape): (0,) * _r,
                            pipeline_mode=pl.Buffered(1))

    # ---- pass 1: fused maxpool + conv1 (+ per-sample BN1 partial stats) ----
    z1, st1 = pl.pallas_call(
        _pool_conv1_kernel,
        out_shape=(jax.ShapeDtypeStruct((N, Hp, Wp * Co), jnp.bfloat16),
                   jax.ShapeDtypeStruct((N, 2, Co), jnp.float32)),
        grid=(N,),
        in_specs=[pl.BlockSpec((1, Hp, Wp, 4 * Cin), lambda n: (n, 0, 0, 0)),
                  const_spec(w1r.shape)],
        out_specs=(pl.BlockSpec((1, Hp, Wp * Co), lambda n: (n, 0, 0)),
                   pl.BlockSpec((1, 2, Co), lambda n: (n, 0, 0))),
        scratch_shapes=[pltpu.VMEM((Hp + 2, Wp + 2, Cin), jnp.bfloat16),
                        pltpu.VMEM((Hp, Wp, 9 * Cin), jnp.bfloat16)],
        compiler_params=cparams,
    )(xw, w1r)

    s1, t1 = _bn_fold(st1, g1, bt1, Hp * Wp)
    s1_t = jnp.tile(s1, (1, Wp))                           # (1, Wp*Co)
    t1_t = jnp.tile(t1, (1, Wp))

    # ---- pass 2: BN1 + ReLU + conv2 (+ per-sample BN2 partial stats) ----
    z2, st2 = pl.pallas_call(
        _bn_relu_conv2_kernel,
        out_shape=(jax.ShapeDtypeStruct((N, Hp, Wp * Co), jnp.float32),
                   jax.ShapeDtypeStruct((N, 2, Co), jnp.float32)),
        grid=(N,),
        in_specs=[pl.BlockSpec((1, Hp, Wp * Co), lambda n: (n, 0, 0)),
                  pl.BlockSpec((1, Wp * Co), lambda n: (0, 0)),
                  pl.BlockSpec((1, Wp * Co), lambda n: (0, 0)),
                  const_spec(w2r.shape)],
        out_specs=(pl.BlockSpec((1, Hp, Wp * Co), lambda n: (n, 0, 0)),
                   pl.BlockSpec((1, 2, Co), lambda n: (n, 0, 0))),
        scratch_shapes=[pltpu.VMEM((Hp + 2, Wp + 2, Co), jnp.bfloat16),
                        pltpu.VMEM((Hp, Wp, 9 * Co), jnp.bfloat16)],
        compiler_params=cparams,
    )(z1, s1_t, t1_t, w2r)

    s2, t2 = _bn_fold(st2, g2, bt2, Hp * Wp)

    # Final BN2 + ReLU is elementwise: leave it to XLA so it fuses into the
    # unavoidable reshape + NHWC->NCHW layout change (one HBM pass total).
    y2 = z2.reshape(N, Hp, Wp, Co)
    y2 = jnp.maximum(y2 * s2.reshape(1, 1, 1, Co) + t2.reshape(1, 1, 1, Co), 0.0)
    return jnp.transpose(y2, (0, 3, 1, 2))


def init_params(key, in_channels, out_channels):
    k1, k2, k3, k4 = jax.random.split(key, 4)
    w1 = jax.random.normal(k1, (3, 3, in_channels, out_channels), jnp.float32) * 0.1
    b1 = jax.random.normal(k2, (1, out_channels), jnp.float32) * 0.05
    w2 = jax.random.normal(k3, (3, 3, out_channels, out_channels), jnp.float32) * 0.1
    b2 = jax.random.normal(k4, (1, out_channels), jnp.float32) * 0.05
    g1 = jnp.ones((1, out_channels), jnp.float32)    # BN weight (PyTorch default)
    bt1 = jnp.zeros((1, out_channels), jnp.float32)  # BN bias
    g2 = jnp.ones((1, out_channels), jnp.float32)
    bt2 = jnp.zeros((1, out_channels), jnp.float32)
    # Conv biases are kept for interface parity with the PyTorch module; they
    # cancel exactly under training-mode BatchNorm and are not used in-kernel.
    return (w1, b1, g1, bt1, w2, b2, g2, bt2)


if __name__ == "__main__":
    key = jax.random.PRNGKey(0)
    kx, kp = jax.random.split(key)
    x = jax.random.normal(kx, (2, 4, 16, 16), jnp.float32)    # (N, Cin, H, W) NCHW
    params = init_params(kp, in_channels=4, out_channels=8)   # Down(4, 8)

    out = jax.jit(lambda a: down_forward(a, params))(x)
    out = jax.block_until_ready(out)
    assert out.shape == (2, 8, 8, 8), out.shape
    assert bool(jnp.all(jnp.isfinite(out)))
    print("KERNEL_OK")
</pallas_src>

<mosaic_0001>
module attributes {stable_mosaic.version = 11 : i64} {
  func.func @_pool_conv1_kernel(%arg0: i32, %arg1: memref<1x8x8x16xbf16, #tpu.memory_space<vmem>>, %arg2: memref<36x8xbf16, #tpu.memory_space<vmem>>, %arg3: memref<1x8x64xbf16, #tpu.memory_space<vmem>>, %arg4: memref<1x2x8xf32, #tpu.memory_space<vmem>>, %arg5: memref<10x10x4xbf16, #tpu.memory_space<vmem>>, %arg6: memref<8x8x36xbf16, #tpu.memory_space<vmem>>) attributes {dimension_semantics = [#tpu.dimension_semantics<parallel>], iteration_bounds = array<i64: 2>, scalar_prefetch = 0 : i64, scratch_operands = 2 : i64, tpu.core_type = #tpu.core_type<tc>, window_params = [{transform_indices = @transform_0, window_bounds = array<i64: 1, 8, 8, 16>}, {pipeline_mode = #tpu.pipeline_mode<synchronous>, transform_indices = @transform_1, window_bounds = array<i64: 36, 8>}, {transform_indices = @transform_2, window_bounds = array<i64: 1, 8, 64>}, {transform_indices = @transform_3, window_bounds = array<i64: 1, 2, 8>}]} {
    %c0 = arith.constant 0 : index
    %c0_0 = arith.constant 0 : index
    %c0_1 = arith.constant 0 : index
    %c0_2 = arith.constant 0 : index
    %0 = vector.load %arg1[%c0, %c0_0, %c0_1, %c0_2] : memref<1x8x8x16xbf16, #tpu.memory_space<vmem>>, vector<1x8x8x16xbf16>
    %1 = vector.shape_cast %0 : vector<1x8x8x16xbf16> to vector<8x8x16xbf16>
    %2 = vector.extract_strided_slice %1 {offsets = [0, 0, 0], sizes = [8, 8, 4], strides = [1, 1, 1]} : vector<8x8x16xbf16> to vector<8x8x4xbf16>
    %3 = vector.extract_strided_slice %1 {offsets = [0, 0, 4], sizes = [8, 8, 4], strides = [1, 1, 1]} : vector<8x8x16xbf16> to vector<8x8x4xbf16>
    %4 = arith.maximumf %2, %3 : vector<8x8x4xbf16>
    %5 = vector.extract_strided_slice %1 {offsets = [0, 0, 8], sizes = [8, 8, 4], strides = [1, 1, 1]} : vector<8x8x16xbf16> to vector<8x8x4xbf16>
    %6 = vector.extract_strided_slice %1 {offsets = [0, 0, 12], sizes = [8, 8, 4], strides = [1, 1, 1]} : vector<8x8x16xbf16> to vector<8x8x4xbf16>
    %7 = arith.maximumf %5, %6 : vector<8x8x4xbf16>
    %8 = arith.maximumf %4, %7 : vector<8x8x4xbf16>
    %cst = arith.constant 0.000000e+00 : bf16
    %9 = vector.broadcast %cst : bf16 to vector<1x10x4xbf16>
    %c0_3 = arith.constant 0 : index
    %c0_4 = arith.constant 0 : index
    %c0_5 = arith.constant 0 : index
    %10 = vector.load %arg5[%c0_3, %c0_4, %c0_5] : memref<10x10x4xbf16, #tpu.memory_space<vmem>>, vector<1x10x4xbf16>
    tpu.vector_store %arg5[%c0_3, %c0_4, %c0_5], %9 {strides = array<i32>} : memref<10x10x4xbf16, #tpu.memory_space<vmem>>, vector<1x10x4xbf16>,
    %cst_6 = arith.constant 0.000000e+00 : bf16
    %11 = vector.broadcast %cst_6 : bf16 to vector<1x10x4xbf16>
    %c9 = arith.constant 9 : index
    %c0_7 = arith.constant 0 : index
    %c0_8 = arith.constant 0 : index
    %12 = vector.load %arg5[%c9, %c0_7, %c0_8] : memref<10x10x4xbf16, #tpu.memory_space<vmem>>, vector<1x10x4xbf16>
    tpu.vector_store %arg5[%c9, %c0_7, %c0_8], %11 {strides = array<i32>} : memref<10x10x4xbf16, #tpu.memory_space<vmem>>, vector<1x10x4xbf16>,
    %cst_9 = arith.constant 0.000000e+00 : bf16
    %13 = vector.broadcast %cst_9 : bf16 to vector<10x1x4xbf16>
    %c0_10 = arith.constant 0 : index
    %c0_11 = arith.constant 0 : index
    %c0_12 = arith.constant 0 : index
    %14 = vector.load %arg5[%c0_10, %c0_11, %c0_12] : memref<10x10x4xbf16, #tpu.memory_space<vmem>>, vector<10x1x4xbf16>
    tpu.vector_store %arg5[%c0_10, %c0_11, %c0_12], %13 {strides = array<i32>} : memref<10x10x4xbf16, #tpu.memory_space<vmem>>, vector<10x1x4xbf16>,
    %cst_13 = arith.constant 0.000000e+00 : bf16
    %15 = vector.broadcast %cst_13 : bf16 to vector<10x1x4xbf16>
    %c0_14 = arith.constant 0 : index
    %c9_15 = arith.constant 9 : index
    %c0_16 = arith.constant 0 : index
    %16 = vector.load %arg5[%c0_14, %c9_15, %c0_16] : memref<10x10x4xbf16, #tpu.memory_space<vmem>>, vector<10x1x4xbf16>
    tpu.vector_store %arg5[%c0_14, %c9_15, %c0_16], %15 {strides = array<i32>} : memref<10x10x4xbf16, #tpu.memory_space<vmem>>, vector<10x1x4xbf16>,
    %c1 = arith.constant 1 : index
    %c1_17 = arith.constant 1 : index
    %c0_18 = arith.constant 0 : index
    %17 = vector.load %arg5[%c1, %c1_17, %c0_18] : memref<10x10x4xbf16, #tpu.memory_space<vmem>>, vector<8x8x4xbf16>
    tpu.vector_store %arg5[%c1, %c1_17, %c0_18], %8 {strides = array<i32>} : memref<10x10x4xbf16, #tpu.memory_space<vmem>>, vector<8x8x4xbf16>,
    %c0_19 = arith.constant 0 : index
    %c0_20 = arith.constant 0 : index
    %c0_21 = arith.constant 0 : index
    %18 = vector.load %arg5[%c0_19, %c0_20, %c0_21] : memref<10x10x4xbf16, #tpu.memory_space<vmem>>, vector<8x8x4xbf16>
    %c0_22 = arith.constant 0 : index
    %c0_23 = arith.constant 0 : index
    %c0_24 = arith.constant 0 : index
    %19 = vector.load %arg6[%c0_22, %c0_23, %c0_24] : memref<8x8x36xbf16, #tpu.memory_space<vmem>>, vector<8x8x4xbf16>
    tpu.vector_store %arg6[%c0_22, %c0_23, %c0_24], %18 {strides = array<i32>} : memref<8x8x36xbf16, #tpu.memory_space<vmem>>, vector<8x8x4xbf16>,
    %c0_25 = arith.constant 0 : index
    %c1_26 = arith.constant 1 : index
    %c0_27 = arith.constant 0 : index
    %20 = vector.load %arg5[%c0_25, %c1_26, %c0_27] : memref<10x10x4xbf16, #tpu.memory_space<vmem>>, vector<8x8x4xbf16>
    %c0_28 = arith.constant 0 : index
    %c0_29 = arith.constant 0 : index
    %c4 = arith.constant 4 : index
    %21 = vector.load %arg6[%c0_28, %c0_29, %c4] : memref<8x8x36xbf16, #tpu.memory_space<vmem>>, vector<8x8x4xbf16>
    tpu.vector_store %arg6[%c0_28, %c0_29, %c4], %20 {strides = array<i32>} : memref<8x8x36xbf16, #tpu.memory_space<vmem>>, vector<8x8x4xbf16>,
    %c0_30 = arith.constant 0 : index
    %c2 = arith.constant 2 : index
    %c0_31 = arith.constant 0 : index
    %22 = vector.load %arg5[%c0_30, %c2, %c0_31] : memref<10x10x4xbf16, #tpu.memory_space<vmem>>, vector<8x8x4xbf16>
    %c0_32 = arith.constant 0 : index
    %c0_33 = arith.constant 0 : index
    %c8 = arith.constant 8 : index
    %23 = vector.load %arg6[%c0_32, %c0_33, %c8] : memref<8x8x36xbf16, #tpu.memory_space<vmem>>, vector<8x8x4xbf16>
    tpu.vector_store %arg6[%c0_32, %c0_33, %c8], %22 {strides = array<i32>} : memref<8x8x36xbf16, #tpu.memory_space<vmem>>, vector<8x8x4xbf16>,
    %c1_34 = arith.constant 1 : index
    %c0_35 = arith.constant 0 : index
    %c0_36 = arith.constant 0 : index
    %24 = vector.load %arg5[%c1_34, %c0_35, %c0_36] : memref<10x10x4xbf16, #tpu.memory_space<vmem>>, vector<8x8x4xbf16>
    %c0_37 = arith.constant 0 : index
    %c0_38 = arith.constant 0 : index
    %c12 = arith.constant 12 : index
    %25 = vector.load %arg6[%c0_37, %c0_38, %c12] : memref<8x8x36xbf16, #tpu.memory_space<vmem>>, vector<8x8x4xbf16>
    tpu.vector_store %arg6[%c0_37, %c0_38, %c12], %24 {strides = array<i32>} : memref<8x8x36xbf16, #tpu.memory_space<vmem>>, vector<8x8x4xbf16>,
    %c1_39 = arith.constant 1 : index
    %c1_40 = arith.constant 1 : index
    %c0_41 = arith.constant 0 : index
    %26 = vector.load %arg5[%c1_39, %c1_40, %c0_41] : memref<10x10x4xbf16, #tpu.memory_space<vmem>>, vector<8x8x4xbf16>
    %c0_42 = arith.constant 0 : index
    %c0_43 = arith.constant 0 : index
    %c16 = arith.constant 16 : index
    %27 = vector.load %arg6[%c0_42, %c0_43, %c16] : memref<8x8x36xbf16, #tpu.memory_space<vmem>>, vector<8x8x4xbf16>
    tpu.vector_store %arg6[%c0_42, %c0_43, %c16], %26 {strides = array<i32>} : memref<8x8x36xbf16, #tpu.memory_space<vmem>>, vector<8x8x4xbf16>,
    %c1_44 = arith.constant 1 : index
    %c2_45 = arith.constant 2 : index
    %c0_46 = arith.constant 0 : index
    %28 = vector.load %arg5[%c1_44, %c2_45, %c0_46] : memref<10x10x4xbf16, #tpu.memory_space<vmem>>, vector<8x8x4xbf16>
    %c0_47 = arith.constant 0 : index
    %c0_48 = arith.constant 0 : index
    %c20 = arith.constant 20 : index
    %29 = vector.load %arg6[%c0_47, %c0_48, %c20] : memref<8x8x36xbf16, #tpu.memory_space<vmem>>, vector<8x8x4xbf16>
    tpu.vector_store %arg6[%c0_47, %c0_48, %c20], %28 {strides = array<i32>} : memref<8x8x36xbf16, #tpu.memory_space<vmem>>, vector<8x8x4xbf16>,
    %c2_49 = arith.constant 2 : index
    %c0_50 = arith.constant 0 : index
    %c0_51 = arith.constant 0 : index
    %30 = vector.load %arg5[%c2_49, %c0_50, %c0_51] : memref<10x10x4xbf16, #tpu.memory_space<vmem>>, vector<8x8x4xbf16>
    %c0_52 = arith.constant 0 : index
    %c0_53 = arith.constant 0 : index
    %c24 = arith.constant 24 : index
    %31 = vector.load %arg6[%c0_52, %c0_53, %c24] : memref<8x8x36xbf16, #tpu.memory_space<vmem>>, vector<8x8x4xbf16>
    tpu.vector_store %arg6[%c0_52, %c0_53, %c24], %30 {strides = array<i32>} : memref<8x8x36xbf16, #tpu.memory_space<vmem>>, vector<8x8x4xbf16>,
    %c2_54 = arith.constant 2 : index
    %c1_55 = arith.constant 1 : index
    %c0_56 = arith.constant 0 : index
    %32 = vector.load %arg5[%c2_54, %c1_55, %c0_56] : memref<10x10x4xbf16, #tpu.memory_space<vmem>>, vector<8x8x4xbf16>
    %c0_57 = arith.constant 0 : index
    %c0_58 = arith.constant 0 : index
    %c28 = arith.constant 28 : index
    %33 = vector.load %arg6[%c0_57, %c0_58, %c28] : memref<8x8x36xbf16, #tpu.memory_space<vmem>>, vector<8x8x4xbf16>
    tpu.vector_store %arg6[%c0_57, %c0_58, %c28], %32 {strides = array<i32>} : memref<8x8x36xbf16, #tpu.memory_space<vmem>>, vector<8x8x4xbf16>,
    %c2_59 = arith.constant 2 : index
    %c2_60 = arith.constant 2 : index
    %c0_61 = arith.constant 0 : index
    %34 = vector.load %arg5[%c2_59, %c2_60, %c0_61] : memref<10x10x4xbf16, #tpu.memory_space<vmem>>, vector<8x8x4xbf16>
    %c0_62 = arith.constant 0 : index
    %c0_63 = arith.constant 0 : index
    %c32 = arith.constant 32 : index
    %35 = vector.load %arg6[%c0_62, %c0_63, %c32] : memref<8x8x36xbf16, #tpu.memory_space<vmem>>, vector<8x8x4xbf16>
    tpu.vector_store %arg6[%c0_62, %c0_63, %c32], %34 {strides = array<i32>} : memref<8x8x36xbf16, #tpu.memory_space<vmem>>, vector<8x8x4xbf16>,
    %c0_64 = arith.constant 0 : index
    %c0_65 = arith.constant 0 : index
    %c0_66 = arith.constant 0 : index
    %36 = vector.load %arg6[%c0_64, %c0_65, %c0_66] : memref<8x8x36xbf16, #tpu.memory_space<vmem>>, vector<8x8x36xbf16>
    %37 = vector.shape_cast %36 : vector<8x8x36xbf16> to vector<64x36xbf16>
    %c0_67 = arith.constant 0 : index
    %c0_68 = arith.constant 0 : index
    %38 = vector.load %arg2[%c0_67, %c0_68] : memref<36x8xbf16, #tpu.memory_space<vmem>>, vector<36x8xbf16>
    %cst_69 = arith.constant dense<0.000000e+00> : vector<64x8xf32>
    %39 = tpu.matmul %37, %38, %cst_69 {dimension_numbers = #tpu.dot_dimension_numbers<[1], [0], [0], [1], [0, 0, 1, 1], [], []>} : vector<64x36xbf16>, vector<36x8xbf16>, vector<64x8xf32> -> vector<64x8xf32>
    %cst_70 = arith.constant dense<0.000000e+00> : vector<8xf32>
    %40 = vector.multi_reduction <add>, %39, %cst_70 [0] : vector<64x8xf32> to vector<8xf32>
    %41 = vector.shape_cast %40 : vector<8xf32> to vector<1x8xf32>
    %cst_71 = arith.constant 1.562500e-02 : f32
    %42 = vector.broadcast %cst_71 : f32 to vector<1x8xf32>
    %43 = arith.mulf %41, %42 : vector<1x8xf32>
    %44 = vector.broadcast %43 : vector<1x8xf32> to vector<64x8xf32>
    %45 = arith.subf %39, %44 : vector<64x8xf32>
    %c0_72 = arith.constant 0 : index
    %c0_73 = arith.constant 0 : index
    %c0_74 = arith.constant 0 : index
    %46 = vector.load %arg4[%c0_72, %c0_73, %c0_74] : memref<1x2x8xf32, #tpu.memory_space<vmem>>, vector<1x1x8xf32>
    %47 = vector.shape_cast %46 : vector<1x1x8xf32> to vector<1x8xf32>
    %48 = vector.shape_cast %41 : vector<1x8xf32> to vector<1x1x8xf32>
    tpu.vector_store %arg4[%c0_72, %c0_73, %c0_74], %48 {strides = array<i32>} : memref<1x2x8xf32, #tpu.memory_space<vmem>>, vector<1x1x8xf32>,
    %49 = arith.mulf %45, %45 : vector<64x8xf32>
    %cst_75 = arith.constant dense<0.000000e+00> : vector<8xf32>
    %50 = vector.multi_reduction <add>, %49, %cst_75 [0] : vector<64x8xf32> to vector<8xf32>
    %51 = vector.shape_cast %50 : vector<8xf32> to vector<1x8xf32>
    %c0_76 = arith.constant 0 : index
    %c1_77 = arith.constant 1 : index
    %c0_78 = arith.constant 0 : index
    %52 = vector.load %arg4[%c0_76, %c1_77, %c0_78] : memref<1x2x8xf32, #tpu.memory_space<vmem>>, vector<1x1x8xf32>
    %53 = vector.shape_cast %52 : vector<1x1x8xf32> to vector<1x8xf32>
    %54 = vector.shape_cast %51 : vector<1x8xf32> to vector<1x1x8xf32>
    tpu.vector_store %arg4[%c0_76, %c1_77, %c0_78], %54 {strides = array<i32>} : memref<1x2x8xf32, #tpu.memory_space<vmem>>, vector<1x1x8xf32>,
    %55 = vector.shape_cast %39 : vector<64x8xf32> to vector<8x8x8xf32>
    %56 = arith.truncf %55 : vector<8x8x8xf32> to vector<8x8x8xbf16>
    %57 = vector.extract_strided_slice %56 {offsets = [0, 0, 0], sizes = [8, 1, 8], strides = [1, 1, 1]} : vector<8x8x8xbf16> to vector<8x1x8xbf16>
    %58 = vector.shape_cast %57 : vector<8x1x8xbf16> to vector<8x8xbf16>
    %c0_79 = arith.constant 0 : index
    %c0_80 = arith.constant 0 : index
    %c0_81 = arith.constant 0 : index
    %59 = vector.load %arg3[%c0_79, %c0_80, %c0_81] : memref<1x8x64xbf16, #tpu.memory_space<vmem>>, vector<1x8x8xbf16>
    %60 = vector.shape_cast %59 : vector<1x8x8xbf16> to vector<8x8xbf16>
    %61 = vector.shape_cast %58 : vector<8x8xbf16> to vector<1x8x8xbf16>
    tpu.vector_store %arg3[%c0_79, %c0_80, %c0_81], %61 {strides = array<i32>} : memref<1x8x64xbf16, #tpu.memory_space<vmem>>, vector<1x8x8xbf16>,
    %62 = vector.extract_strided_slice %56 {offsets = [0, 1, 0], sizes = [8, 1, 8], strides = [1, 1, 1]} : vector<8x8x8xbf16> to vector<8x1x8xbf16>
    %63 = vector.shape_cast %62 : vector<8x1x8xbf16> to vector<8x8xbf16>
    %c0_82 = arith.constant 0 : index
    %c0_83 = arith.constant 0 : index
    %c8_84 = arith.constant 8 : index
    %64 = vector.load %arg3[%c0_82, %c0_83, %c8_84] : memref<1x8x64xbf16, #tpu.memory_space<vmem>>, vector<1x8x8xbf16>
    %65 = vector.shape_cast %64 : vector<1x8x8xbf16> to vector<8x8xbf16>
    %66 = vector.shape_cast %63 : vector<8x8xbf16> to vector<1x8x8xbf16>
    tpu.vector_store %arg3[%c0_82, %c0_83, %c8_84], %66 {strides = array<i32>} : memref<1x8x64xbf16, #tpu.memory_space<vmem>>, vector<1x8x8xbf16>,
    %67 = vector.extract_strided_slice %56 {offsets = [0, 2, 0], sizes = [8, 1, 8], strides = [1, 1, 1]} : vector<8x8x8xbf16> to vector<8x1x8xbf16>
    %68 = vector.shape_cast %67 : vector<8x1x8xbf16> to vector<8x8xbf16>
    %c0_85 = arith.constant 0 : index
    %c0_86 = arith.constant 0 : index
    %c16_87 = arith.constant 16 : index
    %69 = vector.load %arg3[%c0_85, %c0_86, %c16_87] : memref<1x8x64xbf16, #tpu.memory_space<vmem>>, vector<1x8x8xbf16>
    %70 = vector.shape_cast %69 : vector<1x8x8xbf16> to vector<8x8xbf16>
    %71 = vector.shape_cast %68 : vector<8x8xbf16> to vector<1x8x8xbf16>
    tpu.vector_store %arg3[%c0_85, %c0_86, %c16_87], %71 {strides = array<i32>} : memref<1x8x64xbf16, #tpu.memory_space<vmem>>, vector<1x8x8xbf16>,
    %72 = vector.extract_strided_slice %56 {offsets = [0, 3, 0], sizes = [8, 1, 8], strides = [1, 1, 1]} : vector<8x8x8xbf16> to vector<8x1x8xbf16>
    %73 = vector.shape_cast %72 : vector<8x1x8xbf16> to vector<8x8xbf16>
    %c0_88 = arith.constant 0 : index
    %c0_89 = arith.constant 0 : index
    %c24_90 = arith.constant 24 : index
    %74 = vector.load %arg3[%c0_88, %c0_89, %c24_90] : memref<1x8x64xbf16, #tpu.memory_space<vmem>>, vector<1x8x8xbf16>
    %75 = vector.shape_cast %74 : vector<1x8x8xbf16> to vector<8x8xbf16>
    %76 = vector.shape_cast %73 : vector<8x8xbf16> to vector<1x8x8xbf16>
    tpu.vector_store %arg3[%c0_88, %c0_89, %c24_90], %76 {strides = array<i32>} : memref<1x8x64xbf16, #tpu.memory_space<vmem>>, vector<1x8x8xbf16>,
    %77 = vector.extract_strided_slice %56 {offsets = [0, 4, 0], sizes = [8, 1, 8], strides = [1, 1, 1]} : vector<8x8x8xbf16> to vector<8x1x8xbf16>
    %78 = vector.shape_cast %77 : vector<8x1x8xbf16> to vector<8x8xbf16>
    %c0_91 = arith.constant 0 : index
    %c0_92 = arith.constant 0 : index
    %c32_93 = arith.constant 32 : index
    %79 = vector.load %arg3[%c0_91, %c0_92, %c32_93] : memref<1x8x64xbf16, #tpu.memory_space<vmem>>, vector<1x8x8xbf16>
    %80 = vector.shape_cast %79 : vector<1x8x8xbf16> to vector<8x8xbf16>
    %81 = vector.shape_cast %78 : vector<8x8xbf16> to vector<1x8x8xbf16>
    tpu.vector_store %arg3[%c0_91, %c0_92, %c32_93], %81 {strides = array<i32>} : memref<1x8x64xbf16, #tpu.memory_space<vmem>>, vector<1x8x8xbf16>,
    %82 = vector.extract_strided_slice %56 {offsets = [0, 5, 0], sizes = [8, 1, 8], strides = [1, 1, 1]} : vector<8x8x8xbf16> to vector<8x1x8xbf16>
    %83 = vector.shape_cast %82 : vector<8x1x8xbf16> to vector<8x8xbf16>
    %c0_94 = arith.constant 0 : index
    %c0_95 = arith.constant 0 : index
    %c40 = arith.constant 40 : index
    %84 = vector.load %arg3[%c0_94, %c0_95, %c40] : memref<1x8x64xbf16, #tpu.memory_space<vmem>>, vector<1x8x8xbf16>
    %85 = vector.shape_cast %84 : vector<1x8x8xbf16> to vector<8x8xbf16>
    %86 = vector.shape_cast %83 : vector<8x8xbf16> to vector<1x8x8xbf16>
    tpu.vector_store %arg3[%c0_94, %c0_95, %c40], %86 {strides = array<i32>} : memref<1x8x64xbf16, #tpu.memory_space<vmem>>, vector<1x8x8xbf16>,
    %87 = vector.extract_strided_slice %56 {offsets = [0, 6, 0], sizes = [8, 1, 8], strides = [1, 1, 1]} : vector<8x8x8xbf16> to vector<8x1x8xbf16>
    %88 = vector.shape_cast %87 : vector<8x1x8xbf16> to vector<8x8xbf16>
    %c0_96 = arith.constant 0 : index
    %c0_97 = arith.constant 0 : index
    %c48 = arith.constant 48 : index
    %89 = vector.load %arg3[%c0_96, %c0_97, %c48] : memref<1x8x64xbf16, #tpu.memory_space<vmem>>, vector<1x8x8xbf16>
    %90 = vector.shape_cast %89 : vector<1x8x8xbf16> to vector<8x8xbf16>
    %91 = vector.shape_cast %88 : vector<8x8xbf16> to vector<1x8x8xbf16>
    tpu.vector_store %arg3[%c0_96, %c0_97, %c48], %91 {strides = array<i32>} : memref<1x8x64xbf16, #tpu.memory_space<vmem>>, vector<1x8x8xbf16>,
    %92 = vector.extract_strided_slice %56 {offsets = [0, 7, 0], sizes = [8, 1, 8], strides = [1, 1, 1]} : vector<8x8x8xbf16> to vector<8x1x8xbf16>
    %93 = vector.shape_cast %92 : vector<8x1x8xbf16> to vector<8x8xbf16>
    %c0_98 = arith.constant 0 : index
    %c0_99 = arith.constant 0 : index
    %c56 = arith.constant 56 : index
    %94 = vector.load %arg3[%c0_98, %c0_99, %c56] : memref<1x8x64xbf16, #tpu.memory_space<vmem>>, vector<1x8x8xbf16>
    %95 = vector.shape_cast %94 : vector<1x8x8xbf16> to vector<8x8xbf16>
    %96 = vector.shape_cast %93 : vector<8x8xbf16> to vector<1x8x8xbf16>
    tpu.vector_store %arg3[%c0_98, %c0_99, %c56], %96 {strides = array<i32>} : memref<1x8x64xbf16, #tpu.memory_space<vmem>>, vector<1x8x8xbf16>,
    return
  }
  func.func @transform_0(%arg0: i32) -> (i32, i32, i32, i32) {
    %c0_i32 = arith.constant 0 : i32
    %c0_i32_0 = arith.constant 0 : i32
    %c0_i32_1 = arith.constant 0 : i32
    %c0_i32_2 = arith.constant 0 : i32
    return %arg0, %c0_i32, %c0_i32_0, %c0_i32_1 : i32, i32, i32, i32
  }
  func.func @transform_1(%arg0: i32) -> (i32, i32) {
    %c0_i32 = arith.constant 0 : i32
    %c0_i32_0 = arith.constant 0 : i32
    %c0_i32_1 = arith.constant 0 : i32
    return %c0_i32, %c0_i32_0 : i32, i32
  }
  func.func @transform_2(%arg0: i32) -> (i32, i32, i32) {
    %c0_i32 = arith.constant 0 : i32
    %c0_i32_0 = arith.constant 0 : i32
    %c0_i32_1 = arith.constant 0 : i32
    return %arg0, %c0_i32, %c0_i32_0 : i32, i32, i32
  }
  func.func @transform_3(%arg0: i32) -> (i32, i32, i32) {
    %c0_i32 = arith.constant 0 : i32
    %c0_i32_0 = arith.constant 0 : i32
    %c0_i32_1 = arith.constant 0 : i32
    return %arg0, %c0_i32, %c0_i32_0 : i32, i32, i32
  }
}

module attributes {stable_mosaic.version = 11 : i64} {
  func.func @_bn_relu_conv2_kernel(%arg0: i32, %arg1: memref<1x8x64xbf16, #tpu.memory_space<vmem>>, %arg2: memref<1x64xf32, #tpu.memory_space<vmem>>, %arg3: memref<1x64xf32, #tpu.memory_space<vmem>>, %arg4: memref<72x8xbf16, #tpu.memory_space<vmem>>, %arg5: memref<1x8x64xf32, #tpu.memory_space<vmem>>, %arg6: memref<1x2x8xf32, #tpu.memory_space<vmem>>, %arg7: memref<10x10x8xbf16, #tpu.memory_space<vmem>>, %arg8: memref<8x8x72xbf16, #tpu.memory_space<vmem>>) attributes {dimension_semantics = [#tpu.dimension_semantics<parallel>], iteration_bounds = array<i64: 2>, scalar_prefetch = 0 : i64, scratch_operands = 2 : i64, tpu.core_type = #tpu.core_type<tc>, window_params = [{transform_indices = @transform_0, window_bounds = array<i64: 1, 8, 64>}, {pipeline_mode = #tpu.pipeline_mode<synchronous>, transform_indices = @transform_1, window_bounds = array<i64: 1, 64>}, {pipeline_mode = #tpu.pipeline_mode<synchronous>, transform_indices = @transform_2, window_bounds = array<i64: 1, 64>}, {pipeline_mode = #tpu.pipeline_mode<synchronous>, transform_indices = @transform_3, window_bounds = array<i64: 72, 8>}, {transform_indices = @transform_4, window_bounds = array<i64: 1, 8, 64>}, {transform_indices = @transform_5, window_bounds = array<i64: 1, 2, 8>}]} {
    %c0 = arith.constant 0 : index
    %c0_0 = arith.constant 0 : index
    %c0_1 = arith.constant 0 : index
    %0 = vector.load %arg1[%c0, %c0_0, %c0_1] : memref<1x8x64xbf16, #tpu.memory_space<vmem>>, vector<1x8x64xbf16>
    %1 = vector.shape_cast %0 : vector<1x8x64xbf16> to vector<8x64xbf16>
    %2 = arith.extf %1 : vector<8x64xbf16> to vector<8x64xf32>
    %c0_2 = arith.constant 0 : index
    %c0_3 = arith.constant 0 : index
    %3 = vector.load %arg2[%c0_2, %c0_3] : memref<1x64xf32, #tpu.memory_space<vmem>>, vector<1x64xf32>
    %4 = vector.broadcast %3 : vector<1x64xf32> to vector<8x64xf32>
    %5 = arith.mulf %2, %4 : vector<8x64xf32>
    %c0_4 = arith.constant 0 : index
    %c0_5 = arith.constant 0 : index
    %6 = vector.load %arg3[%c0_4, %c0_5] : memref<1x64xf32, #tpu.memory_space<vmem>>, vector<1x64xf32>
    %7 = vector.broadcast %6 : vector<1x64xf32> to vector<8x64xf32>
    %8 = arith.addf %5, %7 : vector<8x64xf32>
    %cst = arith.constant 0.000000e+00 : f32
    %9 = vector.broadcast %cst : f32 to vector<8x64xf32>
    %10 = arith.maximumf %8, %9 : vector<8x64xf32>
    %11 = arith.truncf %10 : vector<8x64xf32> to vector<8x64xbf16>
    %cst_6 = arith.constant 0.000000e+00 : bf16
    %12 = vector.broadcast %cst_6 : bf16 to vector<1x10x8xbf16>
    %c0_7 = arith.constant 0 : index
    %c0_8 = arith.constant 0 : index
    %c0_9 = arith.constant 0 : index
    %13 = vector.load %arg7[%c0_7, %c0_8, %c0_9] : memref<10x10x8xbf16, #tpu.memory_space<vmem>>, vector<1x10x8xbf16>
    tpu.vector_store %arg7[%c0_7, %c0_8, %c0_9], %12 {strides = array<i32>} : memref<10x10x8xbf16, #tpu.memory_space<vmem>>, vector<1x10x8xbf16>,
    %cst_10 = arith.constant 0.000000e+00 : bf16
    %14 = vector.broadcast %cst_10 : bf16 to vector<1x10x8xbf16>
    %c9 = arith.constant 9 : index
    %c0_11 = arith.constant 0 : index
    %c0_12 = arith.constant 0 : index
    %15 = vector.load %arg7[%c9, %c0_11, %c0_12] : memref<10x10x8xbf16, #tpu.memory_space<vmem>>, vector<1x10x8xbf16>
    tpu.vector_store %arg7[%c9, %c0_11, %c0_12], %14 {strides = array<i32>} : memref<10x10x8xbf16, #tpu.memory_space<vmem>>, vector<1x10x8xbf16>,
    %cst_13 = arith.constant 0.000000e+00 : bf16
    %16 = vector.broadcast %cst_13 : bf16 to vector<10x1x8xbf16>
    %c0_14 = arith.constant 0 : index
    %c0_15 = arith.constant 0 : index
    %c0_16 = arith.constant 0 : index
    %17 = vector.load %arg7[%c0_14, %c0_15, %c0_16] : memref<10x10x8xbf16, #tpu.memory_space<vmem>>, vector<10x1x8xbf16>
    tpu.vector_store %arg7[%c0_14, %c0_15, %c0_16], %16 {strides = array<i32>} : memref<10x10x8xbf16, #tpu.memory_space<vmem>>, vector<10x1x8xbf16>,
    %cst_17 = arith.constant 0.000000e+00 : bf16
    %18 = vector.broadcast %cst_17 : bf16 to vector<10x1x8xbf16>
    %c0_18 = arith.constant 0 : index
    %c9_19 = arith.constant 9 : index
    %c0_20 = arith.constant 0 : index
    %19 = vector.load %arg7[%c0_18, %c9_19, %c0_20] : memref<10x10x8xbf16, #tpu.memory_space<vmem>>, vector<10x1x8xbf16>
    tpu.vector_store %arg7[%c0_18, %c9_19, %c0_20], %18 {strides = array<i32>} : memref<10x10x8xbf16, #tpu.memory_space<vmem>>, vector<10x1x8xbf16>,
    %20 = vector.extract_strided_slice %11 {offsets = [0, 0], sizes = [8, 8], strides = [1, 1]} : vector<8x64xbf16> to vector<8x8xbf16>
    %21 = vector.shape_cast %20 : vector<8x8xbf16> to vector<8x1x8xbf16>
    %c1 = arith.constant 1 : index
    %c1_21 = arith.constant 1 : index
    %c0_22 = arith.constant 0 : index
    %22 = vector.load %arg7[%c1, %c1_21, %c0_22] : memref<10x10x8xbf16, #tpu.memory_space<vmem>>, vector<8x1x8xbf16>
    tpu.vector_store %arg7[%c1, %c1_21, %c0_22], %21 {strides = array<i32>} : memref<10x10x8xbf16, #tpu.memory_space<vmem>>, vector<8x1x8xbf16>,
    %23 = vector.extract_strided_slice %11 {offsets = [0, 8], sizes = [8, 8], strides = [1, 1]} : vector<8x64xbf16> to vector<8x8xbf16>
    %24 = vector.shape_cast %23 : vector<8x8xbf16> to vector<8x1x8xbf16>
    %c1_23 = arith.constant 1 : index
    %c2 = arith.constant 2 : index
    %c0_24 = arith.constant 0 : index
    %25 = vector.load %arg7[%c1_23, %c2, %c0_24] : memref<10x10x8xbf16, #tpu.memory_space<vmem>>, vector<8x1x8xbf16>
    tpu.vector_store %arg7[%c1_23, %c2, %c0_24], %24 {strides = array<i32>} : memref<10x10x8xbf16, #tpu.memory_space<vmem>>, vector<8x1x8xbf16>,
    %26 = vector.extract_strided_slice %11 {offsets = [0, 16], sizes = [8, 8], strides = [1, 1]} : vector<8x64xbf16> to vector<8x8xbf16>
    %27 = vector.shape_cast %26 : vector<8x8xbf16> to vector<8x1x8xbf16>
    %c1_25 = arith.constant 1 : index
    %c3 = arith.constant 3 : index
    %c0_26 = arith.constant 0 : index
    %28 = vector.load %arg7[%c1_25, %c3, %c0_26] : memref<10x10x8xbf16, #tpu.memory_space<vmem>>, vector<8x1x8xbf16>
    tpu.vector_store %arg7[%c1_25, %c3, %c0_26], %27 {strides = array<i32>} : memref<10x10x8xbf16, #tpu.memory_space<vmem>>, vector<8x1x8xbf16>,
    %29 = vector.extract_strided_slice %11 {offsets = [0, 24], sizes = [8, 8], strides = [1, 1]} : vector<8x64xbf16> to vector<8x8xbf16>
    %30 = vector.shape_cast %29 : vector<8x8xbf16> to vector<8x1x8xbf16>
    %c1_27 = arith.constant 1 : index
    %c4 = arith.constant 4 : index
    %c0_28 = arith.constant 0 : index
    %31 = vector.load %arg7[%c1_27, %c4, %c0_28] : memref<10x10x8xbf16, #tpu.memory_space<vmem>>, vector<8x1x8xbf16>
    tpu.vector_store %arg7[%c1_27, %c4, %c0_28], %30 {strides = array<i32>} : memref<10x10x8xbf16, #tpu.memory_space<vmem>>, vector<8x1x8xbf16>,
    %32 = vector.extract_strided_slice %11 {offsets = [0, 32], sizes = [8, 8], strides = [1, 1]} : vector<8x64xbf16> to vector<8x8xbf16>
    %33 = vector.shape_cast %32 : vector<8x8xbf16> to vector<8x1x8xbf16>
    %c1_29 = arith.constant 1 : index
    %c5 = arith.constant 5 : index
    %c0_30 = arith.constant 0 : index
    %34 = vector.load %arg7[%c1_29, %c5, %c0_30] : memref<10x10x8xbf16, #tpu.memory_space<vmem>>, vector<8x1x8xbf16>
    tpu.vector_store %arg7[%c1_29, %c5, %c0_30], %33 {strides = array<i32>} : memref<10x10x8xbf16, #tpu.memory_space<vmem>>, vector<8x1x8xbf16>,
    %35 = vector.extract_strided_slice %11 {offsets = [0, 40], sizes = [8, 8], strides = [1, 1]} : vector<8x64xbf16> to vector<8x8xbf16>
    %36 = vector.shape_cast %35 : vector<8x8xbf16> to vector<8x1x8xbf16>
    %c1_31 = arith.constant 1 : index
    %c6 = arith.constant 6 : index
    %c0_32 = arith.constant 0 : index
    %37 = vector.load %arg7[%c1_31, %c6, %c0_32] : memref<10x10x8xbf16, #tpu.memory_space<vmem>>, vector<8x1x8xbf16>
    tpu.vector_store %arg7[%c1_31, %c6, %c0_32], %36 {strides = array<i32>} : memref<10x10x8xbf16, #tpu.memory_space<vmem>>, vector<8x1x8xbf16>,
    %38 = vector.extract_strided_slice %11 {offsets = [0, 48], sizes = [8, 8], strides = [1, 1]} : vector<8x64xbf16> to vector<8x8xbf16>
    %39 = vector.shape_cast %38 : vector<8x8xbf16> to vector<8x1x8xbf16>
    %c1_33 = arith.constant 1 : index
    %c7 = arith.constant 7 : index
    %c0_34 = arith.constant 0 : index
    %40 = vector.load %arg7[%c1_33, %c7, %c0_34] : memref<10x10x8xbf16, #tpu.memory_space<vmem>>, vector<8x1x8xbf16>
    tpu.vector_store %arg7[%c1_33, %c7, %c0_34], %39 {strides = array<i32>} : memref<10x10x8xbf16, #tpu.memory_space<vmem>>, vector<8x1x8xbf16>,
    %41 = vector.extract_strided_slice %11 {offsets = [0, 56], sizes = [8, 8], strides = [1, 1]} : vector<8x64xbf16> to vector<8x8xbf16>
    %42 = vector.shape_cast %41 : vector<8x8xbf16> to vector<8x1x8xbf16>
    %c1_35 = arith.constant 1 : index
    %c8 = arith.constant 8 : index
    %c0_36 = arith.constant 0 : index
    %43 = vector.load %arg7[%c1_35, %c8, %c0_36] : memref<10x10x8xbf16, #tpu.memory_space<vmem>>, vector<8x1x8xbf16>
    tpu.vector_store %arg7[%c1_35, %c8, %c0_36], %42 {strides = array<i32>} : memref<10x10x8xbf16, #tpu.memory_space<vmem>>, vector<8x1x8xbf16>,
    %c0_37 = arith.constant 0 : index
    %c0_38 = arith.constant 0 : index
    %c0_39 = arith.constant 0 : index
    %44 = vector.load %arg7[%c0_37, %c0_38, %c0_39] : memref<10x10x8xbf16, #tpu.memory_space<vmem>>, vector<8x8x8xbf16>
    %c0_40 = arith.constant 0 : index
    %c0_41 = arith.constant 0 : index
    %c0_42 = arith.constant 0 : index
    %45 = vector.load %arg8[%c0_40, %c0_41, %c0_42] : memref<8x8x72xbf16, #tpu.memory_space<vmem>>, vector<8x8x8xbf16>
    tpu.vector_store %arg8[%c0_40, %c0_41, %c0_42], %44 {strides = array<i32>} : memref<8x8x72xbf16, #tpu.memory_space<vmem>>, vector<8x8x8xbf16>,
    %c0_43 = arith.constant 0 : index
    %c1_44 = arith.constant 1 : index
    %c0_45 = arith.constant 0 : index
    %46 = vector.load %arg7[%c0_43, %c1_44, %c0_45] : memref<10x10x8xbf16, #tpu.memory_space<vmem>>, vector<8x8x8xbf16>
    %c0_46 = arith.constant 0 : index
    %c0_47 = arith.constant 0 : index
    %c8_48 = arith.constant 8 : index
    %47 = vector.load %arg8[%c0_46, %c0_47, %c8_48] : memref<8x8x72xbf16, #tpu.memory_space<vmem>>, vector<8x8x8xbf16>
    tpu.vector_store %arg8[%c0_46, %c0_47, %c8_48], %46 {strides = array<i32>} : memref<8x8x72xbf16, #tpu.memory_space<vmem>>, vector<8x8x8xbf16>,
    %c0_49 = arith.constant 0 : index
    %c2_50 = arith.constant 2 : index
    %c0_51 = arith.constant 0 : index
    %48 = vector.load %arg7[%c0_49, %c2_50, %c0_51] : memref<10x10x8xbf16, #tpu.memory_space<vmem>>, vector<8x8x8xbf16>
    %c0_52 = arith.constant 0 : index
    %c0_53 = arith.constant 0 : index
    %c16 = arith.constant 16 : index
    %49 = vector.load %arg8[%c0_52, %c0_53, %c16] : memref<8x8x72xbf16, #tpu.memory_space<vmem>>, vector<8x8x8xbf16>
    tpu.vector_store %arg8[%c0_52, %c0_53, %c16], %48 {strides = array<i32>} : memref<8x8x72xbf16, #tpu.memory_space<vmem>>, vector<8x8x8xbf16>,
    %c1_54 = arith.constant 1 : index
    %c0_55 = arith.constant 0 : index
    %c0_56 = arith.constant 0 : index
    %50 = vector.load %arg7[%c1_54, %c0_55, %c0_56] : memref<10x10x8xbf16, #tpu.memory_space<vmem>>, vector<8x8x8xbf16>
    %c0_57 = arith.constant 0 : index
    %c0_58 = arith.constant 0 : index
    %c24 = arith.constant 24 : index
    %51 = vector.load %arg8[%c0_57, %c0_58, %c24] : memref<8x8x72xbf16, #tpu.memory_space<vmem>>, vector<8x8x8xbf16>
    tpu.vector_store %arg8[%c0_57, %c0_58, %c24], %50 {strides = array<i32>} : memref<8x8x72xbf16, #tpu.memory_space<vmem>>, vector<8x8x8xbf16>,
    %c1_59 = arith.constant 1 : index
    %c1_60 = arith.constant 1 : index
    %c0_61 = arith.constant 0 : index
    %52 = vector.load %arg7[%c1_59, %c1_60, %c0_61] : memref<10x10x8xbf16, #tpu.memory_space<vmem>>, vector<8x8x8xbf16>
    %c0_62 = arith.constant 0 : index
    %c0_63 = arith.constant 0 : index
    %c32 = arith.constant 32 : index
    %53 = vector.load %arg8[%c0_62, %c0_63, %c32] : memref<8x8x72xbf16, #tpu.memory_space<vmem>>, vector<8x8x8xbf16>
    tpu.vector_store %arg8[%c0_62, %c0_63, %c32], %52 {strides = array<i32>} : memref<8x8x72xbf16, #tpu.memory_space<vmem>>, vector<8x8x8xbf16>,
    %c1_64 = arith.constant 1 : index
    %c2_65 = arith.constant 2 : index
    %c0_66 = arith.constant 0 : index
    %54 = vector.load %arg7[%c1_64, %c2_65, %c0_66] : memref<10x10x8xbf16, #tpu.memory_space<vmem>>, vector<8x8x8xbf16>
    %c0_67 = arith.constant 0 : index
    %c0_68 = arith.constant 0 : index
    %c40 = arith.constant 40 : index
    %55 = vector.load %arg8[%c0_67, %c0_68, %c40] : memref<8x8x72xbf16, #tpu.memory_space<vmem>>, vector<8x8x8xbf16>
    tpu.vector_store %arg8[%c0_67, %c0_68, %c40], %54 {strides = array<i32>} : memref<8x8x72xbf16, #tpu.memory_space<vmem>>, vector<8x8x8xbf16>,
    %c2_69 = arith.constant 2 : index
    %c0_70 = arith.constant 0 : index
    %c0_71 = arith.constant 0 : index
    %56 = vector.load %arg7[%c2_69, %c0_70, %c0_71] : memref<10x10x8xbf16, #tpu.memory_space<vmem>>, vector<8x8x8xbf16>
    %c0_72 = arith.constant 0 : index
    %c0_73 = arith.constant 0 : index
    %c48 = arith.constant 48 : index
    %57 = vector.load %arg8[%c0_72, %c0_73, %c48] : memref<8x8x72xbf16, #tpu.memory_space<vmem>>, vector<8x8x8xbf16>
    tpu.vector_store %arg8[%c0_72, %c0_73, %c48], %56 {strides = array<i32>} : memref<8x8x72xbf16, #tpu.memory_space<vmem>>, vector<8x8x8xbf16>,
    %c2_74 = arith.constant 2 : index
    %c1_75 = arith.constant 1 : index
    %c0_76 = arith.constant 0 : index
    %58 = vector.load %arg7[%c2_74, %c1_75, %c0_76] : memref<10x10x8xbf16, #tpu.memory_space<vmem>>, vector<8x8x8xbf16>
    %c0_77 = arith.constant 0 : index
    %c0_78 = arith.constant 0 : index
    %c56 = arith.constant 56 : index
    %59 = vector.load %arg8[%c0_77, %c0_78, %c56] : memref<8x8x72xbf16, #tpu.memory_space<vmem>>, vector<8x8x8xbf16>
    tpu.vector_store %arg8[%c0_77, %c0_78, %c56], %58 {strides = array<i32>} : memref<8x8x72xbf16, #tpu.memory_space<vmem>>, vector<8x8x8xbf16>,
    %c2_79 = arith.constant 2 : index
    %c2_80 = arith.constant 2 : index
    %c0_81 = arith.constant 0 : index
    %60 = vector.load %arg7[%c2_79, %c2_80, %c0_81] : memref<10x10x8xbf16, #tpu.memory_space<vmem>>, vector<8x8x8xbf16>
    %c0_82 = arith.constant 0 : index
    %c0_83 = arith.constant 0 : index
    %c64 = arith.constant 64 : index
    %61 = vector.load %arg8[%c0_82, %c0_83, %c64] : memref<8x8x72xbf16, #tpu.memory_space<vmem>>, vector<8x8x8xbf16>
    tpu.vector_store %arg8[%c0_82, %c0_83, %c64], %60 {strides = array<i32>} : memref<8x8x72xbf16, #tpu.memory_space<vmem>>, vector<8x8x8xbf16>,
    %c0_84 = arith.constant 0 : index
    %c0_85 = arith.constant 0 : index
    %c0_86 = arith.constant 0 : index
    %62 = vector.load %arg8[%c0_84, %c0_85, %c0_86] : memref<8x8x72xbf16, #tpu.memory_space<vmem>>, vector<8x8x72xbf16>
    %63 = vector.shape_cast %62 : vector<8x8x72xbf16> to vector<64x72xbf16>
    %c0_87 = arith.constant 0 : index
    %c0_88 = arith.constant 0 : index
    %64 = vector.load %arg4[%c0_87, %c0_88] : memref<72x8xbf16, #tpu.memory_space<vmem>>, vector<72x8xbf16>
    %cst_89 = arith.constant dense<0.000000e+00> : vector<64x8xf32>
    %65 = tpu.matmul %63, %64, %cst_89 {dimension_numbers = #tpu.dot_dimension_numbers<[1], [0], [0], [1], [0, 0, 1, 1], [], []>} : vector<64x72xbf16>, vector<72x8xbf16>, vector<64x8xf32> -> vector<64x8xf32>
    %cst_90 = arith.constant dense<0.000000e+00> : vector<8xf32>
    %66 = vector.multi_reduction <add>, %65, %cst_90 [0] : vector<64x8xf32> to vector<8xf32>
    %67 = vector.shape_cast %66 : vector<8xf32> to vector<1x8xf32>
    %cst_91 = arith.constant 1.562500e-02 : f32
    %68 = vector.broadcast %cst_91 : f32 to vector<1x8xf32>
    %69 = arith.mulf %67, %68 : vector<1x8xf32>
    %70 = vector.broadcast %69 : vector<1x8xf32> to vector<64x8xf32>
    %71 = arith.subf %65, %70 : vector<64x8xf32>
    %c0_92 = arith.constant 0 : index
    %c0_93 = arith.constant 0 : index
    %c0_94 = arith.constant 0 : index
    %72 = vector.load %arg6[%c0_92, %c0_93, %c0_94] : memref<1x2x8xf32, #tpu.memory_space<vmem>>, vector<1x1x8xf32>
    %73 = vector.shape_cast %72 : vector<1x1x8xf32> to vector<1x8xf32>
    %74 = vector.shape_cast %67 : vector<1x8xf32> to vector<1x1x8xf32>
    tpu.vector_store %arg6[%c0_92, %c0_93, %c0_94], %74 {strides = array<i32>} : memref<1x2x8xf32, #tpu.memory_space<vmem>>, vector<1x1x8xf32>,
    %75 = arith.mulf %71, %71 : vector<64x8xf32>
    %cst_95 = arith.constant dense<0.000000e+00> : vector<8xf32>
    %76 = vector.multi_reduction <add>, %75, %cst_95 [0] : vector<64x8xf32> to vector<8xf32>
    %77 = vector.shape_cast %76 : vector<8xf32> to vector<1x8xf32>
    %c0_96 = arith.constant 0 : index
    %c1_97 = arith.constant 1 : index
    %c0_98 = arith.constant 0 : index
    %78 = vector.load %arg6[%c0_96, %c1_97, %c0_98] : memref<1x2x8xf32, #tpu.memory_space<vmem>>, vector<1x1x8xf32>
    %79 = vector.shape_cast %78 : vector<1x1x8xf32> to vector<1x8xf32>
    %80 = vector.shape_cast %77 : vector<1x8xf32> to vector<1x1x8xf32>
    tpu.vector_store %arg6[%c0_96, %c1_97, %c0_98], %80 {strides = array<i32>} : memref<1x2x8xf32, #tpu.memory_space<vmem>>, vector<1x1x8xf32>,
    %81 = vector.shape_cast %65 : vector<64x8xf32> to vector<8x8x8xf32>
    %82 = vector.extract_strided_slice %81 {offsets = [0, 0, 0], sizes = [8, 1, 8], strides = [1, 1, 1]} : vector<8x8x8xf32> to vector<8x1x8xf32>
    %83 = vector.shape_cast %82 : vector<8x1x8xf32> to vector<8x8xf32>
    %c0_99 = arith.constant 0 : index
    %c0_100 = arith.constant 0 : index
    %c0_101 = arith.constant 0 : index
    %84 = vector.load %arg5[%c0_99, %c0_100, %c0_101] : memref<1x8x64xf32, #tpu.memory_space<vmem>>, vector<1x8x8xf32>
    %85 = vector.shape_cast %84 : vector<1x8x8xf32> to vector<8x8xf32>
    %86 = vector.shape_cast %83 : vector<8x8xf32> to vector<1x8x8xf32>
    tpu.vector_store %arg5[%c0_99, %c0_100, %c0_101], %86 {strides = array<i32>} : memref<1x8x64xf32, #tpu.memory_space<vmem>>, vector<1x8x8xf32>,
    %87 = vector.extract_strided_slice %81 {offsets = [0, 1, 0], sizes = [8, 1, 8], strides = [1, 1, 1]} : vector<8x8x8xf32> to vector<8x1x8xf32>
    %88 = vector.shape_cast %87 : vector<8x1x8xf32> to vector<8x8xf32>
    %c0_102 = arith.constant 0 : index
    %c0_103 = arith.constant 0 : index
    %c8_104 = arith.constant 8 : index
    %89 = vector.load %arg5[%c0_102, %c0_103, %c8_104] : memref<1x8x64xf32, #tpu.memory_space<vmem>>, vector<1x8x8xf32>
    %90 = vector.shape_cast %89 : vector<1x8x8xf32> to vector<8x8xf32>
    %91 = vector.shape_cast %88 : vector<8x8xf32> to vector<1x8x8xf32>
    tpu.vector_store %arg5[%c0_102, %c0_103, %c8_104], %91 {strides = array<i32>} : memref<1x8x64xf32, #tpu.memory_space<vmem>>, vector<1x8x8xf32>,
    %92 = vector.extract_strided_slice %81 {offsets = [0, 2, 0], sizes = [8, 1, 8], strides = [1, 1, 1]} : vector<8x8x8xf32> to vector<8x1x8xf32>
    %93 = vector.shape_cast %92 : vector<8x1x8xf32> to vector<8x8xf32>
    %c0_105 = arith.constant 0 : index
    %c0_106 = arith.constant 0 : index
    %c16_107 = arith.constant 16 : index
    %94 = vector.load %arg5[%c0_105, %c0_106, %c16_107] : memref<1x8x64xf32, #tpu.memory_space<vmem>>, vector<1x8x8xf32>
    %95 = vector.shape_cast %94 : vector<1x8x8xf32> to vector<8x8xf32>
    %96 = vector.shape_cast %93 : vector<8x8xf32> to vector<1x8x8xf32>
    tpu.vector_store %arg5[%c0_105, %c0_106, %c16_107], %96 {strides = array<i32>} : memref<1x8x64xf32, #tpu.memory_space<vmem>>, vector<1x8x8xf32>,
    %97 = vector.extract_strided_slice %81 {offsets = [0, 3, 0], sizes = [8, 1, 8], strides = [1, 1, 1]} : vector<8x8x8xf32> to vector<8x1x8xf32>
    %98 = vector.shape_cast %97 : vector<8x1x8xf32> to vector<8x8xf32>
    %c0_108 = arith.constant 0 : index
    %c0_109 = arith.constant 0 : index
    %c24_110 = arith.constant 24 : index
    %99 = vector.load %arg5[%c0_108, %c0_109, %c24_110] : memref<1x8x64xf32, #tpu.memory_space<vmem>>, vector<1x8x8xf32>
    %100 = vector.shape_cast %99 : vector<1x8x8xf32> to vector<8x8xf32>
    %101 = vector.shape_cast %98 : vector<8x8xf32> to vector<1x8x8xf32>
    tpu.vector_store %arg5[%c0_108, %c0_109, %c24_110], %101 {strides = array<i32>} : memref<1x8x64xf32, #tpu.memory_space<vmem>>, vector<1x8x8xf32>,
    %102 = vector.extract_strided_slice %81 {offsets = [0, 4, 0], sizes = [8, 1, 8], strides = [1, 1, 1]} : vector<8x8x8xf32> to vector<8x1x8xf32>
    %103 = vector.shape_cast %102 : vector<8x1x8xf32> to vector<8x8xf32>
    %c0_111 = arith.constant 0 : index
    %c0_112 = arith.constant 0 : index
    %c32_113 = arith.constant 32 : index
    %104 = vector.load %arg5[%c0_111, %c0_112, %c32_113] : memref<1x8x64xf32, #tpu.memory_space<vmem>>, vector<1x8x8xf32>
    %105 = vector.shape_cast %104 : vector<1x8x8xf32> to vector<8x8xf32>
    %106 = vector.shape_cast %103 : vector<8x8xf32> to vector<1x8x8xf32>
    tpu.vector_store %arg5[%c0_111, %c0_112, %c32_113], %106 {strides = array<i32>} : memref<1x8x64xf32, #tpu.memory_space<vmem>>, vector<1x8x8xf32>,
    %107 = vector.extract_strided_slice %81 {offsets = [0, 5, 0], sizes = [8, 1, 8], strides = [1, 1, 1]} : vector<8x8x8xf32> to vector<8x1x8xf32>
    %108 = vector.shape_cast %107 : vector<8x1x8xf32> to vector<8x8xf32>
    %c0_114 = arith.constant 0 : index
    %c0_115 = arith.constant 0 : index
    %c40_116 = arith.constant 40 : index
    %109 = vector.load %arg5[%c0_114, %c0_115, %c40_116] : memref<1x8x64xf32, #tpu.memory_space<vmem>>, vector<1x8x8xf32>
    %110 = vector.shape_cast %109 : vector<1x8x8xf32> to vector<8x8xf32>
    %111 = vector.shape_cast %108 : vector<8x8xf32> to vector<1x8x8xf32>
    tpu.vector_store %arg5[%c0_114, %c0_115, %c40_116], %111 {strides = array<i32>} : memref<1x8x64xf32, #tpu.memory_space<vmem>>, vector<1x8x8xf32>,
    %112 = vector.extract_strided_slice %81 {offsets = [0, 6, 0], sizes = [8, 1, 8], strides = [1, 1, 1]} : vector<8x8x8xf32> to vector<8x1x8xf32>
    %113 = vector.shape_cast %112 : vector<8x1x8xf32> to vector<8x8xf32>
    %c0_117 = arith.constant 0 : index
    %c0_118 = arith.constant 0 : index
    %c48_119 = arith.constant 48 : index
    %114 = vector.load %arg5[%c0_117, %c0_118, %c48_119] : memref<1x8x64xf32, #tpu.memory_space<vmem>>, vector<1x8x8xf32>
    %115 = vector.shape_cast %114 : vector<1x8x8xf32> to vector<8x8xf32>
    %116 = vector.shape_cast %113 : vector<8x8xf32> to vector<1x8x8xf32>
    tpu.vector_store %arg5[%c0_117, %c0_118, %c48_119], %116 {strides = array<i32>} : memref<1x8x64xf32, #tpu.memory_space<vmem>>, vector<1x8x8xf32>,
    %117 = vector.extract_strided_slice %81 {offsets = [0, 7, 0], sizes = [8, 1, 8], strides = [1, 1, 1]} : vector<8x8x8xf32> to vector<8x1x8xf32>
    %118 = vector.shape_cast %117 : vector<8x1x8xf32> to vector<8x8xf32>
    %c0_120 = arith.constant 0 : index
    %c0_121 = arith.constant 0 : index
    %c56_122 = arith.constant 56 : index
    %119 = vector.load %arg5[%c0_120, %c0_121, %c56_122] : memref<1x8x64xf32, #tpu.memory_space<vmem>>, vector<1x8x8xf32>
    %120 = vector.shape_cast %119 : vector<1x8x8xf32> to vector<8x8xf32>
    %121 = vector.shape_cast %118 : vector<8x8xf32> to vector<1x8x8xf32>
    tpu.vector_store %arg5[%c0_120, %c0_121, %c56_122], %121 {strides = array<i32>} : memref<1x8x64xf32, #tpu.memory_space<vmem>>, vector<1x8x8xf32>,
    return
  }
  func.func @transform_0(%arg0: i32) -> (i32, i32, i32) {
    %c0_i32 = arith.constant 0 : i32
    %c0_i32_0 = arith.constant 0 : i32
    %c0_i32_1 = arith.constant 0 : i32
    return %arg0, %c0_i32, %c0_i32_0 : i32, i32, i32
  }
  func.func @transform_1(%arg0: i32) -> (i32, i32) {
    %c0_i32 = arith.constant 0 : i32
    %c0_i32_0 = arith.constant 0 : i32
    %c0_i32_1 = arith.constant 0 : i32
    return %c0_i32, %c0_i32_0 : i32, i32
  }
  func.func @transform_2(%arg0: i32) -> (i32, i32) {
    %c0_i32 = arith.constant 0 : i32
    %c0_i32_0 = arith.constant 0 : i32
    %c0_i32_1 = arith.constant 0 : i32
    return %c0_i32, %c0_i32_0 : i32, i32
  }
  func.func @transform_3(%arg0: i32) -> (i32, i32) {
    %c0_i32 = arith.constant 0 : i32
    %c0_i32_0 = arith.constant 0 : i32
    %c0_i32_1 = arith.constant 0 : i32
    return %c0_i32, %c0_i32_0 : i32, i32
  }
  func.func @transform_4(%arg0: i32) -> (i32, i32, i32) {
    %c0_i32 = arith.constant 0 : i32
    %c0_i32_0 = arith.constant 0 : i32
    %c0_i32_1 = arith.constant 0 : i32
    return %arg0, %c0_i32, %c0_i32_0 : i32, i32, i32
  }
  func.func @transform_5(%arg0: i32) -> (i32, i32, i32) {
    %c0_i32 = arith.constant 0 : i32
    %c0_i32_0 = arith.constant 0 : i32
    %c0_i32_1 = arith.constant 0 : i32
    return %arg0, %c0_i32, %c0_i32_0 : i32, i32, i32
  }
}

</mosaic_0001>

<llo_original>
// kernel: _lambda_.2
$region0: #{_lambda_.2}
  #allocation0 [shape = 'u32[]', space=smem, size = 0x4, offset = 0x4, fixed_abs, tag = 'smem constant byte address 0x4 - core index']
  #allocation1 [shape = 'u32[144,128]{1,0:T(1,128)}', space=vmem, size = 0x12000, scoped, tag = 'internal scratch']
  #allocation2 [shape = 'bf16[10,10,4]{2,1,0:T(8,128)(2,1)}', space=vmem, size = 0xa000, scoped, tag = 'scratch operand']
  #allocation3 [shape = 'bf16[8,8,36]{2,1,0:T(8,128)(2,1)}', space=vmem, size = 0x4000, scoped, tag = 'scratch operand']
  %s0 = inlined_call_operand.vmem [shape: bf16[2,8,8,16], index: 0, kind: input, shape index: {}]
  %s1 = inlined_call_operand.vmem [shape: bf16[36,8], index: 1, kind: input, shape index: {}]
  %s2 = inlined_call_operand.vmem [shape: bf16[2,8,64], index: 2, kind: output, shape index: {0}]
  %s3 = inlined_call_operand.vmem [shape: f32[2,2,8], index: 3, kind: output, shape index: {1}]
  %4 = xla_tuple %s2, %s3
  %s5 = sld [smem:[#allocation0]]
  $region49: #{_lambda_.2} parent=0
    _
  %s7 = ssub.s32 1, %s5
  %s8 = scalar_select 0, %s7, %s5
  loop: start=0, step=1, limit=4
  $region2: #{_lambda_.2} parent=0 // loop_pre_header
    _
  $region3: #{_lambda_.2} parent=0 // loop_header
    %s10 = sphi 0, %s14
    %p11 = scmp.ge.s32.totalorder %s10, 4
    %s20 = sphi 0, %s22
    %s23 = sphi 0, %s20
    %s24 = sphi 0, %s23
    %s40 = sphi 0, %s24
    %s44 = sphi 0, %s44
    %s46 = sphi 0, %s44
    %s47 = sphi 0, %s46
    %s61 = sphi 0, %s47
    %s67 = sphi 0, %s69
    %s70 = sphi 0, %s67
    %s71 = sphi 0, %s70
    %s87 = sphi 0, %s71
    %s93 = sphi 0, %s95
    %s96 = sphi 0, %s93
    %s97 = sphi 0, %s96
    %s113 = sphi 0, %s97
  $region4: #{_lambda_.2} parent=0 // loop_header_branch
    %13 = sbr.rel (%p11) target = $region8
  $region5: #{_lambda_.2} parent=0 // loop_body
    %s15 = ssub.s32 %s10, 1
    %s16 = ssub.s32 %s10, 2
    %s17 = sadd.s32 %s10, 1
    %s18 = ssub.s32 %s10, %s17
    %p19 = scmp.eq.s32.totalorder %s18, 0
    %s21 = sadd.s32 %s20, 1
    %s22 = scalar_select %p19, %s20, %s21
    %p25 = pneg %p19
    %p26 = scmp.eq.s32.totalorder %s10, 1
    %p27 = por %p25, %p26
    %p28 = scmp.ne.s32.totalorder %s20, %s23
    %p29 = scmp.eq.s32.totalorder %s10, 0
    %p30 = por %p28, %p29
    %p31 = scmp.ne.s32.totalorder %s20, %s23
    %p32 = scmp.eq.s32.totalorder %s15, 1
    %p33 = por %p31, %p32
    %p34 = scmp.ne.s32.totalorder %s23, %s24
    %p35 = scmp.eq.s32.totalorder %s15, 0
    %p36 = por %p34, %p35
    %p37 = scmp.ne.s32.totalorder %s23, %s24
    %p38 = scmp.eq.s32.totalorder %s16, 1
    %p39 = por %p37, %p38
    %p41 = scmp.ne.s32.totalorder %s24, %s40
    %p42 = scmp.eq.s32.totalorder %s16, 0
    %p43 = por %p41, %p42
    %s45 = sadd.s32 %s44, 1
    %p48 = scmp.eq.s32.totalorder %s10, 1
    %p49 = scmp.ne.s32.totalorder %s44, %s46
    %p50 = scmp.eq.s32.totalorder %s10, 0
    %p51 = por %p49, %p50
    %p52 = scmp.ne.s32.totalorder %s44, %s46
    %p53 = scmp.eq.s32.totalorder %s15, 1
    %p54 = por %p52, %p53
    %p55 = scmp.ne.s32.totalorder %s46, %s47
    %p56 = scmp.eq.s32.totalorder %s15, 0
    %p57 = por %p55, %p56
    %p58 = scmp.ne.s32.totalorder %s46, %s47
    %p59 = scmp.eq.s32.totalorder %s16, 1
    %p60 = por %p58, %p59
    %p62 = scmp.ne.s32.totalorder %s47, %s61
    %p63 = scmp.eq.s32.totalorder %s16, 0
    %p64 = por %p62, %p63
    %s65 = ssub.s32 %s10, %s17
    %p66 = scmp.eq.s32.totalorder %s65, 0
    %s68 = sadd.s32 %s67, 1
    %s69 = scalar_select %p66, %s67, %s68
    %p72 = pneg %p66
    %p73 = scmp.eq.s32.totalorder %s10, 1
    %p74 = por %p72, %p73
    %p75 = scmp.ne.s32.totalorder %s67, %s70
    %p76 = scmp.eq.s32.totalorder %s10, 0
    %p77 = por %p75, %p76
    %p78 = scmp.ne.s32.totalorder %s67, %s70
    %p79 = scmp.eq.s32.totalorder %s15, 1
    %p80 = por %p78, %p79
    %p81 = scmp.ne.s32.totalorder %s70, %s71
    %p82 = scmp.eq.s32.totalorder %s15, 0
    %p83 = por %p81, %p82
    %p84 = scmp.ne.s32.totalorder %s70, %s71
    %p85 = scmp.eq.s32.totalorder %s16, 1
    %p86 = por %p84, %p85
    %p88 = scmp.ne.s32.totalorder %s71, %s87
    %p89 = scmp.eq.s32.totalorder %s16, 0
    %p90 = por %p88, %p89
    %s91 = ssub.s32 %s10, %s17
    %p92 = scmp.eq.s32.totalorder %s91, 0
    %s94 = sadd.s32 %s93, 1
    %s95 = scalar_select %p92, %s93, %s94
    %p98 = pneg %p92
    %p99 = scmp.eq.s32.totalorder %s10, 1
    %p100 = por %p98, %p99
    %p101 = scmp.ne.s32.totalorder %s93, %s96
    %p102 = scmp.eq.s32.totalorder %s10, 0
    %p103 = por %p101, %p102
    %p104 = scmp.ne.s32.totalorder %s93, %s96
    %p105 = scmp.eq.s32.totalorder %s15, 1
    %p106 = por %p104, %p105
    %p107 = scmp.ne.s32.totalorder %s96, %s97
    %p108 = scmp.eq.s32.totalorder %s15, 0
    %p109 = por %p107, %p108
    %p110 = scmp.ne.s32.totalorder %s96, %s97
    %p111 = scmp.eq.s32.totalorder %s16, 1
    %p112 = por %p110, %p111
    %p114 = scmp.ne.s32.totalorder %s97, %s113
    %p115 = scmp.eq.s32.totalorder %s16, 0
    %p116 = por %p114, %p115
    %p117 = scmp.le.s32.totalorder 1, %s10
    %p118 = scmp.lt.s32.totalorder %s10, 3
    %p119 = pnand %p117, %p118
    %p120 = pneg %p119
    // Predicated region
    $region9: #{_lambda_.2} parent=5 // pred_check
      _
    $region10: #{_lambda_.2} parent=5 // pred_check_branch
      %122 = sbr.rel (%p119) target = $region12
    $region11: #{_lambda_.2} parent=5 // pred_region
      %s123 = ssub.s32 %s10, 1
      // Predicated region
      $region13: #{_lambda_.2} parent=11 // pred_check
        %p124 = pneg %p57
      $region14: #{_lambda_.2} parent=11 // pred_check_branch
        %126 = sbr.rel (%p124) target = $region16
      $region15: #{_lambda_.2} parent=11 // pred_region
        _
      $region16: #{_lambda_.2} parent=11 // pred_fallthru
        _
    $region12: #{_lambda_.2} parent=5 // pred_fallthru
      _
    %p127 = scmp.lt.s32.totalorder %s10, 2
    // Predicated region
    $region17: #{_lambda_.2} parent=5 // pred_check
      %p128 = pneg %p127
    $region18: #{_lambda_.2} parent=5 // pred_check_branch
      %130 = sbr.rel (%p128) target = $region20
    $region19: #{_lambda_.2} parent=5 // pred_region
      // Predicated region
      $region21: #{_lambda_.2} parent=19 // pred_check
        %p131 = pneg %p30
      $region22: #{_lambda_.2} parent=19 // pred_check_branch
        %133 = sbr.rel (%p131) target = $region24
      $region23: #{_lambda_.2} parent=19 // pred_region
        %p134 = scmp.lt.s32.totalorder %s10, 1
        %s135 = scalar_select %p134, %s10, 1
        %s136 = smul.addr %s135, 8
        %s137 = smul.addr %s136, 4
        %s138 = scalar_lea.vmem %s0, %s137
      $region24: #{_lambda_.2} parent=19 // pred_fallthru
        _
    $region20: #{_lambda_.2} parent=5 // pred_fallthru
      _
    %p139 = scmp.le.s32.totalorder 1, %s10
    %p140 = scmp.lt.s32.totalorder %s10, 3
    %p141 = pnand %p139, %p140
    %p142 = pneg %p141
    // Predicated region
    $region25: #{_lambda_.2} parent=5 // pred_check
      _
    $region26: #{_lambda_.2} parent=5 // pred_check_branch
      %144 = sbr.rel (%p141) target = $region28
    $region27: #{_lambda_.2} parent=5 // pred_region
      %s145 = ssub.s32 %s10, 1
      %p146 = scmp.lt.s32.totalorder %s15, 1
      %s147 = scalar_select %p146, %s15, 1
      %s148 = smul.addr %s147, 8
      %s149 = smul.addr %s148, 4
      %s150 = scalar_lea.vmem %s0, %s149
      %p151 = pneg %p36
      %p152 = pneg %p33
      %p153 = pneg %p57
      %p154 = pneg %p54
      %p155 = pneg %p83
      %p156 = pneg %p80
      %p157 = scmp.lt.s32.totalorder %s15, 1
      %s158 = scalar_select %p157, %s15, 1
      %s159 = smul.addr %s158, 4
      %s160 = scalar_lea.vmem %s2, %s159
      %p161 = pneg %p109
      %p162 = pneg %p106
      %p163 = scmp.lt.s32.totalorder %s15, 1
      %s164 = scalar_select %p163, %s15, 1
      %s165 = smul.addr %s164, 2
      %s166 = scalar_lea.vmem %s3, %s165
      %p167 = scmp.lt.s32.totalorder %s15, 1
      %s168 = scalar_select %p167, %s15, 1
      %s169 = smul.addr %s168, 8
      %s170 = smul.addr %s169, 4
      %s171 = scalar_lea.vmem %s0, %s170
      %p172 = scmp.lt.s32.totalorder %s15, 1
      %s173 = scalar_select %p172, %s15, 1
      %s174 = smul.addr %s173, 4
      %s175 = scalar_lea.vmem %s2, %s174
      %p176 = scmp.lt.s32.totalorder %s15, 1
      %s177 = scalar_select %p176, %s15, 1
      %s178 = smul.addr %s177, 2
      %s179 = scalar_lea.vmem %s3, %s178
      %v181 = vld [vmem:[%s171] sm:$0xf]
      %v182 = vld [vmem:[%s171 + $0x4] sm:$0xf]
      %v183 = vld [vmem:[%s171 + $0x8] sm:$0xf]
      %v184 = vld [vmem:[%s171 + $0xc] sm:$0xf]
      %v185 = vld [vmem:[%s171 + $0x10] sm:$0xf]
      %v186 = vld [vmem:[%s171 + $0x14] sm:$0xf]
      %v187 = vld [vmem:[%s171 + $0x18] sm:$0xf]
      %v188 = vld [vmem:[%s171 + $0x1c] sm:$0xf]
      %197 = vrot.lane.b32.xlu0 %v181, 124
      %v198 = vpop.permute.xlu0 %197
      %199 = vrot.lane.b32.xlu0 %v182, 124
      %v200 = vpop.permute.xlu0 %199
      %201 = vrot.lane.b32.xlu0 %v183, 124
      %v202 = vpop.permute.xlu0 %201
      %203 = vrot.lane.b32.xlu0 %v184, 124
      %v204 = vpop.permute.xlu0 %203
      %205 = vrot.lane.b32.xlu0 %v185, 124
      %v206 = vpop.permute.xlu0 %205
      %207 = vrot.lane.b32.xlu0 %v186, 124
      %v208 = vpop.permute.xlu0 %207
      %209 = vrot.lane.b32.xlu0 %v187, 124
      %v210 = vpop.permute.xlu0 %209
      %211 = vrot.lane.b32.xlu0 %v188, 124
      %v212 = vpop.permute.xlu0 %211
      %v221 = vmax.bf16 %v181, %v198
      %v222 = vmax.bf16 %v182, %v200
      %v223 = vmax.bf16 %v183, %v202
      %v224 = vmax.bf16 %v184, %v204
      %v225 = vmax.bf16 %v185, %v206
      %v226 = vmax.bf16 %v186, %v208
      %v227 = vmax.bf16 %v187, %v210
      %v228 = vmax.bf16 %v188, %v212
      %237 = vrot.lane.b32.xlu0 %v221, 120
      %v238 = vpop.permute.xlu0 %237
      %239 = vrot.lane.b32.xlu0 %v222, 120
      %v240 = vpop.permute.xlu0 %239
      %241 = vrot.lane.b32.xlu0 %v223, 120
      %v242 = vpop.permute.xlu0 %241
      %243 = vrot.lane.b32.xlu0 %v224, 120
      %v244 = vpop.permute.xlu0 %243
      %245 = vrot.lane.b32.xlu0 %v225, 120
      %v246 = vpop.permute.xlu0 %245
      %247 = vrot.lane.b32.xlu0 %v226, 120
      %v248 = vpop.permute.xlu0 %247
      %249 = vrot.lane.b32.xlu0 %v227, 120
      %v250 = vpop.permute.xlu0 %249
      %251 = vrot.lane.b32.xlu0 %v228, 120
      %v252 = vpop.permute.xlu0 %251
      %v261 = vmax.bf16 %v221, %v238
      %v262 = vmax.bf16 %v222, %v240
      %v263 = vmax.bf16 %v223, %v242
      %v264 = vmax.bf16 %v224, %v244
      %v265 = vmax.bf16 %v225, %v246
      %v266 = vmax.bf16 %v226, %v248
      %v267 = vmax.bf16 %v227, %v250
      %v268 = vmax.bf16 %v228, %v252
      %vm269 = vcmask 27648
      %270 = vst.msk [vmem:[#allocation2] sm:$0xf] %vm269, 0
      %vm271 = vcmask 24576
      %272 = vst.msk [vmem:[#allocation2 + $0x4] sm:$0x1] %vm271, 0
      %s273 = scalar_lea.vmem [#allocation2], 72
      %274 = vst.msk [vmem:[%s273] sm:$0xf] %vm269, 0
      %275 = vst.msk [vmem:[%s273 + $0x4] sm:$0x1] %vm271, 0
      %vm276 = vcmask 24576
      %vm277 = vsmask.f32 256
      %vm278 = vmand %vm276, %vm277
      %v279 = vld [vmem:[#allocation2] sm:$0x1]
      %v280 = vsel %vm278, 0, %v279
      %281 = vst [vmem:[#allocation2] sm:$0x1] %v280
      %v282 = vld [vmem:[#allocation2 + $0x8] sm:$0x1]
      %v283 = vsel %vm278, 0, %v282
      %284 = vst [vmem:[#allocation2 + $0x8] sm:$0x1] %v283
      %v285 = vld [vmem:[#allocation2 + $0x10] sm:$0x1]
      %v286 = vsel %vm278, 0, %v285
      %287 = vst [vmem:[#allocation2 + $0x10] sm:$0x1] %v286
      %v288 = vld [vmem:[#allocation2 + $0x18] sm:$0x1]
      %v289 = vsel %vm278, 0, %v288
      %290 = vst [vmem:[#allocation2 + $0x18] sm:$0x1] %v289
      %v291 = vld [vmem:[#allocation2 + $0x20] sm:$0x1]
      %v292 = vsel %vm278, 0, %v291
      %293 = vst [vmem:[#allocation2 + $0x20] sm:$0x1] %v292
      %v294 = vld [vmem:[#allocation2 + $0x28] sm:$0x1]
      %v295 = vsel %vm278, 0, %v294
      %296 = vst [vmem:[#allocation2 + $0x28] sm:$0x1] %v295
      %v297 = vld [vmem:[#allocation2 + $0x30] sm:$0x1]
      %v298 = vsel %vm278, 0, %v297
      %299 = vst [vmem:[#allocation2 + $0x30] sm:$0x1] %v298
      %v300 = vld [vmem:[#allocation2 + $0x38] sm:$0x1]
      %v301 = vsel %vm278, 0, %v300
      %302 = vst [vmem:[#allocation2 + $0x38] sm:$0x1] %v301
      %v303 = vld [vmem:[#allocation2 + $0x40] sm:$0x1]
      %v304 = vsel %vm278, 0, %v303
      %305 = vst [vmem:[#allocation2 + $0x40] sm:$0x1] %v304
      %v306 = vld [vmem:[#allocation2 + $0x48] sm:$0x1]
      %v307 = vsel %vm278, 0, %v306
      %308 = vst [vmem:[#allocation2 + $0x48] sm:$0x1] %v307
      %vm309 = vsmask.f32 7938
      %vm310 = vmand %vm276, %vm309
      %v311 = vld [vmem:[#allocation2 + $0x4] sm:$0x1]
      %v312 = vsel %vm310, 0, %v311
      %313 = vst [vmem:[#allocation2 + $0x4] sm:$0x1] %v312
      %v314 = vld [vmem:[#allocation2 + $0xc] sm:$0x1]
      %v315 = vsel %vm310, 0, %v314
      %316 = vst [vmem:[#allocation2 + $0xc] sm:$0x1] %v315
      %v317 = vld [vmem:[#allocation2 + $0x14] sm:$0x1]
      %v318 = vsel %vm310, 0, %v317
      %319 = vst [vmem:[#allocation2 + $0x14] sm:$0x1] %v318
      %v320 = vld [vmem:[#allocation2 + $0x1c] sm:$0x1]
      %v321 = vsel %vm310, 0, %v320
      %322 = vst [vmem:[#allocation2 + $0x1c] sm:$0x1] %v321
      %v323 = vld [vmem:[#allocation2 + $0x24] sm:$0x1]
      %v324 = vsel %vm310, 0, %v323
      %325 = vst [vmem:[#allocation2 + $0x24] sm:$0x1] %v324
      %v326 = vld [vmem:[#allocation2 + $0x2c] sm:$0x1]
      %v327 = vsel %vm310, 0, %v326
      %328 = vst [vmem:[#allocation2 + $0x2c] sm:$0x1] %v327
      %v329 = vld [vmem:[#allocation2 + $0x34] sm:$0x1]
      %v330 = vsel %vm310, 0, %v329
      %331 = vst [vmem:[#allocation2 + $0x34] sm:$0x1] %v330
      %v332 = vld [vmem:[#allocation2 + $0x3c] sm:$0x1]
      %v333 = vsel %vm310, 0, %v332
      %334 = vst [vmem:[#allocation2 + $0x3c] sm:$0x1] %v333
      %v335 = vld [vmem:[#allocation2 + $0x44] sm:$0x1]
      %v336 = vsel %vm310, 0, %v335
      %337 = vst [vmem:[#allocation2 + $0x44] sm:$0x1] %v336
      %v338 = vld [vmem:[#allocation2 + $0x4c] sm:$0x1]
      %v339 = vsel %vm310, 0, %v338
      %340 = vst [vmem:[#allocation2 + $0x4c] sm:$0x1] %v339
      %v342 = vshrl.u32 %v261, 16
      %v344 = vrot.slane %v342, 7
      %v345 = vshll.u32 %v261, 16
      %v347 = vor.u32 %v344, %v345
      %v348 = vrot.slane %v344, 4
      %v350 = vshrl.u32 %v262, 16
      %v352 = vrot.slane %v350, 7
      %v353 = vshll.u32 %v262, 16
      %v355 = vor.u32 %v352, %v353
      %v356 = vrot.slane %v352, 4
      %v358 = vshrl.u32 %v263, 16
      %v360 = vrot.slane %v358, 7
      %v361 = vshll.u32 %v263, 16
      %v363 = vor.u32 %v360, %v361
      %v364 = vrot.slane %v360, 4
      %v366 = vshrl.u32 %v264, 16
      %v368 = vrot.slane %v366, 7
      %v369 = vshll.u32 %v264, 16
      %v371 = vor.u32 %v368, %v369
      %v372 = vrot.slane %v368, 4
      %v374 = vshrl.u32 %v265, 16
      %v376 = vrot.slane %v374, 7
      %v377 = vshll.u32 %v265, 16
      %v379 = vor.u32 %v376, %v377
      %v380 = vrot.slane %v376, 4
      %v382 = vshrl.u32 %v266, 16
      %v384 = vrot.slane %v382, 7
      %v385 = vshll.u32 %v266, 16
      %v387 = vor.u32 %v384, %v385
      %v388 = vrot.slane %v384, 4
      %v390 = vshrl.u32 %v267, 16
      %v392 = vrot.slane %v390, 7
      %v393 = vshll.u32 %v267, 16
      %v395 = vor.u32 %v392, %v393
      %v396 = vrot.slane %v392, 4
      %v398 = vshrl.u32 %v268, 16
      %v400 = vrot.slane %v398, 7
      %v401 = vshll.u32 %v268, 16
      %v403 = vor.u32 %v400, %v401
      %v404 = vrot.slane %v400, 4
      %s421 = scalar_lea.vmem [#allocation2], 8
      %vm422 = vcmask 27648
      %vm423 = vmand %vm422, %vm309
      %v424 = vld [vmem:[%s421] sm:$0xf]
      %v425 = vsel %vm423, %v347, %v424
      %426 = vst [vmem:[%s421] sm:$0xf] %v425
      %v427 = vld [vmem:[%s421 + $0x4] sm:$0x1]
      %v428 = vsel %vm278, %v348, %v427
      %429 = vst [vmem:[%s421 + $0x4] sm:$0x1] %v428
      %v430 = vld [vmem:[%s421 + $0x8] sm:$0xf]
      %v431 = vsel %vm423, %v355, %v430
      %432 = vst [vmem:[%s421 + $0x8] sm:$0xf] %v431
      %v433 = vld [vmem:[%s421 + $0xc] sm:$0x1]
      %v434 = vsel %vm278, %v356, %v433
      %435 = vst [vmem:[%s421 + $0xc] sm:$0x1] %v434
      %v436 = vld [vmem:[%s421 + $0x10] sm:$0xf]
      %v437 = vsel %vm423, %v363, %v436
      %438 = vst [vmem:[%s421 + $0x10] sm:$0xf] %v437
      %v439 = vld [vmem:[%s421 + $0x14] sm:$0x1]
      %v440 = vsel %vm278, %v364, %v439
      %441 = vst [vmem:[%s421 + $0x14] sm:$0x1] %v440
      %v442 = vld [vmem:[%s421 + $0x18] sm:$0xf]
      %v443 = vsel %vm423, %v371, %v442
      %444 = vst [vmem:[%s421 + $0x18] sm:$0xf] %v443
      %v445 = vld [vmem:[%s421 + $0x1c] sm:$0x1]
      %v446 = vsel %vm278, %v372, %v445
      %447 = vst [vmem:[%s421 + $0x1c] sm:$0x1] %v446
      %v448 = vld [vmem:[%s421 + $0x20] sm:$0xf]
      %v449 = vsel %vm423, %v379, %v448
      %450 = vst [vmem:[%s421 + $0x20] sm:$0xf] %v449
      %v451 = vld [vmem:[%s421 + $0x24] sm:$0x1]
      %v452 = vsel %vm278, %v380, %v451
      %453 = vst [vmem:[%s421 + $0x24] sm:$0x1] %v452
      %v454 = vld [vmem:[%s421 + $0x28] sm:$0xf]
      %v455 = vsel %vm423, %v387, %v454
      %456 = vst [vmem:[%s421 + $0x28] sm:$0xf] %v455
      %v457 = vld [vmem:[%s421 + $0x2c] sm:$0x1]
      %v458 = vsel %vm278, %v388, %v457
      %459 = vst [vmem:[%s421 + $0x2c] sm:$0x1] %v458
      %v460 = vld [vmem:[%s421 + $0x30] sm:$0xf]
      %v461 = vsel %vm423, %v395, %v460
      %462 = vst [vmem:[%s421 + $0x30] sm:$0xf] %v461
      %v463 = vld [vmem:[%s421 + $0x34] sm:$0x1]
      %v464 = vsel %vm278, %v396, %v463
      %465 = vst [vmem:[%s421 + $0x34] sm:$0x1] %v464
      %v466 = vld [vmem:[%s421 + $0x38] sm:$0xf]
      %v467 = vsel %vm423, %v403, %v466
      %468 = vst [vmem:[%s421 + $0x38] sm:$0xf] %v467
      %v469 = vld [vmem:[%s421 + $0x3c] sm:$0x1]
      %v470 = vsel %vm278, %v404, %v469
      %471 = vst [vmem:[%s421 + $0x3c] sm:$0x1] %v470
      %v472 = vld [vmem:[#allocation2] sm:$0xf]
      %v473 = vld [vmem:[#allocation2 + $0x8] sm:$0xf]
      %v474 = vld [vmem:[#allocation2 + $0x10] sm:$0xf]
      %v475 = vld [vmem:[#allocation2 + $0x18] sm:$0xf]
      %v476 = vld [vmem:[#allocation2 + $0x20] sm:$0xf]
      %v477 = vld [vmem:[#allocation2 + $0x28] sm:$0xf]
      %v478 = vld [vmem:[#allocation2 + $0x30] sm:$0xf]
      %v479 = vld [vmem:[#allocation2 + $0x38] sm:$0xf]
      %480 = vst.msk [vmem:[#allocation3] sm:$0xf] %vm269, %v472
      %481 = vst.msk [vmem:[#allocation3 + $0x4] sm:$0xf] %vm269, %v473
      %482 = vst.msk [vmem:[#allocation3 + $0x8] sm:$0xf] %vm269, %v474
      %483 = vst.msk [vmem:[#allocation3 + $0xc] sm:$0xf] %vm269, %v475
      %484 = vst.msk [vmem:[#allocation3 + $0x10] sm:$0xf] %vm269, %v476
      %485 = vst.msk [vmem:[#allocation3 + $0x14] sm:$0xf] %vm269, %v477
      %486 = vst.msk [vmem:[#allocation3 + $0x18] sm:$0xf] %vm269, %v478
      %487 = vst.msk [vmem:[#allocation3 + $0x1c] sm:$0xf] %vm269, %v479
      %v488 = vld [vmem:[#allocation2] sm:$0xf]
      %v489 = vld [vmem:[#allocation2 + $0x4] sm:$0x1]
      %v490 = vld [vmem:[#allocation2 + $0x8] sm:$0xf]
      %v491 = vld [vmem:[#allocation2 + $0xc] sm:$0x1]
      %v492 = vld [vmem:[#allocation2 + $0x10] sm:$0xf]
      %v493 = vld [vmem:[#allocation2 + $0x14] sm:$0x1]
      %v494 = vld [vmem:[#allocation2 + $0x18] sm:$0xf]
      %v495 = vld [vmem:[#allocation2 + $0x1c] sm:$0x1]
      %v496 = vld [vmem:[#allocation2 + $0x20] sm:$0xf]
      %v497 = vld [vmem:[#allocation2 + $0x24] sm:$0x1]
      %v498 = vld [vmem:[#allocation2 + $0x28] sm:$0xf]
      %v499 = vld [vmem:[#allocation2 + $0x2c] sm:$0x1]
      %v500 = vld [vmem:[#allocation2 + $0x30] sm:$0xf]
      %v501 = vld [vmem:[#allocation2 + $0x34] sm:$0x1]
      %v502 = vld [vmem:[#allocation2 + $0x38] sm:$0xf]
      %v503 = vld [vmem:[#allocation2 + $0x3c] sm:$0x1]
      %vm504 = vsmask.f32 3328
      %vm505 = vsmask.f32 7440
      %vm506 = vmor %vm504, %vm505
      %v508 = vshrl.u32 %v488, 16
      %v510 = vrot.slane %v508, 4
      %v511 = vshll.u32 %v488, 16
      %v513 = vrot.slane %v511, 5
      %v514 = vor.u32 %v510, %v513
      %v515 = vrot.slane %v514, 4
      %v517 = vshll.u32 %v489, 16
      %v519 = vrot.slane %v517, 5
      %v520 = vsel %vm506, %v515, %v519
      %v522 = vshrl.u32 %v490, 16
      %v524 = vrot.slane %v522, 4
      %v525 = vshll.u32 %v490, 16
      %v527 = vrot.slane %v525, 5
      %v528 = vor.u32 %v524, %v527
      %v529 = vrot.slane %v528, 4
      %v531 = vshll.u32 %v491, 16
      %v533 = vrot.slane %v531, 5
      %v534 = vsel %vm506, %v529, %v533
      %v536 = vshrl.u32 %v492, 16
      %v538 = vrot.slane %v536, 4
      %v539 = vshll.u32 %v492, 16
      %v541 = vrot.slane %v539, 5
      %v542 = vor.u32 %v538, %v541
      %v543 = vrot.slane %v542, 4
      %v545 = vshll.u32 %v493, 16
      %v547 = vrot.slane %v545, 5
      %v548 = vsel %vm506, %v543, %v547
      %v550 = vshrl.u32 %v494, 16
      %v552 = vrot.slane %v550, 4
      %v553 = vshll.u32 %v494, 16
      %v555 = vrot.slane %v553, 5
      %v556 = vor.u32 %v552, %v555
      %v557 = vrot.slane %v556, 4
      %v559 = vshll.u32 %v495, 16
      %v561 = vrot.slane %v559, 5
      %v562 = vsel %vm506, %v557, %v561
      %v564 = vshrl.u32 %v496, 16
      %v566 = vrot.slane %v564, 4
      %v567 = vshll.u32 %v496, 16
      %v569 = vrot.slane %v567, 5
      %v570 = vor.u32 %v566, %v569
      %v571 = vrot.slane %v570, 4
      %v573 = vshll.u32 %v497, 16
      %v575 = vrot.slane %v573, 5
      %v576 = vsel %vm506, %v571, %v575
      %v578 = vshrl.u32 %v498, 16
      %v580 = vrot.slane %v578, 4
      %v581 = vshll.u32 %v498, 16
      %v583 = vrot.slane %v581, 5
      %v584 = vor.u32 %v580, %v583
      %v585 = vrot.slane %v584, 4
      %v587 = vshll.u32 %v499, 16
      %v589 = vrot.slane %v587, 5
      %v590 = vsel %vm506, %v585, %v589
      %v592 = vshrl.u32 %v500, 16
      %v594 = vrot.slane %v592, 4
      %v595 = vshll.u32 %v500, 16
      %v597 = vrot.slane %v595, 5
      %v598 = vor.u32 %v594, %v597
      %v599 = vrot.slane %v598, 4
      %v601 = vshll.u32 %v501, 16
      %v603 = vrot.slane %v601, 5
      %v604 = vsel %vm506, %v599, %v603
      %v606 = vshrl.u32 %v502, 16
      %v608 = vrot.slane %v606, 4
      %v609 = vshll.u32 %v502, 16
      %v611 = vrot.slane %v609, 5
      %v612 = vor.u32 %v608, %v611
      %v613 = vrot.slane %v612, 4
      %v615 = vshll.u32 %v503, 16
      %v617 = vrot.slane %v615, 5
      %v618 = vsel %vm506, %v613, %v617
      %619 = vrot.lane.b32.xlu0 %v520, 4
      %v620 = vpop.permute.xlu0 %619
      %621 = vrot.lane.b32.xlu0 %v534, 4
      %v622 = vpop.permute.xlu0 %621
      %623 = vrot.lane.b32.xlu0 %v548, 4
      %v624 = vpop.permute.xlu0 %623
      %625 = vrot.lane.b32.xlu0 %v562, 4
      %v626 = vpop.permute.xlu0 %625
      %627 = vrot.lane.b32.xlu0 %v576, 4
      %v628 = vpop.permute.xlu0 %627
      %629 = vrot.lane.b32.xlu0 %v590, 4
      %v630 = vpop.permute.xlu0 %629
      %631 = vrot.lane.b32.xlu0 %v604, 4
      %v632 = vpop.permute.xlu0 %631
      %633 = vrot.lane.b32.xlu0 %v618, 4
      %v634 = vpop.permute.xlu0 %633
      %vm643 = vcmask 60448
      %644 = vst.msk [vmem:[#allocation3] sm:$0xf] %vm643, %v620
      %645 = vst.msk [vmem:[#allocation3 + $0x4] sm:$0xf] %vm643, %v622
      %646 = vst.msk [vmem:[#allocation3 + $0x8] sm:$0xf] %vm643, %v624
      %647 = vst.msk [vmem:[#allocation3 + $0xc] sm:$0xf] %vm643, %v626
      %648 = vst.msk [vmem:[#allocation3 + $0x10] sm:$0xf] %vm643, %v628
      %649 = vst.msk [vmem:[#allocation3 + $0x14] sm:$0xf] %vm643, %v630
      %650 = vst.msk [vmem:[#allocation3 + $0x18] sm:$0xf] %vm643, %v632
      %651 = vst.msk [vmem:[#allocation3 + $0x1c] sm:$0xf] %vm643, %v634
      %v652 = vld [vmem:[#allocation2] sm:$0xe]
      %v653 = vld [vmem:[#allocation2 + $0x4] sm:$0x1]
      %v654 = vld [vmem:[#allocation2 + $0x8] sm:$0xe]
      %v655 = vld [vmem:[#allocation2 + $0xc] sm:$0x1]
      %v656 = vld [vmem:[#allocation2 + $0x10] sm:$0xe]
      %v657 = vld [vmem:[#allocation2 + $0x14] sm:$0x1]
      %v658 = vld [vmem:[#allocation2 + $0x18] sm:$0xe]
      %v659 = vld [vmem:[#allocation2 + $0x1c] sm:$0x1]
      %v660 = vld [vmem:[#allocation2 + $0x20] sm:$0xe]
      %v661 = vld [vmem:[#allocation2 + $0x24] sm:$0x1]
      %v662 = vld [vmem:[#allocation2 + $0x28] sm:$0xe]
      %v663 = vld [vmem:[#allocation2 + $0x2c] sm:$0x1]
      %v664 = vld [vmem:[#allocation2 + $0x30] sm:$0xe]
      %v665 = vld [vmem:[#allocation2 + $0x34] sm:$0x1]
      %v666 = vld [vmem:[#allocation2 + $0x38] sm:$0xe]
      %v667 = vld [vmem:[#allocation2 + $0x3c] sm:$0x1]
      %vm684 = vcmask 1042432
      %vm685 = vcmask 1046532
      %vm686 = vmor %vm684, %vm685
      %v687 = vrot.slane %v652, 5
      %v688 = vrot.slane %v687, 4
      %v689 = vrot.slane %v653, 5
      %v690 = vsel %vm686, %v688, %v689
      %v691 = vrot.slane %v654, 5
      %v692 = vrot.slane %v691, 4
      %v693 = vrot.slane %v655, 5
      %v694 = vsel %vm686, %v692, %v693
      %v695 = vrot.slane %v656, 5
      %v696 = vrot.slane %v695, 4
      %v697 = vrot.slane %v657, 5
      %v698 = vsel %vm686, %v696, %v697
      %v699 = vrot.slane %v658, 5
      %v700 = vrot.slane %v699, 4
      %v701 = vrot.slane %v659, 5
      %v702 = vsel %vm686, %v700, %v701
      %v703 = vrot.slane %v660, 5
      %v704 = vrot.slane %v703, 4
      %v705 = vrot.slane %v661, 5
      %v706 = vsel %vm686, %v704, %v705
      %v707 = vrot.slane %v662, 5
      %v708 = vrot.slane %v707, 4
      %v709 = vrot.slane %v663, 5
      %v710 = vsel %vm686, %v708, %v709
      %v711 = vrot.slane %v664, 5
      %v712 = vrot.slane %v711, 4
      %v713 = vrot.slane %v665, 5
      %v714 = vsel %vm686, %v712, %v713
      %v715 = vrot.slane %v666, 5
      %v716 = vrot.slane %v715, 4
      %v717 = vrot.slane %v667, 5
      %v718 = vsel %vm686, %v716, %v717
      %719 = vrot.lane.b32.xlu0 %v690, 8
      %v720 = vpop.permute.xlu0 %719
      %721 = vrot.lane.b32.xlu0 %v694, 8
      %v722 = vpop.permute.xlu0 %721
      %723 = vrot.lane.b32.xlu0 %v698, 8
      %v724 = vpop.permute.xlu0 %723
      %725 = vrot.lane.b32.xlu0 %v702, 8
      %v726 = vpop.permute.xlu0 %725
      %727 = vrot.lane.b32.xlu0 %v706, 8
      %v728 = vpop.permute.xlu0 %727
      %729 = vrot.lane.b32.xlu0 %v710, 8
      %v730 = vpop.permute.xlu0 %729
      %731 = vrot.lane.b32.xlu0 %v714, 8
      %v732 = vpop.permute.xlu0 %731
      %733 = vrot.lane.b32.xlu0 %v718, 8
      %v734 = vpop.permute.xlu0 %733
      %vm743 = vcmask 93248
      %744 = vst.msk [vmem:[#allocation3] sm:$0xf] %vm743, %v720
      %745 = vst.msk [vmem:[#allocation3 + $0x4] sm:$0xf] %vm743, %v722
      %746 = vst.msk [vmem:[#allocation3 + $0x8] sm:$0xf] %vm743, %v724
      %747 = vst.msk [vmem:[#allocation3 + $0xc] sm:$0xf] %vm743, %v726
      %748 = vst.msk [vmem:[#allocation3 + $0x10] sm:$0xf] %vm743, %v728
      %749 = vst.msk [vmem:[#allocation3 + $0x14] sm:$0xf] %vm743, %v730
      %750 = vst.msk [vmem:[#allocation3 + $0x18] sm:$0xf] %vm743, %v732
      %751 = vst.msk [vmem:[#allocation3 + $0x1c] sm:$0xf] %vm743, %v734
      %v752 = vld [vmem:[%s421] sm:$0xf]
      %v753 = vld [vmem:[%s421 + $0x8] sm:$0xf]
      %v754 = vld [vmem:[%s421 + $0x10] sm:$0xf]
      %v755 = vld [vmem:[%s421 + $0x18] sm:$0xf]
      %v756 = vld [vmem:[%s421 + $0x20] sm:$0xf]
      %v757 = vld [vmem:[%s421 + $0x28] sm:$0xf]
      %v758 = vld [vmem:[%s421 + $0x30] sm:$0xf]
      %v759 = vld [vmem:[%s421 + $0x38] sm:$0xf]
      %768 = vrot.lane.b32.xlu0 %v752, 12
      %v769 = vpop.permute.xlu0 %768
      %770 = vrot.lane.b32.xlu0 %v753, 12
      %v771 = vpop.permute.xlu0 %770
      %772 = vrot.lane.b32.xlu0 %v754, 12
      %v773 = vpop.permute.xlu0 %772
      %774 = vrot.lane.b32.xlu0 %v755, 12
      %v775 = vpop.permute.xlu0 %774
      %776 = vrot.lane.b32.xlu0 %v756, 12
      %v777 = vpop.permute.xlu0 %776
      %778 = vrot.lane.b32.xlu0 %v757, 12
      %v779 = vpop.permute.xlu0 %778
      %780 = vrot.lane.b32.xlu0 %v758, 12
      %v781 = vpop.permute.xlu0 %780
      %782 = vrot.lane.b32.xlu0 %v759, 12
      %v783 = vpop.permute.xlu0 %782
      %vm792 = vcmask 126048
      %793 = vst.msk [vmem:[#allocation3] sm:$0xf] %vm792, %v769
      %794 = vst.msk [vmem:[#allocation3 + $0x4] sm:$0xf] %vm792, %v771
      %795 = vst.msk [vmem:[#allocation3 + $0x8] sm:$0xf] %vm792, %v773
      %796 = vst.msk [vmem:[#allocation3 + $0xc] sm:$0xf] %vm792, %v775
      %797 = vst.msk [vmem:[#allocation3 + $0x10] sm:$0xf] %vm792, %v777
      %798 = vst.msk [vmem:[#allocation3 + $0x14] sm:$0xf] %vm792, %v779
      %799 = vst.msk [vmem:[#allocation3 + $0x18] sm:$0xf] %vm792, %v781
      %800 = vst.msk [vmem:[#allocation3 + $0x1c] sm:$0xf] %vm792, %v783
      %v801 = vld [vmem:[%s421] sm:$0xf]
      %v802 = vld [vmem:[%s421 + $0x4] sm:$0x1]
      %v803 = vld [vmem:[%s421 + $0x8] sm:$0xf]
      %v804 = vld [vmem:[%s421 + $0xc] sm:$0x1]
      %v805 = vld [vmem:[%s421 + $0x10] sm:$0xf]
      %v806 = vld [vmem:[%s421 + $0x14] sm:$0x1]
      %v807 = vld [vmem:[%s421 + $0x18] sm:$0xf]
      %v808 = vld [vmem:[%s421 + $0x1c] sm:$0x1]
      %v809 = vld [vmem:[%s421 + $0x20] sm:$0xf]
      %v810 = vld [vmem:[%s421 + $0x24] sm:$0x1]
      %v811 = vld [vmem:[%s421 + $0x28] sm:$0xf]
      %v812 = vld [vmem:[%s421 + $0x2c] sm:$0x1]
      %v813 = vld [vmem:[%s421 + $0x30] sm:$0xf]
      %v814 = vld [vmem:[%s421 + $0x34] sm:$0x1]
      %v815 = vld [vmem:[%s421 + $0x38] sm:$0xf]
      %v816 = vld [vmem:[%s421 + $0x3c] sm:$0x1]
      %v818 = vshrl.u32 %v801, 16
      %v820 = vrot.slane %v818, 4
      %v821 = vshll.u32 %v801, 16
      %v823 = vrot.slane %v821, 5
      %v824 = vor.u32 %v820, %v823
      %v825 = vrot.slane %v824, 4
      %v827 = vshll.u32 %v802, 16
      %v829 = vrot.slane %v827, 5
      %v830 = vsel %vm506, %v825, %v829
      %v832 = vshrl.u32 %v803, 16
      %v834 = vrot.slane %v832, 4
      %v835 = vshll.u32 %v803, 16
      %v837 = vrot.slane %v835, 5
      %v838 = vor.u32 %v834, %v837
      %v839 = vrot.slane %v838, 4
      %v841 = vshll.u32 %v804, 16
      %v843 = vrot.slane %v841, 5
      %v844 = vsel %vm506, %v839, %v843
      %v846 = vshrl.u32 %v805, 16
      %v848 = vrot.slane %v846, 4
      %v849 = vshll.u32 %v805, 16
      %v851 = vrot.slane %v849, 5
      %v852 = vor.u32 %v848, %v851
      %v853 = vrot.slane %v852, 4
      %v855 = vshll.u32 %v806, 16
      %v857 = vrot.slane %v855, 5
      %v858 = vsel %vm506, %v853, %v857
      %v860 = vshrl.u32 %v807, 16
      %v862 = vrot.slane %v860, 4
      %v863 = vshll.u32 %v807, 16
      %v865 = vrot.slane %v863, 5
      %v866 = vor.u32 %v862, %v865
      %v867 = vrot.slane %v866, 4
      %v869 = vshll.u32 %v808, 16
      %v871 = vrot.slane %v869, 5
      %v872 = vsel %vm506, %v867, %v871
      %v874 = vshrl.u32 %v809, 16
      %v876 = vrot.slane %v874, 4
      %v877 = vshll.u32 %v809, 16
      %v879 = vrot.slane %v877, 5
      %v880 = vor.u32 %v876, %v879
      %v881 = vrot.slane %v880, 4
      %v883 = vshll.u32 %v810, 16
      %v885 = vrot.slane %v883, 5
      %v886 = vsel %vm506, %v881, %v885
      %v888 = vshrl.u32 %v811, 16
      %v890 = vrot.slane %v888, 4
      %v891 = vshll.u32 %v811, 16
      %v893 = vrot.slane %v891, 5
      %v894 = vor.u32 %v890, %v893
      %v895 = vrot.slane %v894, 4
      %v897 = vshll.u32 %v812, 16
      %v899 = vrot.slane %v897, 5
      %v900 = vsel %vm506, %v895, %v899
      %v902 = vshrl.u32 %v813, 16
      %v904 = vrot.slane %v902, 4
      %v905 = vshll.u32 %v813, 16
      %v907 = vrot.slane %v905, 5
      %v908 = vor.u32 %v904, %v907
      %v909 = vrot.slane %v908, 4
      %v911 = vshll.u32 %v814, 16
      %v913 = vrot.slane %v911, 5
      %v914 = vsel %vm506, %v909, %v913
      %v916 = vshrl.u32 %v815, 16
      %v918 = vrot.slane %v916, 4
      %v919 = vshll.u32 %v815, 16
      %v921 = vrot.slane %v919, 5
      %v922 = vor.u32 %v918, %v921
      %v923 = vrot.slane %v922, 4
      %v925 = vshll.u32 %v816, 16
      %v927 = vrot.slane %v925, 5
      %v928 = vsel %vm506, %v923, %v927
      %929 = vrot.lane.b32.xlu0 %v830, 16
      %v930 = vpop.permute.xlu0 %929
      %931 = vrot.lane.b32.xlu0 %v844, 16
      %v932 = vpop.permute.xlu0 %931
      %933 = vrot.lane.b32.xlu0 %v858, 16
      %v934 = vpop.permute.xlu0 %933
      %935 = vrot.lane.b32.xlu0 %v872, 16
      %v936 = vpop.permute.xlu0 %935
      %937 = vrot.lane.b32.xlu0 %v886, 16
      %v938 = vpop.permute.xlu0 %937
      %939 = vrot.lane.b32.xlu0 %v900, 16
      %v940 = vpop.permute.xlu0 %939
      %941 = vrot.lane.b32.xlu0 %v914, 16
      %v942 = vpop.permute.xlu0 %941
      %943 = vrot.lane.b32.xlu0 %v928, 16
      %v944 = vpop.permute.xlu0 %943
      %vm953 = vcmask 158848
      %954 = vst.msk [vmem:[#allocation3] sm:$0xf] %vm953, %v930
      %955 = vst.msk [vmem:[#allocation3 + $0x4] sm:$0xf] %vm953, %v932
      %956 = vst.msk [vmem:[#allocation3 + $0x8] sm:$0xf] %vm953, %v934
      %957 = vst.msk [vmem:[#allocation3 + $0xc] sm:$0xf] %vm953, %v936
      %958 = vst.msk [vmem:[#allocation3 + $0x10] sm:$0xf] %vm953, %v938
      %959 = vst.msk [vmem:[#allocation3 + $0x14] sm:$0xf] %vm953, %v940
      %960 = vst.msk [vmem:[#allocation3 + $0x18] sm:$0xf] %vm953, %v942
      %961 = vst.msk [vmem:[#allocation3 + $0x1c] sm:$0xf] %vm953, %v944
      %v962 = vld [vmem:[%s421] sm:$0xe]
      %v963 = vld [vmem:[%s421 + $0x4] sm:$0x1]
      %v964 = vld [vmem:[%s421 + $0x8] sm:$0xe]
      %v965 = vld [vmem:[%s421 + $0xc] sm:$0x1]
      %v966 = vld [vmem:[%s421 + $0x10] sm:$0xe]
      %v967 = vld [vmem:[%s421 + $0x14] sm:$0x1]
      %v968 = vld [vmem:[%s421 + $0x18] sm:$0xe]
      %v969 = vld [vmem:[%s421 + $0x1c] sm:$0x1]
      %v970 = vld [vmem:[%s421 + $0x20] sm:$0xe]
      %v971 = vld [vmem:[%s421 + $0x24] sm:$0x1]
      %v972 = vld [vmem:[%s421 + $0x28] sm:$0xe]
      %v973 = vld [vmem:[%s421 + $0x2c] sm:$0x1]
      %v974 = vld [vmem:[%s421 + $0x30] sm:$0xe]
      %v975 = vld [vmem:[%s421 + $0x34] sm:$0x1]
      %v976 = vld [vmem:[%s421 + $0x38] sm:$0xe]
      %v977 = vld [vmem:[%s421 + $0x3c] sm:$0x1]
      %v994 = vrot.slane %v962, 5
      %v995 = vrot.slane %v994, 4
      %v996 = vrot.slane %v963, 5
      %v997 = vsel %vm686, %v995, %v996
      %v998 = vrot.slane %v964, 5
      %v999 = vrot.slane %v998, 4
      %v1000 = vrot.slane %v965, 5
      %v1001 = vsel %vm686, %v999, %v1000
      %v1002 = vrot.slane %v966, 5
      %v1003 = vrot.slane %v1002, 4
      %v1004 = vrot.slane %v967, 5
      %v1005 = vsel %vm686, %v1003, %v1004
      %v1006 = vrot.slane %v968, 5
      %v1007 = vrot.slane %v1006, 4
      %v1008 = vrot.slane %v969, 5
      %v1009 = vsel %vm686, %v1007, %v1008
      %v1010 = vrot.slane %v970, 5
      %v1011 = vrot.slane %v1010, 4
      %v1012 = vrot.slane %v971, 5
      %v1013 = vsel %vm686, %v1011, %v1012
      %v1014 = vrot.slane %v972, 5
      %v1015 = vrot.slane %v1014, 4
      %v1016 = vrot.slane %v973, 5
      %v1017 = vsel %vm686, %v1015, %v1016
      %v1018 = vrot.slane %v974, 5
      %v1019 = vrot.slane %v1018, 4
      %v1020 = vrot.slane %v975, 5
      %v1021 = vsel %vm686, %v1019, %v1020
      %v1022 = vrot.slane %v976, 5
      %v1023 = vrot.slane %v1022, 4
      %v1024 = vrot.slane %v977, 5
      %v1025 = vsel %vm686, %v1023, %v1024
      %1026 = vrot.lane.b32.xlu0 %v997, 20
      %v1027 = vpop.permute.xlu0 %1026
      %1028 = vrot.lane.b32.xlu0 %v1001, 20
      %v1029 = vpop.permute.xlu0 %1028
      %1030 = vrot.lane.b32.xlu0 %v1005, 20
      %v1031 = vpop.permute.xlu0 %1030
      %1032 = vrot.lane.b32.xlu0 %v1009, 20
      %v1033 = vpop.permute.xlu0 %1032
      %1034 = vrot.lane.b32.xlu0 %v1013, 20
      %v1035 = vpop.permute.xlu0 %1034
      %1036 = vrot.lane.b32.xlu0 %v1017, 20
      %v1037 = vpop.permute.xlu0 %1036
      %1038 = vrot.lane.b32.xlu0 %v1021, 20
      %v1039 = vpop.permute.xlu0 %1038
      %1040 = vrot.lane.b32.xlu0 %v1025, 20
      %v1041 = vpop.permute.xlu0 %1040
      %vm1050 = vcmask 191648
      %1051 = vst.msk [vmem:[#allocation3] sm:$0xf] %vm1050, %v1027
      %1052 = vst.msk [vmem:[#allocation3 + $0x4] sm:$0xf] %vm1050, %v1029
      %1053 = vst.msk [vmem:[#allocation3 + $0x8] sm:$0xf] %vm1050, %v1031
      %1054 = vst.msk [vmem:[#allocation3 + $0xc] sm:$0xf] %vm1050, %v1033
      %1055 = vst.msk [vmem:[#allocation3 + $0x10] sm:$0xf] %vm1050, %v1035
      %1056 = vst.msk [vmem:[#allocation3 + $0x14] sm:$0xf] %vm1050, %v1037
      %1057 = vst.msk [vmem:[#allocation3 + $0x18] sm:$0xf] %vm1050, %v1039
      %1058 = vst.msk [vmem:[#allocation3 + $0x1c] sm:$0xf] %vm1050, %v1041
      %s1059 = scalar_lea.vmem [#allocation2], 16
      %v1060 = vld [vmem:[%s1059] sm:$0xf]
      %v1061 = vld [vmem:[%s1059 + $0x8] sm:$0xf]
      %v1062 = vld [vmem:[%s1059 + $0x10] sm:$0xf]
      %v1063 = vld [vmem:[%s1059 + $0x18] sm:$0xf]
      %v1064 = vld [vmem:[%s1059 + $0x20] sm:$0xf]
      %v1065 = vld [vmem:[%s1059 + $0x28] sm:$0xf]
      %v1066 = vld [vmem:[%s1059 + $0x30] sm:$0xf]
      %v1067 = vld [vmem:[%s1059 + $0x38] sm:$0xf]
      %1076 = vrot.lane.b32.xlu0 %v1060, 24
      %v1077 = vpop.permute.xlu0 %1076
      %1078 = vrot.lane.b32.xlu0 %v1061, 24
      %v1079 = vpop.permute.xlu0 %1078
      %1080 = vrot.lane.b32.xlu0 %v1062, 24
      %v1081 = vpop.permute.xlu0 %1080
      %1082 = vrot.lane.b32.xlu0 %v1063, 24
      %v1083 = vpop.permute.xlu0 %1082
      %1084 = vrot.lane.b32.xlu0 %v1064, 24
      %v1085 = vpop.permute.xlu0 %1084
      %1086 = vrot.lane.b32.xlu0 %v1065, 24
      %v1087 = vpop.permute.xlu0 %1086
      %1088 = vrot.lane.b32.xlu0 %v1066, 24
      %v1089 = vpop.permute.xlu0 %1088
      %1090 = vrot.lane.b32.xlu0 %v1067, 24
      %v1091 = vpop.permute.xlu0 %1090
      %vm1100 = vcmask 224448
      %1101 = vst.msk [vmem:[#allocation3] sm:$0xf] %vm1100, %v1077
      %1102 = vst.msk [vmem:[#allocation3 + $0x4] sm:$0xf] %vm1100, %v1079
      %1103 = vst.msk [vmem:[#allocation3 + $0x8] sm:$0xf] %vm1100, %v1081
      %1104 = vst.msk [vmem:[#allocation3 + $0xc] sm:$0xf] %vm1100, %v1083
      %1105 = vst.msk [vmem:[#allocation3 + $0x10] sm:$0xf] %vm1100, %v1085
      %1106 = vst.msk [vmem:[#allocation3 + $0x14] sm:$0xf] %vm1100, %v1087
      %1107 = vst.msk [vmem:[#allocation3 + $0x18] sm:$0xf] %vm1100, %v1089
      %1108 = vst.msk [vmem:[#allocation3 + $0x1c] sm:$0xf] %vm1100, %v1091
      %v1109 = vld [vmem:[%s1059] sm:$0xf]
      %v1110 = vld [vmem:[%s1059 + $0x4] sm:$0x1]
      %v1111 = vld [vmem:[%s1059 + $0x8] sm:$0xf]
      %v1112 = vld [vmem:[%s1059 + $0xc] sm:$0x1]
      %v1113 = vld [vmem:[%s1059 + $0x10] sm:$0xf]
      %v1114 = vld [vmem:[%s1059 + $0x14] sm:$0x1]
      %v1115 = vld [vmem:[%s1059 + $0x18] sm:$0xf]
      %v1116 = vld [vmem:[%s1059 + $0x1c] sm:$0x1]
      %v1117 = vld [vmem:[%s1059 + $0x20] sm:$0xf]
      %v1118 = vld [vmem:[%s1059 + $0x24] sm:$0x1]
      %v1119 = vld [vmem:[%s1059 + $0x28] sm:$0xf]
      %v1120 = vld [vmem:[%s1059 + $0x2c] sm:$0x1]
      %v1121 = vld [vmem:[%s1059 + $0x30] sm:$0xf]
      %v1122 = vld [vmem:[%s1059 + $0x34] sm:$0x1]
      %v1123 = vld [vmem:[%s1059 + $0x38] sm:$0xf]
      %v1124 = vld [vmem:[%s1059 + $0x3c] sm:$0x1]
      %v1126 = vshrl.u32 %v1109, 16
      %v1128 = vrot.slane %v1126, 4
      %v1129 = vshll.u32 %v1109, 16
      %v1131 = vrot.slane %v1129, 5
      %v1132 = vor.u32 %v1128, %v1131
      %v1133 = vrot.slane %v1132, 4
      %v1135 = vshll.u32 %v1110, 16
      %v1137 = vrot.slane %v1135, 5
      %v1138 = vsel %vm506, %v1133, %v1137
      %v1140 = vshrl.u32 %v1111, 16
      %v1142 = vrot.slane %v1140, 4
      %v1143 = vshll.u32 %v1111, 16
      %v1145 = vrot.slane %v1143, 5
      %v1146 = vor.u32 %v1142, %v1145
      %v1147 = vrot.slane %v1146, 4
      %v1149 = vshll.u32 %v1112, 16
      %v1151 = vrot.slane %v1149, 5
      %v1152 = vsel %vm506, %v1147, %v1151
      %v1154 = vshrl.u32 %v1113, 16
      %v1156 = vrot.slane %v1154, 4
      %v1157 = vshll.u32 %v1113, 16
      %v1159 = vrot.slane %v1157, 5
      %v1160 = vor.u32 %v1156, %v1159
      %v1161 = vrot.slane %v1160, 4
      %v1163 = vshll.u32 %v1114, 16
      %v1165 = vrot.slane %v1163, 5
      %v1166 = vsel %vm506, %v1161, %v1165
      %v1168 = vshrl.u32 %v1115, 16
      %v1170 = vrot.slane %v1168, 4
      %v1171 = vshll.u32 %v1115, 16
      %v1173 = vrot.slane %v1171, 5
      %v1174 = vor.u32 %v1170, %v1173
      %v1175 = vrot.slane %v1174, 4
      %v1177 = vshll.u32 %v1116, 16
      %v1179 = vrot.slane %v1177, 5
      %v1180 = vsel %vm506, %v1175, %v1179
      %v1182 = vshrl.u32 %v1117, 16
      %v1184 = vrot.slane %v1182, 4
      %v1185 = vshll.u32 %v1117, 16
      %v1187 = vrot.slane %v1185, 5
      %v1188 = vor.u32 %v1184, %v1187
      %v1189 = vrot.slane %v1188, 4
      %v1191 = vshll.u32 %v1118, 16
      %v1193 = vrot.slane %v1191, 5
      %v1194 = vsel %vm506, %v1189, %v1193
      %v1196 = vshrl.u32 %v1119, 16
      %v1198 = vrot.slane %v1196, 4
      %v1199 = vshll.u32 %v1119, 16
      %v1201 = vrot.slane %v1199, 5
      %v1202 = vor.u32 %v1198, %v1201
      %v1203 = vrot.slane %v1202, 4
      %v1205 = vshll.u32 %v1120, 16
      %v1207 = vrot.slane %v1205, 5
      %v1208 = vsel %vm506, %v1203, %v1207
      %v1210 = vshrl.u32 %v1121, 16
      %v1212 = vrot.slane %v1210, 4
      %v1213 = vshll.u32 %v1121, 16
      %v1215 = vrot.slane %v1213, 5
      %v1216 = vor.u32 %v1212, %v1215
      %v1217 = vrot.slane %v1216, 4
      %v1219 = vshll.u32 %v1122, 16
      %v1221 = vrot.slane %v1219, 5
      %v1222 = vsel %vm506, %v1217, %v1221
      %v1224 = vshrl.u32 %v1123, 16
      %v1226 = vrot.slane %v1224, 4
      %v1227 = vshll.u32 %v1123, 16
      %v1229 = vrot.slane %v1227, 5
      %v1230 = vor.u32 %v1226, %v1229
      %v1231 = vrot.slane %v1230, 4
      %v1233 = vshll.u32 %v1124, 16
      %v1235 = vrot.slane %v1233, 5
      %v1236 = vsel %vm506, %v1231, %v1235
      %1237 = vrot.lane.b32.xlu0 %v1138, 28
      %v1238 = vpop.permute.xlu0 %1237
      %1239 = vrot.lane.b32.xlu0 %v1152, 28
      %v1240 = vpop.permute.xlu0 %1239
      %1241 = vrot.lane.b32.xlu0 %v1166, 28
      %v1242 = vpop.permute.xlu0 %1241
      %1243 = vrot.lane.b32.xlu0 %v1180, 28
      %v1244 = vpop.permute.xlu0 %1243
      %1245 = vrot.lane.b32.xlu0 %v1194, 28
      %v1246 = vpop.permute.xlu0 %1245
      %1247 = vrot.lane.b32.xlu0 %v1208, 28
      %v1248 = vpop.permute.xlu0 %1247
      %1249 = vrot.lane.b32.xlu0 %v1222, 28
      %v1250 = vpop.permute.xlu0 %1249
      %1251 = vrot.lane.b32.xlu0 %v1236, 28
      %v1252 = vpop.permute.xlu0 %1251
      %vm1261 = vcmask 257248
      %1262 = vst.msk [vmem:[#allocation3] sm:$0xf] %vm1261, %v1238
      %1263 = vst.msk [vmem:[#allocation3 + $0x4] sm:$0xf] %vm1261, %v1240
      %1264 = vst.msk [vmem:[#allocation3 + $0x8] sm:$0xf] %vm1261, %v1242
      %1265 = vst.msk [vmem:[#allocation3 + $0xc] sm:$0xf] %vm1261, %v1244
      %1266 = vst.msk [vmem:[#allocation3 + $0x10] sm:$0xf] %vm1261, %v1246
      %1267 = vst.msk [vmem:[#allocation3 + $0x14] sm:$0xf] %vm1261, %v1248
      %1268 = vst.msk [vmem:[#allocation3 + $0x18] sm:$0xf] %vm1261, %v1250
      %1269 = vst.msk [vmem:[#allocation3 + $0x1c] sm:$0xf] %vm1261, %v1252
      %v1270 = vld [vmem:[%s1059] sm:$0xe]
      %v1271 = vld [vmem:[%s1059 + $0x4] sm:$0x1]
      %v1272 = vld [vmem:[%s1059 + $0x8] sm:$0xe]
      %v1273 = vld [vmem:[%s1059 + $0xc] sm:$0x1]
      %v1274 = vld [vmem:[%s1059 + $0x10] sm:$0xe]
      %v1275 = vld [vmem:[%s1059 + $0x14] sm:$0x1]
      %v1276 = vld [vmem:[%s1059 + $0x18] sm:$0xe]
      %v1277 = vld [vmem:[%s1059 + $0x1c] sm:$0x1]
      %v1278 = vld [vmem:[%s1059 + $0x20] sm:$0xe]
      %v1279 = vld [vmem:[%s1059 + $0x24] sm:$0x1]
      %v1280 = vld [vmem:[%s1059 + $0x28] sm:$0xe]
      %v1281 = vld [vmem:[%s1059 + $0x2c] sm:$0x1]
      %v1282 = vld [vmem:[%s1059 + $0x30] sm:$0xe]
      %v1283 = vld [vmem:[%s1059 + $0x34] sm:$0x1]
      %v1284 = vld [vmem:[%s1059 + $0x38] sm:$0xe]
      %v1285 = vld [vmem:[%s1059 + $0x3c] sm:$0x1]
      %v1302 = vrot.slane %v1270, 5
      %v1303 = vrot.slane %v1302, 4
      %v1304 = vrot.slane %v1271, 5
      %v1305 = vsel %vm686, %v1303, %v1304
      %v1306 = vrot.slane %v1272, 5
      %v1307 = vrot.slane %v1306, 4
      %v1308 = vrot.slane %v1273, 5
      %v1309 = vsel %vm686, %v1307, %v1308
      %v1310 = vrot.slane %v1274, 5
      %v1311 = vrot.slane %v1310, 4
      %v1312 = vrot.slane %v1275, 5
      %v1313 = vsel %vm686, %v1311, %v1312
      %v1314 = vrot.slane %v1276, 5
      %v1315 = vrot.slane %v1314, 4
      %v1316 = vrot.slane %v1277, 5
      %v1317 = vsel %vm686, %v1315, %v1316
      %v1318 = vrot.slane %v1278, 5
      %v1319 = vrot.slane %v1318, 4
      %v1320 = vrot.slane %v1279, 5
      %v1321 = vsel %vm686, %v1319, %v1320
      %v1322 = vrot.slane %v1280, 5
      %v1323 = vrot.slane %v1322, 4
      %v1324 = vrot.slane %v1281, 5
      %v1325 = vsel %vm686, %v1323, %v1324
      %v1326 = vrot.slane %v1282, 5
      %v1327 = vrot.slane %v1326, 4
      %v1328 = vrot.slane %v1283, 5
      %v1329 = vsel %vm686, %v1327, %v1328
      %v1330 = vrot.slane %v1284, 5
      %v1331 = vrot.slane %v1330, 4
      %v1332 = vrot.slane %v1285, 5
      %v1333 = vsel %vm686, %v1331, %v1332
      %1334 = vrot.lane.b32.xlu0 %v1305, 32
      %v1335 = vpop.permute.xlu0 %1334
      %1336 = vrot.lane.b32.xlu0 %v1309, 32
      %v1337 = vpop.permute.xlu0 %1336
      %1338 = vrot.lane.b32.xlu0 %v1313, 32
      %v1339 = vpop.permute.xlu0 %1338
      %1340 = vrot.lane.b32.xlu0 %v1317, 32
      %v1341 = vpop.permute.xlu0 %1340
      %1342 = vrot.lane.b32.xlu0 %v1321, 32
      %v1343 = vpop.permute.xlu0 %1342
      %1344 = vrot.lane.b32.xlu0 %v1325, 32
      %v1345 = vpop.permute.xlu0 %1344
      %1346 = vrot.lane.b32.xlu0 %v1329, 32
      %v1347 = vpop.permute.xlu0 %1346
      %1348 = vrot.lane.b32.xlu0 %v1333, 32
      %v1349 = vpop.permute.xlu0 %1348
      %vm1358 = vcmask 290048
      %1359 = vst.msk [vmem:[#allocation3] sm:$0xf] %vm1358, %v1335
      %1360 = vst.msk [vmem:[#allocation3 + $0x4] sm:$0xf] %vm1358, %v1337
      %1361 = vst.msk [vmem:[#allocation3 + $0x8] sm:$0xf] %vm1358, %v1339
      %1362 = vst.msk [vmem:[#allocation3 + $0xc] sm:$0xf] %vm1358, %v1341
      %1363 = vst.msk [vmem:[#allocation3 + $0x10] sm:$0xf] %vm1358, %v1343
      %1364 = vst.msk [vmem:[#allocation3 + $0x14] sm:$0xf] %vm1358, %v1345
      %1365 = vst.msk [vmem:[#allocation3 + $0x18] sm:$0xf] %vm1358, %v1347
      %1366 = vst.msk [vmem:[#allocation3 + $0x1c] sm:$0xf] %vm1358, %v1349
      %v1367 = vld [vmem:[#allocation3] sm:$0xf]
      %v1368 = vld [vmem:[#allocation3 + $0x4] sm:$0xf]
      %v1369 = vld [vmem:[#allocation3 + $0x8] sm:$0xf]
      %v1370 = vld [vmem:[#allocation3 + $0xc] sm:$0xf]
      %v1371 = vld [vmem:[#allocation3 + $0x10] sm:$0xf]
      %v1372 = vld [vmem:[#allocation3 + $0x14] sm:$0xf]
      %v1373 = vld [vmem:[#allocation3 + $0x18] sm:$0xf]
      %v1374 = vld [vmem:[#allocation3 + $0x1c] sm:$0xf]
      %v1375 = vld [vmem:[%s1] sm:$0xf]
      %v1376 = vld [vmem:[%s1 + $0x4] sm:$0xf]
      %v1377 = vld [vmem:[%s1 + $0x8] sm:$0xf]
      %v1378 = vld [vmem:[%s1 + $0xc] sm:$0xf]
      %v1379 = vld [vmem:[%s1 + $0x10] sm:$0x3]
      %v1388 = vunpack.c.l.b16 %v1367
      %v1389 = vunpack.c.l.b16 %v1368
      %v1390 = vunpack.c.l.b16 %v1369
      %v1391 = vunpack.c.l.b16 %v1370
      %v1392 = vunpack.c.l.b16 %v1371
      %v1393 = vunpack.c.l.b16 %v1372
      %v1394 = vunpack.c.l.b16 %v1373
      %v1395 = vunpack.c.l.b16 %v1374
      %v1396 = vpack.c.b16 %v1389, %v1388
      %v1397 = vpack.c.b16 %v1391, %v1390
      %v1398 = vpack.c.b16 %v1393, %v1392
      %v1399 = vpack.c.b16 %v1395, %v1394
      %v1405 = vunpack.c.l.b16 %v1375
      %v1406 = vunpack.c.l.b16 %v1376
      %v1407 = vunpack.c.l.b16 %v1377
      %v1408 = vunpack.c.l.b16 %v1378
      %v1409 = vunpack.c.l.b16 %v1379
      %v1410 = vpack.c.b16 %v1406, %v1405
      %v1411 = vpack.c.b16 %v1408, %v1407
      %v1412 = vpack.c.b16 %v1409, %v1409
      %vm1415 = vcmask 293888
      %v1417 = vsel %vm1415, %v1396, 0
      %v1420 = vsel %vm1415, %v1397, 0
      %v1423 = vsel %vm1415, %v1398, 0
      %v1426 = vsel %vm1415, %v1399, 0
      %vm1428 = vcmask 1041408
      %v1430 = vsel %vm1428, %v1412, 0
      %1432 = vmatprep.subr.bf16.mxu0 0
      %1433 = vmatpush1.bf16.msra.mxu0 0
      %1434 = vmatprep.subr.bf16.mxu0 0
      %1435 = vmatpush1.bf16.msra.mxu0 0
      %1436 = vmatprep.subr.bf16.mxu0 0
      %1437 = vmatpush1.bf16.msra.mxu0 0
      %1438 = vmatprep.subr.bf16.mxu0 0
      %1439 = vmatpush1.bf16.msra.mxu0 0
      %1440 = vmatprep.subr.bf16.mxu0 0
      %1441 = vmatpush1.bf16.msra.mxu0 0
      %1442 = vmatprep.subr.bf16.mxu0 0
      %1443 = vmatpush1.bf16.msra.mxu0 %v1430
      %1444 = vmatprep.subr.bf16.mxu0 0
      %1445 = vmatpush1.bf16.msra.mxu0 %v1411
      %1446 = vmatprep.subr.bf16.mxu0 0
      %1447 = vmatpush1.bf16.msra.mxu0 %v1410
      %1448 = vmatprep.subr.bf16.mxu0 0
      %1449 = vmatpush2.bf16.msra.mxu0 0
      %1450 = vmatprep.subr.bf16.mxu0 0
      %1451 = vmatpush2.bf16.msra.mxu0 0
      %1452 = vmatprep.subr.bf16.mxu0 0
      %1453 = vmatpush2.bf16.msra.mxu0 0
      %1454 = vmatprep.subr.bf16.mxu0 0
      %1455 = vmatpush2.bf16.msra.mxu0 0
      %1456 = vmatprep.subr.bf16.mxu0 0
      %1457 = vmatpush2.bf16.msra.mxu0 0
      %1458 = vmatprep.subr.bf16.mxu0 0
      %1459 = vmatpush2.bf16.msra.mxu0 0
      %1460 = vmatprep.subr.bf16.mxu0 0
      %1461 = vmatpush2.bf16.msra.mxu0 0
      %1462 = vmatprep.subr.bf16.mxu0 0
      %1463 = vmatpush2.bf16.msra.mxu0 0
      %1464 = vmatprep.mubr.bf16.mxu0 0
      %1465 = vmatmul.mubr.bf16.gmra.mxu0 %v1417
      %v1466 = vpop.f32.mrf.mxu0
      %v1467 = vadd.f32 0.0, %v1466
      %v1468 = vpop.f32.mrf.mxu0
      %v1469 = vpop.f32.mrf.mxu0
      %v1470 = vadd.f32 0.0, %v1469
      %v1471 = vpop.f32.mrf.mxu0
      %1472 = vmatprep.mubr.bf16.mxu0 0
      %1473 = vmatmul.mubr.bf16.gmra.mxu0 %v1420
      %v1474 = vpop.f32.mrf.mxu0
      %v1475 = vadd.f32 0.0, %v1474
      %v1476 = vpop.f32.mrf.mxu0
      %v1477 = vpop.f32.mrf.mxu0
      %v1478 = vadd.f32 0.0, %v1477
      %v1479 = vpop.f32.mrf.mxu0
      %1480 = vmatprep.mubr.bf16.mxu0 0
      %1481 = vmatmul.mubr.bf16.gmra.mxu0 %v1423
      %v1482 = vpop.f32.mrf.mxu0
      %v1483 = vadd.f32 0.0, %v1482
      %v1484 = vpop.f32.mrf.mxu0
      %v1485 = vpop.f32.mrf.mxu0
      %v1486 = vadd.f32 0.0, %v1485
      %v1487 = vpop.f32.mrf.mxu0
      %1488 = vmatprep.mubr.bf16.mxu0 0
      %1489 = vmatmul.mubr.bf16.gmra.mxu0 %v1426
      %v1490 = vpop.f32.mrf.mxu0
      %v1491 = vadd.f32 0.0, %v1490
      %v1492 = vpop.f32.mrf.mxu0
      %v1493 = vpop.f32.mrf.mxu0
      %v1494 = vadd.f32 0.0, %v1493
      %v1495 = vpop.f32.mrf.mxu0
      %1496 = vdwg.mxu0
      %vm1497 = vcmask 64512
      %v1498 = vsel %vm1497, %v1467, 0.0
      %v1499 = vsel %vm1497, %v1470, 0.0
      %v1500 = vadd.f32 %v1498, %v1499
      %v1501 = vsel %vm1497, %v1475, 0.0
      %v1502 = vadd.f32 %v1500, %v1501
      %v1503 = vsel %vm1497, %v1478, 0.0
      %v1504 = vadd.f32 %v1502, %v1503
      %v1505 = vsel %vm1497, %v1483, 0.0
      %v1506 = vadd.f32 %v1504, %v1505
      %v1507 = vsel %vm1497, %v1486, 0.0
      %v1508 = vadd.f32 %v1506, %v1507
      %v1509 = vsel %vm1497, %v1491, 0.0
      %v1510 = vadd.f32 %v1508, %v1509
      %v1511 = vsel %vm1497, %v1494, 0.0
      %v1512 = vadd.f32 %v1510, %v1511
      %v1513 = vrot.slane %v1512, 4
      %v1514 = vadd.f32 %v1512, %v1513
      %v1515 = vrot.slane %v1514, 2
      %v1516 = vadd.f32 %v1514, %v1515
      %v1517 = vrot.slane %v1516, 1
      %v1518 = vadd.f32 %v1516, %v1517
      %v1519 = vmul.f32 %v1518, 0.015625
      %v1520 = vsub.f32 %v1467, %v1519
      %v1521 = vsub.f32 %v1470, %v1519
      %v1522 = vsub.f32 %v1475, %v1519
      %v1523 = vsub.f32 %v1478, %v1519
      %v1524 = vsub.f32 %v1483, %v1519
      %v1525 = vsub.f32 %v1486, %v1519
      %v1526 = vsub.f32 %v1491, %v1519
      %v1527 = vsub.f32 %v1494, %v1519
      %vm1528 = vcmask 57344
      %1529 = vst.msk [vmem:[%s179] sm:$0x1] %vm1528, %v1518
      %v1530 = vmul.f32 %v1520, %v1520
      %v1531 = vmul.f32 %v1521, %v1521
      %v1532 = vmul.f32 %v1522, %v1522
      %v1533 = vmul.f32 %v1523, %v1523
      %v1534 = vmul.f32 %v1524, %v1524
      %v1535 = vmul.f32 %v1525, %v1525
      %v1536 = vmul.f32 %v1526, %v1526
      %v1537 = vmul.f32 %v1527, %v1527
      %v1538 = vsel %vm1497, %v1530, 0.0
      %v1539 = vsel %vm1497, %v1531, 0.0
      %v1540 = vadd.f32 %v1538, %v1539
      %v1541 = vsel %vm1497, %v1532, 0.0
      %v1542 = vadd.f32 %v1540, %v1541
      %v1543 = vsel %vm1497, %v1533, 0.0
      %v1544 = vadd.f32 %v1542, %v1543
      %v1545 = vsel %vm1497, %v1534, 0.0
      %v1546 = vadd.f32 %v1544, %v1545
      %v1547 = vsel %vm1497, %v1535, 0.0
      %v1548 = vadd.f32 %v1546, %v1547
      %v1549 = vsel %vm1497, %v1536, 0.0
      %v1550 = vadd.f32 %v1548, %v1549
      %v1551 = vsel %vm1497, %v1537, 0.0
      %v1552 = vadd.f32 %v1550, %v1551
      %v1553 = vrot.slane %v1552, 4
      %v1554 = vadd.f32 %v1552, %v1553
      %v1555 = vrot.slane %v1554, 2
      %v1556 = vadd.f32 %v1554, %v1555
      %v1557 = vrot.slane %v1556, 1
      %v1558 = vadd.f32 %v1556, %v1557
      %1559 = vst.msk [vmem:[%s179 + $0x1] sm:$0x1] %vm1528, %v1558
      %v1560 = vpack.c.bf16 %v1467, %v1467
      %v1561 = vpack.c.bf16 %v1470, %v1470
      %v1562 = vpack.c.bf16 %v1475, %v1475
      %v1563 = vpack.c.bf16 %v1478, %v1478
      %v1564 = vpack.c.bf16 %v1483, %v1483
      %v1565 = vpack.c.bf16 %v1486, %v1486
      %v1566 = vpack.c.bf16 %v1491, %v1491
      %v1567 = vpack.c.bf16 %v1494, %v1494
      %v1576 = vunpack.c.l.b16 %v1560
      %v1577 = vunpack.c.l.b16 %v1561
      %v1578 = vunpack.c.l.b16 %v1562
      %v1579 = vunpack.c.l.b16 %v1563
      %v1580 = vunpack.c.l.b16 %v1564
      %v1581 = vunpack.c.l.b16 %v1565
      %v1582 = vunpack.c.l.b16 %v1566
      %v1583 = vunpack.c.l.b16 %v1567
      %v1584 = vpack.c.b16 %v1576, %v1576
      %v1585 = vpack.c.b16 %v1577, %v1577
      %v1586 = vpack.c.b16 %v1578, %v1578
      %v1587 = vpack.c.b16 %v1579, %v1579
      %v1588 = vpack.c.b16 %v1580, %v1580
      %v1589 = vpack.c.b16 %v1581, %v1581
      %v1590 = vpack.c.b16 %v1582, %v1582
      %v1591 = vpack.c.b16 %v1583, %v1583
      %v1592 = vunpack.c.l.b16 %v1584
      %v1593 = vunpack.c.l.b16 %v1585
      %v1594 = vunpack.c.l.b16 %v1586
      %v1595 = vunpack.c.l.b16 %v1587
      %v1596 = vunpack.c.l.b16 %v1588
      %v1597 = vunpack.c.l.b16 %v1589
      %v1598 = vunpack.c.l.b16 %v1590
      %v1599 = vunpack.c.l.b16 %v1591
      %v1600 = vrot.slane %v1593, 7
      %vm1601 = vcmask 1041409
      %v1602 = vsel %vm1601, %v1600, %v1592
      %v1603 = vrot.slane %v1594, 6
      %vm1604 = vcmask 1042434
      %v1605 = vsel %vm1604, %v1603, %v1602
      %v1606 = vrot.slane %v1595, 5
      %vm1607 = vcmask 1043459
      %v1608 = vsel %vm1607, %v1606, %v1605
      %v1609 = vrot.slane %v1596, 4
      %vm1610 = vcmask 1044484
      %v1611 = vsel %vm1610, %v1609, %v1608
      %v1612 = vrot.slane %v1597, 3
      %vm1613 = vcmask 1045509
      %v1614 = vsel %vm1613, %v1612, %v1611
      %v1615 = vrot.slane %v1598, 2
      %vm1616 = vcmask 1046534
      %v1617 = vsel %vm1616, %v1615, %v1614
      %v1618 = vrot.slane %v1599, 1
      %vm1619 = vcmask 1047559
      %v1620 = vsel %vm1619, %v1618, %v1617
      %v1621 = vpack.c.b16 %v1620, %v1620
      %vm1623 = vcmask 60416
      %1624 = vst.msk [vmem:[%s175] sm:$0xf] %vm1623, %v1621
      %v1625 = vrot.slane %v1592, 1
      %v1626 = vsel %vm1601, %v1593, %v1625
      %v1627 = vrot.slane %v1594, 7
      %v1628 = vsel %vm1604, %v1627, %v1626
      %v1629 = vrot.slane %v1595, 6
      %v1630 = vsel %vm1607, %v1629, %v1628
      %v1631 = vrot.slane %v1596, 5
      %v1632 = vsel %vm1610, %v1631, %v1630
      %v1633 = vrot.slane %v1597, 4
      %v1634 = vsel %vm1613, %v1633, %v1632
      %v1635 = vrot.slane %v1598, 3
      %v1636 = vsel %vm1616, %v1635, %v1634
      %v1637 = vrot.slane %v1599, 2
      %v1638 = vsel %vm1619, %v1637, %v1636
      %v1639 = vpack.c.b16 %v1638, %v1638
      %1640 = vrot.lane.b32.xlu0 %v1639, 8
      %v1641 = vpop.permute.xlu0 %1640
      %vm1643 = vcmask 126016
      %1644 = vst.msk [vmem:[%s175] sm:$0xf] %vm1643, %v1641
      %v1645 = vrot.slane %v1592, 2
      %v1646 = vrot.slane %v1593, 1
      %v1647 = vsel %vm1601, %v1646, %v1645
      %v1648 = vsel %vm1604, %v1594, %v1647
      %v1649 = vrot.slane %v1595, 7
      %v1650 = vsel %vm1607, %v1649, %v1648
      %v1651 = vrot.slane %v1596, 6
      %v1652 = vsel %vm1610, %v1651, %v1650
      %v1653 = vrot.slane %v1597, 5
      %v1654 = vsel %vm1613, %v1653, %v1652
      %v1655 = vrot.slane %v1598, 4
      %v1656 = vsel %vm1616, %v1655, %v1654
      %v1657 = vrot.slane %v1599, 3
      %v1658 = vsel %vm1619, %v1657, %v1656
      %v1659 = vpack.c.b16 %v1658, %v1658
      %1660 = vrot.lane.b32.xlu0 %v1659, 16
      %v1661 = vpop.permute.xlu0 %1660
      %vm1663 = vcmask 191616
      %1664 = vst.msk [vmem:[%s175] sm:$0xf] %vm1663, %v1661
      %v1665 = vrot.slane %v1592, 3
      %v1666 = vrot.slane %v1593, 2
      %v1667 = vsel %vm1601, %v1666, %v1665
      %v1668 = vrot.slane %v1594, 1
      %v1669 = vsel %vm1604, %v1668, %v1667
      %v1670 = vsel %vm1607, %v1595, %v1669
      %v1671 = vrot.slane %v1596, 7
      %v1672 = vsel %vm1610, %v1671, %v1670
      %v1673 = vrot.slane %v1597, 6
      %v1674 = vsel %vm1613, %v1673, %v1672
      %v1675 = vrot.slane %v1598, 5
      %v1676 = vsel %vm1616, %v1675, %v1674
      %v1677 = vrot.slane %v1599, 4
      %v1678 = vsel %vm1619, %v1677, %v1676
      %v1679 = vpack.c.b16 %v1678, %v1678
      %1680 = vrot.lane.b32.xlu0 %v1679, 24
      %v1681 = vpop.permute.xlu0 %1680
      %vm1683 = vcmask 257216
      %1684 = vst.msk [vmem:[%s175] sm:$0xf] %vm1683, %v1681
      %v1685 = vrot.slane %v1592, 4
      %v1686 = vrot.slane %v1593, 3
      %v1687 = vsel %vm1601, %v1686, %v1685
      %v1688 = vrot.slane %v1594, 2
      %v1689 = vsel %vm1604, %v1688, %v1687
      %v1690 = vrot.slane %v1595, 1
      %v1691 = vsel %vm1607, %v1690, %v1689
      %v1692 = vsel %vm1610, %v1596, %v1691
      %v1693 = vrot.slane %v1597, 7
      %v1694 = vsel %vm1613, %v1693, %v1692
      %v1695 = vrot.slane %v1598, 6
      %v1696 = vsel %vm1616, %v1695, %v1694
      %v1697 = vrot.slane %v1599, 5
      %v1698 = vsel %vm1619, %v1697, %v1696
      %v1699 = vpack.c.b16 %v1698, %v1698
      %1700 = vrot.lane.b32.xlu0 %v1699, 32
      %v1701 = vpop.permute.xlu0 %1700
      %vm1703 = vcmask 322816
      %1704 = vst.msk [vmem:[%s175] sm:$0xf] %vm1703, %v1701
      %v1705 = vrot.slane %v1592, 5
      %v1706 = vrot.slane %v1593, 4
      %v1707 = vsel %vm1601, %v1706, %v1705
      %v1708 = vrot.slane %v1594, 3
      %v1709 = vsel %vm1604, %v1708, %v1707
      %v1710 = vrot.slane %v1595, 2
      %v1711 = vsel %vm1607, %v1710, %v1709
      %v1712 = vrot.slane %v1596, 1
      %v1713 = vsel %vm1610, %v1712, %v1711
      %v1714 = vsel %vm1613, %v1597, %v1713
      %v1715 = vrot.slane %v1598, 7
      %v1716 = vsel %vm1616, %v1715, %v1714
      %v1717 = vrot.slane %v1599, 6
      %v1718 = vsel %vm1619, %v1717, %v1716
      %v1719 = vpack.c.b16 %v1718, %v1718
      %1720 = vrot.lane.b32.xlu0 %v1719, 40
      %v1721 = vpop.permute.xlu0 %1720
      %vm1723 = vcmask 388416
      %1724 = vst.msk [vmem:[%s175] sm:$0xf] %vm1723, %v1721
      %v1725 = vrot.slane %v1592, 6
      %v1726 = vrot.slane %v1593, 5
      %v1727 = vsel %vm1601, %v1726, %v1725
      %v1728 = vrot.slane %v1594, 4
      %v1729 = vsel %vm1604, %v1728, %v1727
      %v1730 = vrot.slane %v1595, 3
      %v1731 = vsel %vm1607, %v1730, %v1729
      %v1732 = vrot.slane %v1596, 2
      %v1733 = vsel %vm1610, %v1732, %v1731
      %v1734 = vrot.slane %v1597, 1
      %v1735 = vsel %vm1613, %v1734, %v1733
      %v1736 = vsel %vm1616, %v1598, %v1735
      %v1737 = vrot.slane %v1599, 7
      %v1738 = vsel %vm1619, %v1737, %v1736
      %v1739 = vpack.c.b16 %v1738, %v1738
      %1740 = vrot.lane.b32.xlu0 %v1739, 48
      %v1741 = vpop.permute.xlu0 %1740
      %vm1743 = vcmask 454016
      %1744 = vst.msk [vmem:[%s175] sm:$0xf] %vm1743, %v1741
      %v1745 = vrot.slane %v1592, 7
      %v1746 = vrot.slane %v1593, 6
      %v1747 = vsel %vm1601, %v1746, %v1745
      %v1748 = vrot.slane %v1594, 5
      %v1749 = vsel %vm1604, %v1748, %v1747
      %v1750 = vrot.slane %v1595, 4
      %v1751 = vsel %vm1607, %v1750, %v1749
      %v1752 = vrot.slane %v1596, 3
      %v1753 = vsel %vm1610, %v1752, %v1751
      %v1754 = vrot.slane %v1597, 2
      %v1755 = vsel %vm1613, %v1754, %v1753
      %v1756 = vrot.slane %v1598, 1
      %v1757 = vsel %vm1616, %v1756, %v1755
      %v1758 = vsel %vm1619, %v1599, %v1757
      %v1759 = vpack.c.b16 %v1758, %v1758
      %1760 = vrot.lane.b32.xlu0 %v1759, 56
      %v1761 = vpop.permute.xlu0 %1760
      %vm1763 = vcmask 519616
      %1764 = vst.msk [vmem:[%s175] sm:$0xf] %vm1763, %v1761
      %p1765 = scmp.lt.s32.totalorder %s15, 1
      %s1766 = scalar_select %p1765, %s15, 1
      %s1767 = smul.addr %s1766, 4
      %s1768 = scalar_lea.vmem %s2, %s1767
      %p1769 = scmp.lt.s32.totalorder %s15, 1
      %s1770 = scalar_select %p1769, %s15, 1
      %s1771 = smul.addr %s1770, 2
      %s1772 = scalar_lea.vmem %s3, %s1771
      // Predicated region
      $region29: #{_lambda_.2} parent=27 // pred_check
        %p1773 = pneg %p80
      $region30: #{_lambda_.2} parent=27 // pred_check_branch
        %1775 = sbr.rel (%p1773) target = $region32
      $region31: #{_lambda_.2} parent=27 // pred_region
        _
      $region32: #{_lambda_.2} parent=27 // pred_fallthru
        _
      // Predicated region
      $region33: #{_lambda_.2} parent=27 // pred_check
        %p1776 = pneg %p106
      $region34: #{_lambda_.2} parent=27 // pred_check_branch
        %1778 = sbr.rel (%p1776) target = $region36
      $region35: #{_lambda_.2} parent=27 // pred_region
        _
      $region36: #{_lambda_.2} parent=27 // pred_fallthru
        _
    $region28: #{_lambda_.2} parent=5 // pred_fallthru
      _
    %p1779 = scmp.le.s32.totalorder 2, %s10
    // Predicated region
    $region37: #{_lambda_.2} parent=5 // pred_check
      %p1780 = pneg %p1779
    $region38: #{_lambda_.2} parent=5 // pred_check_branch
      %1782 = sbr.rel (%p1780) target = $region40
    $region39: #{_lambda_.2} parent=5 // pred_region
      %s1783 = ssub.s32 %s10, 2
      // Predicated region
      $region41: #{_lambda_.2} parent=39 // pred_check
        %p1784 = pneg %p86
      $region42: #{_lambda_.2} parent=39 // pred_check_branch
        %1786 = sbr.rel (%p1784) target = $region44
      $region43: #{_lambda_.2} parent=39 // pred_region
        %p1787 = scmp.lt.s32.totalorder %s16, 1
        %s1788 = scalar_select %p1787, %s16, 1
        %s1789 = smul.addr %s1788, 4
        %s1790 = scalar_lea.vmem %s2, %s1789
      $region44: #{_lambda_.2} parent=39 // pred_fallthru
        _
      // Predicated region
      $region45: #{_lambda_.2} parent=39 // pred_check
        %p1791 = pneg %p112
      $region46: #{_lambda_.2} parent=39 // pred_check_branch
        %1793 = sbr.rel (%p1791) target = $region48
      $region47: #{_lambda_.2} parent=39 // pred_region
        %p1794 = scmp.lt.s32.totalorder %s16, 1
        %s1795 = scalar_select %p1794, %s16, 1
        %s1796 = smul.addr %s1795, 2
        %s1797 = scalar_lea.vmem %s3, %s1796
      $region48: #{_lambda_.2} parent=39 // pred_fallthru
        _
    $region40: #{_lambda_.2} parent=5 // pred_fallthru
      _
  $region6: #{_lambda_.2} parent=0 // loop_footer
    %s14 = sadd.s32 1, %s10
  $region7: #{_lambda_.2} parent=0 // loop_footer_branch
    %9 = sbr.rel target = $region3
  $region8: #{_lambda_.2} parent=0 // loop_exit
    _

// kernel: _lambda_.3
$region0: #{_lambda_.3}
  #allocation0 [shape = 'u32[]', space=smem, size = 0x4, offset = 0x4, fixed_abs, tag = 'smem constant byte address 0x4 - core index']
  #allocation1 [shape = 'u32[144,128]{1,0:T(1,128)}', space=vmem, size = 0x12000, scoped, tag = 'internal scratch']
  #allocation2 [shape = 'bf16[10,10,8]{2,1,0:T(8,128)(2,1)}', space=vmem, size = 0xa000, scoped, tag = 'scratch operand']
  #allocation3 [shape = 'bf16[8,8,72]{2,1,0:T(8,128)(2,1)}', space=vmem, size = 0x4000, scoped, tag = 'scratch operand']
  %s0 = inlined_call_operand.vmem [shape: bf16[2,8,64], index: 0, kind: input, shape index: {}]
  %s1 = inlined_call_operand.vmem [shape: f32[1,64], index: 1, kind: input, shape index: {}]
  %s2 = inlined_call_operand.vmem [shape: f32[1,64], index: 2, kind: input, shape index: {}]
  %s3 = inlined_call_operand.vmem [shape: bf16[72,8], index: 3, kind: input, shape index: {}]
  %s4 = inlined_call_operand.vmem [shape: f32[2,8,64], index: 4, kind: output, shape index: {0}]
  %s5 = inlined_call_operand.vmem [shape: f32[2,2,8], index: 5, kind: output, shape index: {1}]
  %6 = xla_tuple %s4, %s5
  %s7 = sld [smem:[#allocation0]]
  $region57: #{_lambda_.3} parent=0
    _
  %s9 = ssub.s32 1, %s7
  %s10 = scalar_select 0, %s9, %s7
  loop: start=0, step=1, limit=4
  $region2: #{_lambda_.3} parent=0 // loop_pre_header
    _
  $region3: #{_lambda_.3} parent=0 // loop_header
    %s12 = sphi 0, %s16
    %p13 = scmp.ge.s32.totalorder %s12, 4
    %s22 = sphi 0, %s24
    %s25 = sphi 0, %s22
    %s26 = sphi 0, %s25
    %s42 = sphi 0, %s26
    %s46 = sphi 0, %s46
    %s48 = sphi 0, %s46
    %s49 = sphi 0, %s48
    %s63 = sphi 0, %s49
    %s67 = sphi 0, %s67
    %s69 = sphi 0, %s67
    %s70 = sphi 0, %s69
    %s84 = sphi 0, %s70
    %s88 = sphi 0, %s88
    %s90 = sphi 0, %s88
    %s91 = sphi 0, %s90
    %s105 = sphi 0, %s91
    %s111 = sphi 0, %s113
    %s114 = sphi 0, %s111
    %s115 = sphi 0, %s114
    %s131 = sphi 0, %s115
    %s137 = sphi 0, %s139
    %s140 = sphi 0, %s137
    %s141 = sphi 0, %s140
    %s157 = sphi 0, %s141
  $region4: #{_lambda_.3} parent=0 // loop_header_branch
    %15 = sbr.rel (%p13) target = $region8
  $region5: #{_lambda_.3} parent=0 // loop_body
    %s17 = ssub.s32 %s12, 1
    %s18 = ssub.s32 %s12, 2
    %s19 = sadd.s32 %s12, 1
    %s20 = ssub.s32 %s12, %s19
    %p21 = scmp.eq.s32.totalorder %s20, 0
    %s23 = sadd.s32 %s22, 1
    %s24 = scalar_select %p21, %s22, %s23
    %p27 = pneg %p21
    %p28 = scmp.eq.s32.totalorder %s12, 1
    %p29 = por %p27, %p28
    %p30 = scmp.ne.s32.totalorder %s22, %s25
    %p31 = scmp.eq.s32.totalorder %s12, 0
    %p32 = por %p30, %p31
    %p33 = scmp.ne.s32.totalorder %s22, %s25
    %p34 = scmp.eq.s32.totalorder %s17, 1
    %p35 = por %p33, %p34
    %p36 = scmp.ne.s32.totalorder %s25, %s26
    %p37 = scmp.eq.s32.totalorder %s17, 0
    %p38 = por %p36, %p37
    %p39 = scmp.ne.s32.totalorder %s25, %s26
    %p40 = scmp.eq.s32.totalorder %s18, 1
    %p41 = por %p39, %p40
    %p43 = scmp.ne.s32.totalorder %s26, %s42
    %p44 = scmp.eq.s32.totalorder %s18, 0
    %p45 = por %p43, %p44
    %s47 = sadd.s32 %s46, 1
    %p50 = scmp.eq.s32.totalorder %s12, 1
    %p51 = scmp.ne.s32.totalorder %s46, %s48
    %p52 = scmp.eq.s32.totalorder %s12, 0
    %p53 = por %p51, %p52
    %p54 = scmp.ne.s32.totalorder %s46, %s48
    %p55 = scmp.eq.s32.totalorder %s17, 1
    %p56 = por %p54, %p55
    %p57 = scmp.ne.s32.totalorder %s48, %s49
    %p58 = scmp.eq.s32.totalorder %s17, 0
    %p59 = por %p57, %p58
    %p60 = scmp.ne.s32.totalorder %s48, %s49
    %p61 = scmp.eq.s32.totalorder %s18, 1
    %p62 = por %p60, %p61
    %p64 = scmp.ne.s32.totalorder %s49, %s63
    %p65 = scmp.eq.s32.totalorder %s18, 0
    %p66 = por %p64, %p65
    %s68 = sadd.s32 %s67, 1
    %p71 = scmp.eq.s32.totalorder %s12, 1
    %p72 = scmp.ne.s32.totalorder %s67, %s69
    %p73 = scmp.eq.s32.totalorder %s12, 0
    %p74 = por %p72, %p73
    %p75 = scmp.ne.s32.totalorder %s67, %s69
    %p76 = scmp.eq.s32.totalorder %s17, 1
    %p77 = por %p75, %p76
    %p78 = scmp.ne.s32.totalorder %s69, %s70
    %p79 = scmp.eq.s32.totalorder %s17, 0
    %p80 = por %p78, %p79
    %p81 = scmp.ne.s32.totalorder %s69, %s70
    %p82 = scmp.eq.s32.totalorder %s18, 1
    %p83 = por %p81, %p82
    %p85 = scmp.ne.s32.totalorder %s70, %s84
    %p86 = scmp.eq.s32.totalorder %s18, 0
    %p87 = por %p85, %p86
    %s89 = sadd.s32 %s88, 1
    %p92 = scmp.eq.s32.totalorder %s12, 1
    %p93 = scmp.ne.s32.totalorder %s88, %s90
    %p94 = scmp.eq.s32.totalorder %s12, 0
    %p95 = por %p93, %p94
    %p96 = scmp.ne.s32.totalorder %s88, %s90
    %p97 = scmp.eq.s32.totalorder %s17, 1
    %p98 = por %p96, %p97
    %p99 = scmp.ne.s32.totalorder %s90, %s91
    %p100 = scmp.eq.s32.totalorder %s17, 0
    %p101 = por %p99, %p100
    %p102 = scmp.ne.s32.totalorder %s90, %s91
    %p103 = scmp.eq.s32.totalorder %s18, 1
    %p104 = por %p102, %p103
    %p106 = scmp.ne.s32.totalorder %s91, %s105
    %p107 = scmp.eq.s32.totalorder %s18, 0
    %p108 = por %p106, %p107
    %s109 = ssub.s32 %s12, %s19
    %p110 = scmp.eq.s32.totalorder %s109, 0
    %s112 = sadd.s32 %s111, 1
    %s113 = scalar_select %p110, %s111, %s112
    %p116 = pneg %p110
    %p117 = scmp.eq.s32.totalorder %s12, 1
    %p118 = por %p116, %p117
    %p119 = scmp.ne.s32.totalorder %s111, %s114
    %p120 = scmp.eq.s32.totalorder %s12, 0
    %p121 = por %p119, %p120
    %p122 = scmp.ne.s32.totalorder %s111, %s114
    %p123 = scmp.eq.s32.totalorder %s17, 1
    %p124 = por %p122, %p123
    %p125 = scmp.ne.s32.totalorder %s114, %s115
    %p126 = scmp.eq.s32.totalorder %s17, 0
    %p127 = por %p125, %p126
    %p128 = scmp.ne.s32.totalorder %s114, %s115
    %p129 = scmp.eq.s32.totalorder %s18, 1
    %p130 = por %p128, %p129
    %p132 = scmp.ne.s32.totalorder %s115, %s131
    %p133 = scmp.eq.s32.totalorder %s18, 0
    %p134 = por %p132, %p133
    %s135 = ssub.s32 %s12, %s19
    %p136 = scmp.eq.s32.totalorder %s135, 0
    %s138 = sadd.s32 %s137, 1
    %s139 = scalar_select %p136, %s137, %s138
    %p142 = pneg %p136
    %p143 = scmp.eq.s32.totalorder %s12, 1
    %p144 = por %p142, %p143
    %p145 = scmp.ne.s32.totalorder %s137, %s140
    %p146 = scmp.eq.s32.totalorder %s12, 0
    %p147 = por %p145, %p146
    %p148 = scmp.ne.s32.totalorder %s137, %s140
    %p149 = scmp.eq.s32.totalorder %s17, 1
    %p150 = por %p148, %p149
    %p151 = scmp.ne.s32.totalorder %s140, %s141
    %p152 = scmp.eq.s32.totalorder %s17, 0
    %p153 = por %p151, %p152
    %p154 = scmp.ne.s32.totalorder %s140, %s141
    %p155 = scmp.eq.s32.totalorder %s18, 1
    %p156 = por %p154, %p155
    %p158 = scmp.ne.s32.totalorder %s141, %s157
    %p159 = scmp.eq.s32.totalorder %s18, 0
    %p160 = por %p158, %p159
    %p161 = scmp.le.s32.totalorder 1, %s12
    %p162 = scmp.lt.s32.totalorder %s12, 3
    %p163 = pnand %p161, %p162
    %p164 = pneg %p163
    // Predicated region
    $region9: #{_lambda_.3} parent=5 // pred_check
      _
    $region10: #{_lambda_.3} parent=5 // pred_check_branch
      %166 = sbr.rel (%p163) target = $region12
    $region11: #{_lambda_.3} parent=5 // pred_region
      %s167 = ssub.s32 %s12, 1
      // Predicated region
      $region13: #{_lambda_.3} parent=11 // pred_check
        %p168 = pneg %p59
      $region14: #{_lambda_.3} parent=11 // pred_check_branch
        %170 = sbr.rel (%p168) target = $region16
      $region15: #{_lambda_.3} parent=11 // pred_region
        _
      $region16: #{_lambda_.3} parent=11 // pred_fallthru
        _
      // Predicated region
      $region17: #{_lambda_.3} parent=11 // pred_check
        %p171 = pneg %p80
      $region18: #{_lambda_.3} parent=11 // pred_check_branch
        %173 = sbr.rel (%p171) target = $region20
      $region19: #{_lambda_.3} parent=11 // pred_region
        _
      $region20: #{_lambda_.3} parent=11 // pred_fallthru
        _
      // Predicated region
      $region21: #{_lambda_.3} parent=11 // pred_check
        %p174 = pneg %p101
      $region22: #{_lambda_.3} parent=11 // pred_check_branch
        %176 = sbr.rel (%p174) target = $region24
      $region23: #{_lambda_.3} parent=11 // pred_region
        _
      $region24: #{_lambda_.3} parent=11 // pred_fallthru
        _
    $region12: #{_lambda_.3} parent=5 // pred_fallthru
      _
    %p177 = scmp.lt.s32.totalorder %s12, 2
    // Predicated region
    $region25: #{_lambda_.3} parent=5 // pred_check
      %p178 = pneg %p177
    $region26: #{_lambda_.3} parent=5 // pred_check_branch
      %180 = sbr.rel (%p178) target = $region28
    $region27: #{_lambda_.3} parent=5 // pred_region
      // Predicated region
      $region29: #{_lambda_.3} parent=27 // pred_check
        %p181 = pneg %p32
      $region30: #{_lambda_.3} parent=27 // pred_check_branch
        %183 = sbr.rel (%p181) target = $region32
      $region31: #{_lambda_.3} parent=27 // pred_region
        %p184 = scmp.lt.s32.totalorder %s12, 1
        %s185 = scalar_select %p184, %s12, 1
        %s186 = smul.addr %s185, 4
        %s187 = scalar_lea.vmem %s0, %s186
      $region32: #{_lambda_.3} parent=27 // pred_fallthru
        _
    $region28: #{_lambda_.3} parent=5 // pred_fallthru
      _
    %p188 = scmp.le.s32.totalorder 1, %s12
    %p189 = scmp.lt.s32.totalorder %s12, 3
    %p190 = pnand %p188, %p189
    %p191 = pneg %p190
    // Predicated region
    $region33: #{_lambda_.3} parent=5 // pred_check
      _
    $region34: #{_lambda_.3} parent=5 // pred_check_branch
      %193 = sbr.rel (%p190) target = $region36
    $region35: #{_lambda_.3} parent=5 // pred_region
      %s194 = ssub.s32 %s12, 1
      %p195 = scmp.lt.s32.totalorder %s17, 1
      %s196 = scalar_select %p195, %s17, 1
      %s197 = smul.addr %s196, 4
      %s198 = scalar_lea.vmem %s0, %s197
      %p199 = pneg %p38
      %p200 = pneg %p35
      %p201 = pneg %p59
      %p202 = pneg %p56
      %p203 = pneg %p80
      %p204 = pneg %p77
      %p205 = pneg %p101
      %p206 = pneg %p98
      %p207 = pneg %p127
      %p208 = pneg %p124
      %p209 = scmp.lt.s32.totalorder %s17, 1
      %s210 = scalar_select %p209, %s17, 1
      %s211 = smul.addr %s210, 8
      %s212 = scalar_lea.vmem %s4, %s211
      %p213 = pneg %p153
      %p214 = pneg %p150
      %p215 = scmp.lt.s32.totalorder %s17, 1
      %s216 = scalar_select %p215, %s17, 1
      %s217 = smul.addr %s216, 2
      %s218 = scalar_lea.vmem %s5, %s217
      %p219 = scmp.lt.s32.totalorder %s17, 1
      %s220 = scalar_select %p219, %s17, 1
      %s221 = smul.addr %s220, 4
      %s222 = scalar_lea.vmem %s0, %s221
      %p223 = scmp.lt.s32.totalorder %s17, 1
      %s224 = scalar_select %p223, %s17, 1
      %s225 = smul.addr %s224, 8
      %s226 = scalar_lea.vmem %s4, %s225
      %p227 = scmp.lt.s32.totalorder %s17, 1
      %s228 = scalar_select %p227, %s17, 1
      %s229 = smul.addr %s228, 2
      %s230 = scalar_lea.vmem %s5, %s229
      %v232 = vld [vmem:[%s222] sm:$0xf]
      %v233 = vunpack.c.l.bf16 %v232
      %v234 = vld [vmem:[%s1] sm:$0x1]
      %v236 = vlaneseq
      %v237 = vshrl.u32 %v236, 7
      %v238 = vsub.s32 0, %v237
      %v239 = vrot.slane %v234, %v238
      %v241 = vmul.f32 %v233, %v239
      %v242 = vld [vmem:[%s2] sm:$0x1]
      %v244 = vlaneseq
      %v245 = vshrl.u32 %v244, 7
      %v246 = vsub.s32 0, %v245
      %v247 = vrot.slane %v242, %v246
      %v249 = vadd.f32 %v241, %v247
      %v250 = vmax.f32 %v249, 0.0
      %v251 = vpack.c.bf16 %v250, %v250
      %vm252 = vcmask 60416
      %253 = vst.msk [vmem:[#allocation2] sm:$0xf] %vm252, 0
      %vm254 = vcmask 57344
      %255 = vst.msk [vmem:[#allocation2 + $0x4] sm:$0x1] %vm254, 0
      %s256 = scalar_lea.vmem [#allocation2], 72
      %257 = vst.msk [vmem:[%s256] sm:$0xf] %vm252, 0
      %258 = vst.msk [vmem:[%s256 + $0x4] sm:$0x1] %vm254, 0
      %vm259 = vcmask 57344
      %vm260 = vsmask.f32 256
      %vm261 = vmand %vm259, %vm260
      %v262 = vld [vmem:[#allocation2] sm:$0x1]
      %v263 = vsel %vm261, 0, %v262
      %264 = vst [vmem:[#allocation2] sm:$0x1] %v263
      %v265 = vld [vmem:[#allocation2 + $0x8] sm:$0x1]
      %v266 = vsel %vm261, 0, %v265
      %267 = vst [vmem:[#allocation2 + $0x8] sm:$0x1] %v266
      %v268 = vld [vmem:[#allocation2 + $0x10] sm:$0x1]
      %v269 = vsel %vm261, 0, %v268
      %270 = vst [vmem:[#allocation2 + $0x10] sm:$0x1] %v269
      %v271 = vld [vmem:[#allocation2 + $0x18] sm:$0x1]
      %v272 = vsel %vm261, 0, %v271
      %273 = vst [vmem:[#allocation2 + $0x18] sm:$0x1] %v272
      %v274 = vld [vmem:[#allocation2 + $0x20] sm:$0x1]
      %v275 = vsel %vm261, 0, %v274
      %276 = vst [vmem:[#allocation2 + $0x20] sm:$0x1] %v275
      %v277 = vld [vmem:[#allocation2 + $0x28] sm:$0x1]
      %v278 = vsel %vm261, 0, %v277
      %279 = vst [vmem:[#allocation2 + $0x28] sm:$0x1] %v278
      %v280 = vld [vmem:[#allocation2 + $0x30] sm:$0x1]
      %v281 = vsel %vm261, 0, %v280
      %282 = vst [vmem:[#allocation2 + $0x30] sm:$0x1] %v281
      %v283 = vld [vmem:[#allocation2 + $0x38] sm:$0x1]
      %v284 = vsel %vm261, 0, %v283
      %285 = vst [vmem:[#allocation2 + $0x38] sm:$0x1] %v284
      %v286 = vld [vmem:[#allocation2 + $0x40] sm:$0x1]
      %v287 = vsel %vm261, 0, %v286
      %288 = vst [vmem:[#allocation2 + $0x40] sm:$0x1] %v287
      %v289 = vld [vmem:[#allocation2 + $0x48] sm:$0x1]
      %v290 = vsel %vm261, 0, %v289
      %291 = vst [vmem:[#allocation2 + $0x48] sm:$0x1] %v290
      %vm292 = vsmask.f32 7938
      %vm293 = vmand %vm259, %vm292
      %v294 = vld [vmem:[#allocation2 + $0x4] sm:$0x1]
      %v295 = vsel %vm293, 0, %v294
      %296 = vst [vmem:[#allocation2 + $0x4] sm:$0x1] %v295
      %v297 = vld [vmem:[#allocation2 + $0xc] sm:$0x1]
      %v298 = vsel %vm293, 0, %v297
      %299 = vst [vmem:[#allocation2 + $0xc] sm:$0x1] %v298
      %v300 = vld [vmem:[#allocation2 + $0x14] sm:$0x1]
      %v301 = vsel %vm293, 0, %v300
      %302 = vst [vmem:[#allocation2 + $0x14] sm:$0x1] %v301
      %v303 = vld [vmem:[#allocation2 + $0x1c] sm:$0x1]
      %v304 = vsel %vm293, 0, %v303
      %305 = vst [vmem:[#allocation2 + $0x1c] sm:$0x1] %v304
      %v306 = vld [vmem:[#allocation2 + $0x24] sm:$0x1]
      %v307 = vsel %vm293, 0, %v306
      %308 = vst [vmem:[#allocation2 + $0x24] sm:$0x1] %v307
      %v309 = vld [vmem:[#allocation2 + $0x2c] sm:$0x1]
      %v310 = vsel %vm293, 0, %v309
      %311 = vst [vmem:[#allocation2 + $0x2c] sm:$0x1] %v310
      %v312 = vld [vmem:[#allocation2 + $0x34] sm:$0x1]
      %v313 = vsel %vm293, 0, %v312
      %314 = vst [vmem:[#allocation2 + $0x34] sm:$0x1] %v313
      %v315 = vld [vmem:[#allocation2 + $0x3c] sm:$0x1]
      %v316 = vsel %vm293, 0, %v315
      %317 = vst [vmem:[#allocation2 + $0x3c] sm:$0x1] %v316
      %v318 = vld [vmem:[#allocation2 + $0x44] sm:$0x1]
      %v319 = vsel %vm293, 0, %v318
      %320 = vst [vmem:[#allocation2 + $0x44] sm:$0x1] %v319
      %v321 = vld [vmem:[#allocation2 + $0x4c] sm:$0x1]
      %v322 = vsel %vm293, 0, %v321
      %323 = vst [vmem:[#allocation2 + $0x4c] sm:$0x1] %v322
      %v326 = vunpack.c.l.s4 1966171168
      %v327 = vunpack.c.0.s8 %v326
      %v328 = vlaneseq
      %v329 = vshrl.u32 %v328, 7
      %v330 = vsub.s32 %v327, %v329
      %v331 = vrot.slane %v251, %v330
      %v332 = vcombine.high %v331, %v331
      %v334 = vunpack.c.l.s4 1966171168
      %v335 = vunpack.c.0.s8 %v334
      %v336 = vlaneseq
      %v337 = vshrl.u32 %v336, 7
      %v338 = vsub.s32 %v335, %v337
      %v339 = vrot.slane %v331, %v338
      %v341 = vunpack.c.l.s4 1966171168
      %v342 = vunpack.c.0.s8 %v341
      %v343 = vlaneseq
      %v344 = vshrl.u32 %v343, 7
      %v345 = vsub.s32 %v342, %v344
      %v346 = vrot.slane %v332, %v345
      %v347 = vcombine.high %v339, %v339
      %v348 = vcombine.high %v346, %v346
      %v349 = vunpack.i.l.s16 %v339
      %v350 = vunpack.i.h.s16 %v339
      %v351 = vunpack.i.l.s16 %v346
      %v352 = vunpack.i.h.s16 %v346
      %v353 = vunpack.i.l.s16 %v347
      %v354 = vunpack.i.h.s16 %v347
      %v355 = vunpack.i.l.s16 %v348
      %v356 = vunpack.i.h.s16 %v348
      %v357 = vpack.i.b16 %v349, %v349
      %v358 = vpack.i.b16 %v350, %v350
      %v359 = vpack.i.b16 %v351, %v351
      %v360 = vpack.i.b16 %v352, %v352
      %v361 = vpack.i.b16 %v353, %v353
      %v362 = vpack.i.b16 %v354, %v354
      %v363 = vpack.i.b16 %v355, %v355
      %v364 = vpack.i.b16 %v356, %v356
      %v366 = vunpack.c.l.s4 286326784
      %v367 = vunpack.c.0.s8 %v366
      %v368 = vlaneseq
      %v369 = vshrl.u32 %v368, 7
      %v370 = vsub.s32 %v367, %v369
      %v371 = vrot.slane %v357, %v370
      %v373 = vunpack.c.l.s4 286326784
      %v374 = vunpack.c.0.s8 %v373
      %v375 = vlaneseq
      %v376 = vshrl.u32 %v375, 7
      %v377 = vsub.s32 %v374, %v376
      %v378 = vrot.slane %v358, %v377
      %v380 = vunpack.c.l.s4 286326784
      %v381 = vunpack.c.0.s8 %v380
      %v382 = vlaneseq
      %v383 = vshrl.u32 %v382, 7
      %v384 = vsub.s32 %v381, %v383
      %v385 = vrot.slane %v359, %v384
      %v387 = vunpack.c.l.s4 286326784
      %v388 = vunpack.c.0.s8 %v387
      %v389 = vlaneseq
      %v390 = vshrl.u32 %v389, 7
      %v391 = vsub.s32 %v388, %v390
      %v392 = vrot.slane %v360, %v391
      %v394 = vunpack.c.l.s4 286326784
      %v395 = vunpack.c.0.s8 %v394
      %v396 = vlaneseq
      %v397 = vshrl.u32 %v396, 7
      %v398 = vsub.s32 %v395, %v397
      %v399 = vrot.slane %v361, %v398
      %v401 = vunpack.c.l.s4 286326784
      %v402 = vunpack.c.0.s8 %v401
      %v403 = vlaneseq
      %v404 = vshrl.u32 %v403, 7
      %v405 = vsub.s32 %v402, %v404
      %v406 = vrot.slane %v362, %v405
      %v408 = vunpack.c.l.s4 286326784
      %v409 = vunpack.c.0.s8 %v408
      %v410 = vlaneseq
      %v411 = vshrl.u32 %v410, 7
      %v412 = vsub.s32 %v409, %v411
      %v413 = vrot.slane %v363, %v412
      %v415 = vunpack.c.l.s4 286326784
      %v416 = vunpack.c.0.s8 %v415
      %v417 = vlaneseq
      %v418 = vshrl.u32 %v417, 7
      %v419 = vsub.s32 %v416, %v418
      %v420 = vrot.slane %v364, %v419
      %s429 = scalar_lea.vmem [#allocation2], 8
      %v430 = vld [vmem:[%s429] sm:$0x1]
      %v431 = vsel %vm293, %v371, %v430
      %432 = vst [vmem:[%s429] sm:$0x1] %v431
      %v433 = vld [vmem:[%s429 + $0x8] sm:$0x1]
      %v434 = vsel %vm293, %v378, %v433
      %435 = vst [vmem:[%s429 + $0x8] sm:$0x1] %v434
      %v436 = vld [vmem:[%s429 + $0x10] sm:$0x1]
      %v437 = vsel %vm293, %v385, %v436
      %438 = vst [vmem:[%s429 + $0x10] sm:$0x1] %v437
      %v439 = vld [vmem:[%s429 + $0x18] sm:$0x1]
      %v440 = vsel %vm293, %v392, %v439
      %441 = vst [vmem:[%s429 + $0x18] sm:$0x1] %v440
      %v442 = vld [vmem:[%s429 + $0x20] sm:$0x1]
      %v443 = vsel %vm293, %v399, %v442
      %444 = vst [vmem:[%s429 + $0x20] sm:$0x1] %v443
      %v445 = vld [vmem:[%s429 + $0x28] sm:$0x1]
      %v446 = vsel %vm293, %v406, %v445
      %447 = vst [vmem:[%s429 + $0x28] sm:$0x1] %v446
      %v448 = vld [vmem:[%s429 + $0x30] sm:$0x1]
      %v449 = vsel %vm293, %v413, %v448
      %450 = vst [vmem:[%s429 + $0x30] sm:$0x1] %v449
      %v451 = vld [vmem:[%s429 + $0x38] sm:$0x1]
      %v452 = vsel %vm293, %v420, %v451
      %453 = vst [vmem:[%s429 + $0x38] sm:$0x1] %v452
      %454 = vrot.lane.b32.xlu0 %v371, 120
      %v455 = vpop.permute.xlu0 %454
      %456 = vrot.lane.b32.xlu0 %v378, 120
      %v457 = vpop.permute.xlu0 %456
      %458 = vrot.lane.b32.xlu0 %v385, 120
      %v459 = vpop.permute.xlu0 %458
      %460 = vrot.lane.b32.xlu0 %v392, 120
      %v461 = vpop.permute.xlu0 %460
      %462 = vrot.lane.b32.xlu0 %v399, 120
      %v463 = vpop.permute.xlu0 %462
      %464 = vrot.lane.b32.xlu0 %v406, 120
      %v465 = vpop.permute.xlu0 %464
      %466 = vrot.lane.b32.xlu0 %v413, 120
      %v467 = vpop.permute.xlu0 %466
      %468 = vrot.lane.b32.xlu0 %v420, 120
      %v469 = vpop.permute.xlu0 %468
      %vm478 = vcmask 58369
      %vm479 = vsmask.f32 1280
      %vm480 = vmand %vm478, %vm479
      %v481 = vld [vmem:[%s429] sm:$0x2]
      %v482 = vsel %vm480, %v455, %v481
      %483 = vst [vmem:[%s429] sm:$0x2] %v482
      %v484 = vld [vmem:[%s429 + $0x8] sm:$0x2]
      %v485 = vsel %vm480, %v457, %v484
      %486 = vst [vmem:[%s429 + $0x8] sm:$0x2] %v485
      %v487 = vld [vmem:[%s429 + $0x10] sm:$0x2]
      %v488 = vsel %vm480, %v459, %v487
      %489 = vst [vmem:[%s429 + $0x10] sm:$0x2] %v488
      %v490 = vld [vmem:[%s429 + $0x18] sm:$0x2]
      %v491 = vsel %vm480, %v461, %v490
      %492 = vst [vmem:[%s429 + $0x18] sm:$0x2] %v491
      %v493 = vld [vmem:[%s429 + $0x20] sm:$0x2]
      %v494 = vsel %vm480, %v463, %v493
      %495 = vst [vmem:[%s429 + $0x20] sm:$0x2] %v494
      %v496 = vld [vmem:[%s429 + $0x28] sm:$0x2]
      %v497 = vsel %vm480, %v465, %v496
      %498 = vst [vmem:[%s429 + $0x28] sm:$0x2] %v497
      %v499 = vld [vmem:[%s429 + $0x30] sm:$0x2]
      %v500 = vsel %vm480, %v467, %v499
      %501 = vst [vmem:[%s429 + $0x30] sm:$0x2] %v500
      %v502 = vld [vmem:[%s429 + $0x38] sm:$0x2]
      %v503 = vsel %vm480, %v469, %v502
      %504 = vst [vmem:[%s429 + $0x38] sm:$0x2] %v503
      %505 = vrot.lane.b32.xlu0 %v371, 112
      %v506 = vpop.permute.xlu0 %505
      %507 = vrot.lane.b32.xlu0 %v378, 112
      %v508 = vpop.permute.xlu0 %507
      %509 = vrot.lane.b32.xlu0 %v385, 112
      %v510 = vpop.permute.xlu0 %509
      %511 = vrot.lane.b32.xlu0 %v392, 112
      %v512 = vpop.permute.xlu0 %511
      %513 = vrot.lane.b32.xlu0 %v399, 112
      %v514 = vpop.permute.xlu0 %513
      %515 = vrot.lane.b32.xlu0 %v406, 112
      %v516 = vpop.permute.xlu0 %515
      %517 = vrot.lane.b32.xlu0 %v413, 112
      %v518 = vpop.permute.xlu0 %517
      %519 = vrot.lane.b32.xlu0 %v420, 112
      %v520 = vpop.permute.xlu0 %519
      %vm529 = vsmask.f32 7942
      %vm530 = vmand %vm478, %vm529
      %v531 = vld [vmem:[%s429] sm:$0x2]
      %v532 = vsel %vm530, %v506, %v531
      %533 = vst [vmem:[%s429] sm:$0x2] %v532
      %v534 = vld [vmem:[%s429 + $0x8] sm:$0x2]
      %v535 = vsel %vm530, %v508, %v534
      %536 = vst [vmem:[%s429 + $0x8] sm:$0x2] %v535
      %v537 = vld [vmem:[%s429 + $0x10] sm:$0x2]
      %v538 = vsel %vm530, %v510, %v537
      %539 = vst [vmem:[%s429 + $0x10] sm:$0x2] %v538
      %v540 = vld [vmem:[%s429 + $0x18] sm:$0x2]
      %v541 = vsel %vm530, %v512, %v540
      %542 = vst [vmem:[%s429 + $0x18] sm:$0x2] %v541
      %v543 = vld [vmem:[%s429 + $0x20] sm:$0x2]
      %v544 = vsel %vm530, %v514, %v543
      %545 = vst [vmem:[%s429 + $0x20] sm:$0x2] %v544
      %v546 = vld [vmem:[%s429 + $0x28] sm:$0x2]
      %v547 = vsel %vm530, %v516, %v546
      %548 = vst [vmem:[%s429 + $0x28] sm:$0x2] %v547
      %v549 = vld [vmem:[%s429 + $0x30] sm:$0x2]
      %v550 = vsel %vm530, %v518, %v549
      %551 = vst [vmem:[%s429 + $0x30] sm:$0x2] %v550
      %v552 = vld [vmem:[%s429 + $0x38] sm:$0x2]
      %v553 = vsel %vm530, %v520, %v552
      %554 = vst [vmem:[%s429 + $0x38] sm:$0x2] %v553
      %555 = vrot.lane.b32.xlu0 %v371, 104
      %v556 = vpop.permute.xlu0 %555
      %557 = vrot.lane.b32.xlu0 %v378, 104
      %v558 = vpop.permute.xlu0 %557
      %559 = vrot.lane.b32.xlu0 %v385, 104
      %v560 = vpop.permute.xlu0 %559
      %561 = vrot.lane.b32.xlu0 %v392, 104
      %v562 = vpop.permute.xlu0 %561
      %563 = vrot.lane.b32.xlu0 %v399, 104
      %v564 = vpop.permute.xlu0 %563
      %565 = vrot.lane.b32.xlu0 %v406, 104
      %v566 = vpop.permute.xlu0 %565
      %567 = vrot.lane.b32.xlu0 %v413, 104
      %v568 = vpop.permute.xlu0 %567
      %569 = vrot.lane.b32.xlu0 %v420, 104
      %v570 = vpop.permute.xlu0 %569
      %vm579 = vcmask 59394
      %vm580 = vsmask.f32 2304
      %vm581 = vmand %vm579, %vm580
      %v582 = vld [vmem:[%s429] sm:$0x4]
      %v583 = vsel %vm581, %v556, %v582
      %584 = vst [vmem:[%s429] sm:$0x4] %v583
      %v585 = vld [vmem:[%s429 + $0x8] sm:$0x4]
      %v586 = vsel %vm581, %v558, %v585
      %587 = vst [vmem:[%s429 + $0x8] sm:$0x4] %v586
      %v588 = vld [vmem:[%s429 + $0x10] sm:$0x4]
      %v589 = vsel %vm581, %v560, %v588
      %590 = vst [vmem:[%s429 + $0x10] sm:$0x4] %v589
      %v591 = vld [vmem:[%s429 + $0x18] sm:$0x4]
      %v592 = vsel %vm581, %v562, %v591
      %593 = vst [vmem:[%s429 + $0x18] sm:$0x4] %v592
      %v594 = vld [vmem:[%s429 + $0x20] sm:$0x4]
      %v595 = vsel %vm581, %v564, %v594
      %596 = vst [vmem:[%s429 + $0x20] sm:$0x4] %v595
      %v597 = vld [vmem:[%s429 + $0x28] sm:$0x4]
      %v598 = vsel %vm581, %v566, %v597
      %599 = vst [vmem:[%s429 + $0x28] sm:$0x4] %v598
      %v600 = vld [vmem:[%s429 + $0x30] sm:$0x4]
      %v601 = vsel %vm581, %v568, %v600
      %602 = vst [vmem:[%s429 + $0x30] sm:$0x4] %v601
      %v603 = vld [vmem:[%s429 + $0x38] sm:$0x4]
      %v604 = vsel %vm581, %v570, %v603
      %605 = vst [vmem:[%s429 + $0x38] sm:$0x4] %v604
      %606 = vrot.lane.b32.xlu0 %v371, 96
      %v607 = vpop.permute.xlu0 %606
      %608 = vrot.lane.b32.xlu0 %v378, 96
      %v609 = vpop.permute.xlu0 %608
      %610 = vrot.lane.b32.xlu0 %v385, 96
      %v611 = vpop.permute.xlu0 %610
      %612 = vrot.lane.b32.xlu0 %v392, 96
      %v613 = vpop.permute.xlu0 %612
      %614 = vrot.lane.b32.xlu0 %v399, 96
      %v615 = vpop.permute.xlu0 %614
      %616 = vrot.lane.b32.xlu0 %v406, 96
      %v617 = vpop.permute.xlu0 %616
      %618 = vrot.lane.b32.xlu0 %v413, 96
      %v619 = vpop.permute.xlu0 %618
      %620 = vrot.lane.b32.xlu0 %v420, 96
      %v621 = vpop.permute.xlu0 %620
      %vm630 = vsmask.f32 7946
      %vm631 = vmand %vm579, %vm630
      %v632 = vld [vmem:[%s429] sm:$0x4]
      %v633 = vsel %vm631, %v607, %v632
      %634 = vst [vmem:[%s429] sm:$0x4] %v633
      %v635 = vld [vmem:[%s429 + $0x8] sm:$0x4]
      %v636 = vsel %vm631, %v609, %v635
      %637 = vst [vmem:[%s429 + $0x8] sm:$0x4] %v636
      %v638 = vld [vmem:[%s429 + $0x10] sm:$0x4]
      %v639 = vsel %vm631, %v611, %v638
      %640 = vst [vmem:[%s429 + $0x10] sm:$0x4] %v639
      %v641 = vld [vmem:[%s429 + $0x18] sm:$0x4]
      %v642 = vsel %vm631, %v613, %v641
      %643 = vst [vmem:[%s429 + $0x18] sm:$0x4] %v642
      %v644 = vld [vmem:[%s429 + $0x20] sm:$0x4]
      %v645 = vsel %vm631, %v615, %v644
      %646 = vst [vmem:[%s429 + $0x20] sm:$0x4] %v645
      %v647 = vld [vmem:[%s429 + $0x28] sm:$0x4]
      %v648 = vsel %vm631, %v617, %v647
      %649 = vst [vmem:[%s429 + $0x28] sm:$0x4] %v648
      %v650 = vld [vmem:[%s429 + $0x30] sm:$0x4]
      %v651 = vsel %vm631, %v619, %v650
      %652 = vst [vmem:[%s429 + $0x30] sm:$0x4] %v651
      %v653 = vld [vmem:[%s429 + $0x38] sm:$0x4]
      %v654 = vsel %vm631, %v621, %v653
      %655 = vst [vmem:[%s429 + $0x38] sm:$0x4] %v654
      %656 = vrot.lane.b32.xlu0 %v371, 88
      %v657 = vpop.permute.xlu0 %656
      %658 = vrot.lane.b32.xlu0 %v378, 88
      %v659 = vpop.permute.xlu0 %658
      %660 = vrot.lane.b32.xlu0 %v385, 88
      %v661 = vpop.permute.xlu0 %660
      %662 = vrot.lane.b32.xlu0 %v392, 88
      %v663 = vpop.permute.xlu0 %662
      %664 = vrot.lane.b32.xlu0 %v399, 88
      %v665 = vpop.permute.xlu0 %664
      %666 = vrot.lane.b32.xlu0 %v406, 88
      %v667 = vpop.permute.xlu0 %666
      %668 = vrot.lane.b32.xlu0 %v413, 88
      %v669 = vpop.permute.xlu0 %668
      %670 = vrot.lane.b32.xlu0 %v420, 88
      %v671 = vpop.permute.xlu0 %670
      %vm680 = vcmask 60419
      %vm681 = vsmask.f32 3328
      %vm682 = vmand %vm680, %vm681
      %v683 = vld [vmem:[%s429] sm:$0x8]
      %v684 = vsel %vm682, %v657, %v683
      %685 = vst [vmem:[%s429] sm:$0x8] %v684
      %v686 = vld [vmem:[%s429 + $0x8] sm:$0x8]
      %v687 = vsel %vm682, %v659, %v686
      %688 = vst [vmem:[%s429 + $0x8] sm:$0x8] %v687
      %v689 = vld [vmem:[%s429 + $0x10] sm:$0x8]
      %v690 = vsel %vm682, %v661, %v689
      %691 = vst [vmem:[%s429 + $0x10] sm:$0x8] %v690
      %v692 = vld [vmem:[%s429 + $0x18] sm:$0x8]
      %v693 = vsel %vm682, %v663, %v692
      %694 = vst [vmem:[%s429 + $0x18] sm:$0x8] %v693
      %v695 = vld [vmem:[%s429 + $0x20] sm:$0x8]
      %v696 = vsel %vm682, %v665, %v695
      %697 = vst [vmem:[%s429 + $0x20] sm:$0x8] %v696
      %v698 = vld [vmem:[%s429 + $0x28] sm:$0x8]
      %v699 = vsel %vm682, %v667, %v698
      %700 = vst [vmem:[%s429 + $0x28] sm:$0x8] %v699
      %v701 = vld [vmem:[%s429 + $0x30] sm:$0x8]
      %v702 = vsel %vm682, %v669, %v701
      %703 = vst [vmem:[%s429 + $0x30] sm:$0x8] %v702
      %v704 = vld [vmem:[%s429 + $0x38] sm:$0x8]
      %v705 = vsel %vm682, %v671, %v704
      %706 = vst [vmem:[%s429 + $0x38] sm:$0x8] %v705
      %707 = vrot.lane.b32.xlu0 %v371, 80
      %v708 = vpop.permute.xlu0 %707
      %709 = vrot.lane.b32.xlu0 %v378, 80
      %v710 = vpop.permute.xlu0 %709
      %711 = vrot.lane.b32.xlu0 %v385, 80
      %v712 = vpop.permute.xlu0 %711
      %713 = vrot.lane.b32.xlu0 %v392, 80
      %v714 = vpop.permute.xlu0 %713
      %715 = vrot.lane.b32.xlu0 %v399, 80
      %v716 = vpop.permute.xlu0 %715
      %717 = vrot.lane.b32.xlu0 %v406, 80
      %v718 = vpop.permute.xlu0 %717
      %719 = vrot.lane.b32.xlu0 %v413, 80
      %v720 = vpop.permute.xlu0 %719
      %721 = vrot.lane.b32.xlu0 %v420, 80
      %v722 = vpop.permute.xlu0 %721
      %vm731 = vsmask.f32 7950
      %vm732 = vmand %vm680, %vm731
      %v733 = vld [vmem:[%s429] sm:$0x8]
      %v734 = vsel %vm732, %v708, %v733
      %735 = vst [vmem:[%s429] sm:$0x8] %v734
      %v736 = vld [vmem:[%s429 + $0x8] sm:$0x8]
      %v737 = vsel %vm732, %v710, %v736
      %738 = vst [vmem:[%s429 + $0x8] sm:$0x8] %v737
      %v739 = vld [vmem:[%s429 + $0x10] sm:$0x8]
      %v740 = vsel %vm732, %v712, %v739
      %741 = vst [vmem:[%s429 + $0x10] sm:$0x8] %v740
      %v742 = vld [vmem:[%s429 + $0x18] sm:$0x8]
      %v743 = vsel %vm732, %v714, %v742
      %744 = vst [vmem:[%s429 + $0x18] sm:$0x8] %v743
      %v745 = vld [vmem:[%s429 + $0x20] sm:$0x8]
      %v746 = vsel %vm732, %v716, %v745
      %747 = vst [vmem:[%s429 + $0x20] sm:$0x8] %v746
      %v748 = vld [vmem:[%s429 + $0x28] sm:$0x8]
      %v749 = vsel %vm732, %v718, %v748
      %750 = vst [vmem:[%s429 + $0x28] sm:$0x8] %v749
      %v751 = vld [vmem:[%s429 + $0x30] sm:$0x8]
      %v752 = vsel %vm732, %v720, %v751
      %753 = vst [vmem:[%s429 + $0x30] sm:$0x8] %v752
      %v754 = vld [vmem:[%s429 + $0x38] sm:$0x8]
      %v755 = vsel %vm732, %v722, %v754
      %756 = vst [vmem:[%s429 + $0x38] sm:$0x8] %v755
      %757 = vrot.lane.b32.xlu0 %v371, 72
      %v758 = vpop.permute.xlu0 %757
      %759 = vrot.lane.b32.xlu0 %v378, 72
      %v760 = vpop.permute.xlu0 %759
      %761 = vrot.lane.b32.xlu0 %v385, 72
      %v762 = vpop.permute.xlu0 %761
      %763 = vrot.lane.b32.xlu0 %v392, 72
      %v764 = vpop.permute.xlu0 %763
      %765 = vrot.lane.b32.xlu0 %v399, 72
      %v766 = vpop.permute.xlu0 %765
      %767 = vrot.lane.b32.xlu0 %v406, 72
      %v768 = vpop.permute.xlu0 %767
      %769 = vrot.lane.b32.xlu0 %v413, 72
      %v770 = vpop.permute.xlu0 %769
      %771 = vrot.lane.b32.xlu0 %v420, 72
      %v772 = vpop.permute.xlu0 %771
      %v781 = vld [vmem:[%s429 + $0x4] sm:$0x1]
      %v782 = vsel %vm261, %v758, %v781
      %783 = vst [vmem:[%s429 + $0x4] sm:$0x1] %v782
      %v784 = vld [vmem:[%s429 + $0xc] sm:$0x1]
      %v785 = vsel %vm261, %v760, %v784
      %786 = vst [vmem:[%s429 + $0xc] sm:$0x1] %v785
      %v787 = vld [vmem:[%s429 + $0x14] sm:$0x1]
      %v788 = vsel %vm261, %v762, %v787
      %789 = vst [vmem:[%s429 + $0x14] sm:$0x1] %v788
      %v790 = vld [vmem:[%s429 + $0x1c] sm:$0x1]
      %v791 = vsel %vm261, %v764, %v790
      %792 = vst [vmem:[%s429 + $0x1c] sm:$0x1] %v791
      %v793 = vld [vmem:[%s429 + $0x24] sm:$0x1]
      %v794 = vsel %vm261, %v766, %v793
      %795 = vst [vmem:[%s429 + $0x24] sm:$0x1] %v794
      %v796 = vld [vmem:[%s429 + $0x2c] sm:$0x1]
      %v797 = vsel %vm261, %v768, %v796
      %798 = vst [vmem:[%s429 + $0x2c] sm:$0x1] %v797
      %v799 = vld [vmem:[%s429 + $0x34] sm:$0x1]
      %v800 = vsel %vm261, %v770, %v799
      %801 = vst [vmem:[%s429 + $0x34] sm:$0x1] %v800
      %v802 = vld [vmem:[%s429 + $0x3c] sm:$0x1]
      %v803 = vsel %vm261, %v772, %v802
      %804 = vst [vmem:[%s429 + $0x3c] sm:$0x1] %v803
      %v805 = vld [vmem:[#allocation2] sm:$0xf]
      %v806 = vld [vmem:[#allocation2 + $0x8] sm:$0xf]
      %v807 = vld [vmem:[#allocation2 + $0x10] sm:$0xf]
      %v808 = vld [vmem:[#allocation2 + $0x18] sm:$0xf]
      %v809 = vld [vmem:[#allocation2 + $0x20] sm:$0xf]
      %v810 = vld [vmem:[#allocation2 + $0x28] sm:$0xf]
      %v811 = vld [vmem:[#allocation2 + $0x30] sm:$0xf]
      %v812 = vld [vmem:[#allocation2 + $0x38] sm:$0xf]
      %813 = vst.msk [vmem:[#allocation3] sm:$0xf] %vm252, %v805
      %814 = vst.msk [vmem:[#allocation3 + $0x4] sm:$0xf] %vm252, %v806
      %815 = vst.msk [vmem:[#allocation3 + $0x8] sm:$0xf] %vm252, %v807
      %816 = vst.msk [vmem:[#allocation3 + $0xc] sm:$0xf] %vm252, %v808
      %817 = vst.msk [vmem:[#allocation3 + $0x10] sm:$0xf] %vm252, %v809
      %818 = vst.msk [vmem:[#allocation3 + $0x14] sm:$0xf] %vm252, %v810
      %819 = vst.msk [vmem:[#allocation3 + $0x18] sm:$0xf] %vm252, %v811
      %820 = vst.msk [vmem:[#allocation3 + $0x1c] sm:$0xf] %vm252, %v812
      %v821 = vld [vmem:[#allocation2] sm:$0xf]
      %v822 = vld [vmem:[#allocation2 + $0x4] sm:$0x1]
      %v823 = vld [vmem:[#allocation2 + $0x8] sm:$0xf]
      %v824 = vld [vmem:[#allocation2 + $0xc] sm:$0x1]
      %v825 = vld [vmem:[#allocation2 + $0x10] sm:$0xf]
      %v826 = vld [vmem:[#allocation2 + $0x14] sm:$0x1]
      %v827 = vld [vmem:[#allocation2 + $0x18] sm:$0xf]
      %v828 = vld [vmem:[#allocation2 + $0x1c] sm:$0x1]
      %v829 = vld [vmem:[#allocation2 + $0x20] sm:$0xf]
      %v830 = vld [vmem:[#allocation2 + $0x24] sm:$0x1]
      %v831 = vld [vmem:[#allocation2 + $0x28] sm:$0xf]
      %v832 = vld [vmem:[#allocation2 + $0x2c] sm:$0x1]
      %v833 = vld [vmem:[#allocation2 + $0x30] sm:$0xf]
      %v834 = vld [vmem:[#allocation2 + $0x34] sm:$0x1]
      %v835 = vld [vmem:[#allocation2 + $0x38] sm:$0xf]
      %v836 = vld [vmem:[#allocation2 + $0x3c] sm:$0x1]
      %vm837 = vsmask.f32 7440
      %vm838 = vmor %vm681, %vm837
      %v840 = vshrl.u32 %v821, 16
      %v842 = vrot.slane %v840, 4
      %v843 = vshll.u32 %v821, 16
      %v845 = vrot.slane %v843, 5
      %v846 = vor.u32 %v842, %v845
      %v847 = vrot.slane %v846, 4
      %v849 = vshll.u32 %v822, 16
      %v851 = vrot.slane %v849, 5
      %v852 = vsel %vm838, %v847, %v851
      %v854 = vshrl.u32 %v823, 16
      %v856 = vrot.slane %v854, 4
      %v857 = vshll.u32 %v823, 16
      %v859 = vrot.slane %v857, 5
      %v860 = vor.u32 %v856, %v859
      %v861 = vrot.slane %v860, 4
      %v863 = vshll.u32 %v824, 16
      %v865 = vrot.slane %v863, 5
      %v866 = vsel %vm838, %v861, %v865
      %v868 = vshrl.u32 %v825, 16
      %v870 = vrot.slane %v868, 4
      %v871 = vshll.u32 %v825, 16
      %v873 = vrot.slane %v871, 5
      %v874 = vor.u32 %v870, %v873
      %v875 = vrot.slane %v874, 4
      %v877 = vshll.u32 %v826, 16
      %v879 = vrot.slane %v877, 5
      %v880 = vsel %vm838, %v875, %v879
      %v882 = vshrl.u32 %v827, 16
      %v884 = vrot.slane %v882, 4
      %v885 = vshll.u32 %v827, 16
      %v887 = vrot.slane %v885, 5
      %v888 = vor.u32 %v884, %v887
      %v889 = vrot.slane %v888, 4
      %v891 = vshll.u32 %v828, 16
      %v893 = vrot.slane %v891, 5
      %v894 = vsel %vm838, %v889, %v893
      %v896 = vshrl.u32 %v829, 16
      %v898 = vrot.slane %v896, 4
      %v899 = vshll.u32 %v829, 16
      %v901 = vrot.slane %v899, 5
      %v902 = vor.u32 %v898, %v901
      %v903 = vrot.slane %v902, 4
      %v905 = vshll.u32 %v830, 16
      %v907 = vrot.slane %v905, 5
      %v908 = vsel %vm838, %v903, %v907
      %v910 = vshrl.u32 %v831, 16
      %v912 = vrot.slane %v910, 4
      %v913 = vshll.u32 %v831, 16
      %v915 = vrot.slane %v913, 5
      %v916 = vor.u32 %v912, %v915
      %v917 = vrot.slane %v916, 4
      %v919 = vshll.u32 %v832, 16
      %v921 = vrot.slane %v919, 5
      %v922 = vsel %vm838, %v917, %v921
      %v924 = vshrl.u32 %v833, 16
      %v926 = vrot.slane %v924, 4
      %v927 = vshll.u32 %v833, 16
      %v929 = vrot.slane %v927, 5
      %v930 = vor.u32 %v926, %v929
      %v931 = vrot.slane %v930, 4
      %v933 = vshll.u32 %v834, 16
      %v935 = vrot.slane %v933, 5
      %v936 = vsel %vm838, %v931, %v935
      %v938 = vshrl.u32 %v835, 16
      %v940 = vrot.slane %v938, 4
      %v941 = vshll.u32 %v835, 16
      %v943 = vrot.slane %v941, 5
      %v944 = vor.u32 %v940, %v943
      %v945 = vrot.slane %v944, 4
      %v947 = vshll.u32 %v836, 16
      %v949 = vrot.slane %v947, 5
      %v950 = vsel %vm838, %v945, %v949
      %951 = vrot.lane.b32.xlu0 %v852, 8
      %v952 = vpop.permute.xlu0 %951
      %953 = vrot.lane.b32.xlu0 %v866, 8
      %v954 = vpop.permute.xlu0 %953
      %955 = vrot.lane.b32.xlu0 %v880, 8
      %v956 = vpop.permute.xlu0 %955
      %957 = vrot.lane.b32.xlu0 %v894, 8
      %v958 = vpop.permute.xlu0 %957
      %959 = vrot.lane.b32.xlu0 %v908, 8
      %v960 = vpop.permute.xlu0 %959
      %961 = vrot.lane.b32.xlu0 %v922, 8
      %v962 = vpop.permute.xlu0 %961
      %963 = vrot.lane.b32.xlu0 %v936, 8
      %v964 = vpop.permute.xlu0 %963
      %965 = vrot.lane.b32.xlu0 %v950, 8
      %v966 = vpop.permute.xlu0 %965
      %vm975 = vcmask 126016
      %976 = vst.msk [vmem:[#allocation3] sm:$0xf] %vm975, %v952
      %977 = vst.msk [vmem:[#allocation3 + $0x4] sm:$0xf] %vm975, %v954
      %978 = vst.msk [vmem:[#allocation3 + $0x8] sm:$0xf] %vm975, %v956
      %979 = vst.msk [vmem:[#allocation3 + $0xc] sm:$0xf] %vm975, %v958
      %980 = vst.msk [vmem:[#allocation3 + $0x10] sm:$0xf] %vm975, %v960
      %981 = vst.msk [vmem:[#allocation3 + $0x14] sm:$0xf] %vm975, %v962
      %982 = vst.msk [vmem:[#allocation3 + $0x18] sm:$0xf] %vm975, %v964
      %983 = vst.msk [vmem:[#allocation3 + $0x1c] sm:$0xf] %vm975, %v966
      %v984 = vld [vmem:[#allocation2] sm:$0xe]
      %v985 = vld [vmem:[#allocation2 + $0x4] sm:$0x1]
      %v986 = vld [vmem:[#allocation2 + $0x8] sm:$0xe]
      %v987 = vld [vmem:[#allocation2 + $0xc] sm:$0x1]
      %v988 = vld [vmem:[#allocation2 + $0x10] sm:$0xe]
      %v989 = vld [vmem:[#allocation2 + $0x14] sm:$0x1]
      %v990 = vld [vmem:[#allocation2 + $0x18] sm:$0xe]
      %v991 = vld [vmem:[#allocation2 + $0x1c] sm:$0x1]
      %v992 = vld [vmem:[#allocation2 + $0x20] sm:$0xe]
      %v993 = vld [vmem:[#allocation2 + $0x24] sm:$0x1]
      %v994 = vld [vmem:[#allocation2 + $0x28] sm:$0xe]
      %v995 = vld [vmem:[#allocation2 + $0x2c] sm:$0x1]
      %v996 = vld [vmem:[#allocation2 + $0x30] sm:$0xe]
      %v997 = vld [vmem:[#allocation2 + $0x34] sm:$0x1]
      %v998 = vld [vmem:[#allocation2 + $0x38] sm:$0xe]
      %v999 = vld [vmem:[#allocation2 + $0x3c] sm:$0x1]
      %vm1016 = vcmask 1042432
      %vm1017 = vcmask 1046532
      %vm1018 = vmor %vm1016, %vm1017
      %v1019 = vrot.slane %v984, 5
      %v1020 = vrot.slane %v1019, 4
      %v1021 = vrot.slane %v985, 5
      %v1022 = vsel %vm1018, %v1020, %v1021
      %v1023 = vrot.slane %v986, 5
      %v1024 = vrot.slane %v1023, 4
      %v1025 = vrot.slane %v987, 5
      %v1026 = vsel %vm1018, %v1024, %v1025
      %v1027 = vrot.slane %v988, 5
      %v1028 = vrot.slane %v1027, 4
      %v1029 = vrot.slane %v989, 5
      %v1030 = vsel %vm1018, %v1028, %v1029
      %v1031 = vrot.slane %v990, 5
      %v1032 = vrot.slane %v1031, 4
      %v1033 = vrot.slane %v991, 5
      %v1034 = vsel %vm1018, %v1032, %v1033
      %v1035 = vrot.slane %v992, 5
      %v1036 = vrot.slane %v1035, 4
      %v1037 = vrot.slane %v993, 5
      %v1038 = vsel %vm1018, %v1036, %v1037
      %v1039 = vrot.slane %v994, 5
      %v1040 = vrot.slane %v1039, 4
      %v1041 = vrot.slane %v995, 5
      %v1042 = vsel %vm1018, %v1040, %v1041
      %v1043 = vrot.slane %v996, 5
      %v1044 = vrot.slane %v1043, 4
      %v1045 = vrot.slane %v997, 5
      %v1046 = vsel %vm1018, %v1044, %v1045
      %v1047 = vrot.slane %v998, 5
      %v1048 = vrot.slane %v1047, 4
      %v1049 = vrot.slane %v999, 5
      %v1050 = vsel %vm1018, %v1048, %v1049
      %1051 = vrot.lane.b32.xlu0 %v1022, 16
      %v1052 = vpop.permute.xlu0 %1051
      %1053 = vrot.lane.b32.xlu0 %v1026, 16
      %v1054 = vpop.permute.xlu0 %1053
      %1055 = vrot.lane.b32.xlu0 %v1030, 16
      %v1056 = vpop.permute.xlu0 %1055
      %1057 = vrot.lane.b32.xlu0 %v1034, 16
      %v1058 = vpop.permute.xlu0 %1057
      %1059 = vrot.lane.b32.xlu0 %v1038, 16
      %v1060 = vpop.permute.xlu0 %1059
      %1061 = vrot.lane.b32.xlu0 %v1042, 16
      %v1062 = vpop.permute.xlu0 %1061
      %1063 = vrot.lane.b32.xlu0 %v1046, 16
      %v1064 = vpop.permute.xlu0 %1063
      %1065 = vrot.lane.b32.xlu0 %v1050, 16
      %v1066 = vpop.permute.xlu0 %1065
      %vm1075 = vcmask 191616
      %1076 = vst.msk [vmem:[#allocation3] sm:$0xf] %vm1075, %v1052
      %1077 = vst.msk [vmem:[#allocation3 + $0x4] sm:$0xf] %vm1075, %v1054
      %1078 = vst.msk [vmem:[#allocation3 + $0x8] sm:$0xf] %vm1075, %v1056
      %1079 = vst.msk [vmem:[#allocation3 + $0xc] sm:$0xf] %vm1075, %v1058
      %1080 = vst.msk [vmem:[#allocation3 + $0x10] sm:$0xf] %vm1075, %v1060
      %1081 = vst.msk [vmem:[#allocation3 + $0x14] sm:$0xf] %vm1075, %v1062
      %1082 = vst.msk [vmem:[#allocation3 + $0x18] sm:$0xf] %vm1075, %v1064
      %1083 = vst.msk [vmem:[#allocation3 + $0x1c] sm:$0xf] %vm1075, %v1066
      %v1084 = vld [vmem:[%s429] sm:$0xf]
      %v1085 = vld [vmem:[%s429 + $0x8] sm:$0xf]
      %v1086 = vld [vmem:[%s429 + $0x10] sm:$0xf]
      %v1087 = vld [vmem:[%s429 + $0x18] sm:$0xf]
      %v1088 = vld [vmem:[%s429 + $0x20] sm:$0xf]
      %v1089 = vld [vmem:[%s429 + $0x28] sm:$0xf]
      %v1090 = vld [vmem:[%s429 + $0x30] sm:$0xf]
      %v1091 = vld [vmem:[%s429 + $0x38] sm:$0xf]
      %1100 = vrot.lane.b32.xlu0 %v1084, 24
      %v1101 = vpop.permute.xlu0 %1100
      %1102 = vrot.lane.b32.xlu0 %v1085, 24
      %v1103 = vpop.permute.xlu0 %1102
      %1104 = vrot.lane.b32.xlu0 %v1086, 24
      %v1105 = vpop.permute.xlu0 %1104
      %1106 = vrot.lane.b32.xlu0 %v1087, 24
      %v1107 = vpop.permute.xlu0 %1106
      %1108 = vrot.lane.b32.xlu0 %v1088, 24
      %v1109 = vpop.permute.xlu0 %1108
      %1110 = vrot.lane.b32.xlu0 %v1089, 24
      %v1111 = vpop.permute.xlu0 %1110
      %1112 = vrot.lane.b32.xlu0 %v1090, 24
      %v1113 = vpop.permute.xlu0 %1112
      %1114 = vrot.lane.b32.xlu0 %v1091, 24
      %v1115 = vpop.permute.xlu0 %1114
      %vm1124 = vcmask 257216
      %1125 = vst.msk [vmem:[#allocation3] sm:$0xf] %vm1124, %v1101
      %1126 = vst.msk [vmem:[#allocation3 + $0x4] sm:$0xf] %vm1124, %v1103
      %1127 = vst.msk [vmem:[#allocation3 + $0x8] sm:$0xf] %vm1124, %v1105
      %1128 = vst.msk [vmem:[#allocation3 + $0xc] sm:$0xf] %vm1124, %v1107
      %1129 = vst.msk [vmem:[#allocation3 + $0x10] sm:$0xf] %vm1124, %v1109
      %1130 = vst.msk [vmem:[#allocation3 + $0x14] sm:$0xf] %vm1124, %v1111
      %1131 = vst.msk [vmem:[#allocation3 + $0x18] sm:$0xf] %vm1124, %v1113
      %1132 = vst.msk [vmem:[#allocation3 + $0x1c] sm:$0xf] %vm1124, %v1115
      %v1133 = vld [vmem:[%s429] sm:$0xf]
      %v1134 = vld [vmem:[%s429 + $0x4] sm:$0x1]
      %v1135 = vld [vmem:[%s429 + $0x8] sm:$0xf]
      %v1136 = vld [vmem:[%s429 + $0xc] sm:$0x1]
      %v1137 = vld [vmem:[%s429 + $0x10] sm:$0xf]
      %v1138 = vld [vmem:[%s429 + $0x14] sm:$0x1]
      %v1139 = vld [vmem:[%s429 + $0x18] sm:$0xf]
      %v1140 = vld [vmem:[%s429 + $0x1c] sm:$0x1]
      %v1141 = vld [vmem:[%s429 + $0x20] sm:$0xf]
      %v1142 = vld [vmem:[%s429 + $0x24] sm:$0x1]
      %v1143 = vld [vmem:[%s429 + $0x28] sm:$0xf]
      %v1144 = vld [vmem:[%s429 + $0x2c] sm:$0x1]
      %v1145 = vld [vmem:[%s429 + $0x30] sm:$0xf]
      %v1146 = vld [vmem:[%s429 + $0x34] sm:$0x1]
      %v1147 = vld [vmem:[%s429 + $0x38] sm:$0xf]
      %v1148 = vld [vmem:[%s429 + $0x3c] sm:$0x1]
      %v1150 = vshrl.u32 %v1133, 16
      %v1152 = vrot.slane %v1150, 4
      %v1153 = vshll.u32 %v1133, 16
      %v1155 = vrot.slane %v1153, 5
      %v1156 = vor.u32 %v1152, %v1155
      %v1157 = vrot.slane %v1156, 4
      %v1159 = vshll.u32 %v1134, 16
      %v1161 = vrot.slane %v1159, 5
      %v1162 = vsel %vm838, %v1157, %v1161
      %v1164 = vshrl.u32 %v1135, 16
      %v1166 = vrot.slane %v1164, 4
      %v1167 = vshll.u32 %v1135, 16
      %v1169 = vrot.slane %v1167, 5
      %v1170 = vor.u32 %v1166, %v1169
      %v1171 = vrot.slane %v1170, 4
      %v1173 = vshll.u32 %v1136, 16
      %v1175 = vrot.slane %v1173, 5
      %v1176 = vsel %vm838, %v1171, %v1175
      %v1178 = vshrl.u32 %v1137, 16
      %v1180 = vrot.slane %v1178, 4
      %v1181 = vshll.u32 %v1137, 16
      %v1183 = vrot.slane %v1181, 5
      %v1184 = vor.u32 %v1180, %v1183
      %v1185 = vrot.slane %v1184, 4
      %v1187 = vshll.u32 %v1138, 16
      %v1189 = vrot.slane %v1187, 5
      %v1190 = vsel %vm838, %v1185, %v1189
      %v1192 = vshrl.u32 %v1139, 16
      %v1194 = vrot.slane %v1192, 4
      %v1195 = vshll.u32 %v1139, 16
      %v1197 = vrot.slane %v1195, 5
      %v1198 = vor.u32 %v1194, %v1197
      %v1199 = vrot.slane %v1198, 4
      %v1201 = vshll.u32 %v1140, 16
      %v1203 = vrot.slane %v1201, 5
      %v1204 = vsel %vm838, %v1199, %v1203
      %v1206 = vshrl.u32 %v1141, 16
      %v1208 = vrot.slane %v1206, 4
      %v1209 = vshll.u32 %v1141, 16
      %v1211 = vrot.slane %v1209, 5
      %v1212 = vor.u32 %v1208, %v1211
      %v1213 = vrot.slane %v1212, 4
      %v1215 = vshll.u32 %v1142, 16
      %v1217 = vrot.slane %v1215, 5
      %v1218 = vsel %vm838, %v1213, %v1217
      %v1220 = vshrl.u32 %v1143, 16
      %v1222 = vrot.slane %v1220, 4
      %v1223 = vshll.u32 %v1143, 16
      %v1225 = vrot.slane %v1223, 5
      %v1226 = vor.u32 %v1222, %v1225
      %v1227 = vrot.slane %v1226, 4
      %v1229 = vshll.u32 %v1144, 16
      %v1231 = vrot.slane %v1229, 5
      %v1232 = vsel %vm838, %v1227, %v1231
      %v1234 = vshrl.u32 %v1145, 16
      %v1236 = vrot.slane %v1234, 4
      %v1237 = vshll.u32 %v1145, 16
      %v1239 = vrot.slane %v1237, 5
      %v1240 = vor.u32 %v1236, %v1239
      %v1241 = vrot.slane %v1240, 4
      %v1243 = vshll.u32 %v1146, 16
      %v1245 = vrot.slane %v1243, 5
      %v1246 = vsel %vm838, %v1241, %v1245
      %v1248 = vshrl.u32 %v1147, 16
      %v1250 = vrot.slane %v1248, 4
      %v1251 = vshll.u32 %v1147, 16
      %v1253 = vrot.slane %v1251, 5
      %v1254 = vor.u32 %v1250, %v1253
      %v1255 = vrot.slane %v1254, 4
      %v1257 = vshll.u32 %v1148, 16
      %v1259 = vrot.slane %v1257, 5
      %v1260 = vsel %vm838, %v1255, %v1259
      %1261 = vrot.lane.b32.xlu0 %v1162, 32
      %v1262 = vpop.permute.xlu0 %1261
      %1263 = vrot.lane.b32.xlu0 %v1176, 32
      %v1264 = vpop.permute.xlu0 %1263
      %1265 = vrot.lane.b32.xlu0 %v1190, 32
      %v1266 = vpop.permute.xlu0 %1265
      %1267 = vrot.lane.b32.xlu0 %v1204, 32
      %v1268 = vpop.permute.xlu0 %1267
      %1269 = vrot.lane.b32.xlu0 %v1218, 32
      %v1270 = vpop.permute.xlu0 %1269
      %1271 = vrot.lane.b32.xlu0 %v1232, 32
      %v1272 = vpop.permute.xlu0 %1271
      %1273 = vrot.lane.b32.xlu0 %v1246, 32
      %v1274 = vpop.permute.xlu0 %1273
      %1275 = vrot.lane.b32.xlu0 %v1260, 32
      %v1276 = vpop.permute.xlu0 %1275
      %vm1285 = vcmask 322816
      %1286 = vst.msk [vmem:[#allocation3] sm:$0xf] %vm1285, %v1262
      %1287 = vst.msk [vmem:[#allocation3 + $0x4] sm:$0xf] %vm1285, %v1264
      %1288 = vst.msk [vmem:[#allocation3 + $0x8] sm:$0xf] %vm1285, %v1266
      %1289 = vst.msk [vmem:[#allocation3 + $0xc] sm:$0xf] %vm1285, %v1268
      %1290 = vst.msk [vmem:[#allocation3 + $0x10] sm:$0xf] %vm1285, %v1270
      %1291 = vst.msk [vmem:[#allocation3 + $0x14] sm:$0xf] %vm1285, %v1272
      %1292 = vst.msk [vmem:[#allocation3 + $0x18] sm:$0xf] %vm1285, %v1274
      %1293 = vst.msk [vmem:[#allocation3 + $0x1c] sm:$0xf] %vm1285, %v1276
      %v1294 = vld [vmem:[%s429] sm:$0xe]
      %v1295 = vld [vmem:[%s429 + $0x4] sm:$0x1]
      %v1296 = vld [vmem:[%s429 + $0x8] sm:$0xe]
      %v1297 = vld [vmem:[%s429 + $0xc] sm:$0x1]
      %v1298 = vld [vmem:[%s429 + $0x10] sm:$0xe]
      %v1299 = vld [vmem:[%s429 + $0x14] sm:$0x1]
      %v1300 = vld [vmem:[%s429 + $0x18] sm:$0xe]
      %v1301 = vld [vmem:[%s429 + $0x1c] sm:$0x1]
      %v1302 = vld [vmem:[%s429 + $0x20] sm:$0xe]
      %v1303 = vld [vmem:[%s429 + $0x24] sm:$0x1]
      %v1304 = vld [vmem:[%s429 + $0x28] sm:$0xe]
      %v1305 = vld [vmem:[%s429 + $0x2c] sm:$0x1]
      %v1306 = vld [vmem:[%s429 + $0x30] sm:$0xe]
      %v1307 = vld [vmem:[%s429 + $0x34] sm:$0x1]
      %v1308 = vld [vmem:[%s429 + $0x38] sm:$0xe]
      %v1309 = vld [vmem:[%s429 + $0x3c] sm:$0x1]
      %v1326 = vrot.slane %v1294, 5
      %v1327 = vrot.slane %v1326, 4
      %v1328 = vrot.slane %v1295, 5
      %v1329 = vsel %vm1018, %v1327, %v1328
      %v1330 = vrot.slane %v1296, 5
      %v1331 = vrot.slane %v1330, 4
      %v1332 = vrot.slane %v1297, 5
      %v1333 = vsel %vm1018, %v1331, %v1332
      %v1334 = vrot.slane %v1298, 5
      %v1335 = vrot.slane %v1334, 4
      %v1336 = vrot.slane %v1299, 5
      %v1337 = vsel %vm1018, %v1335, %v1336
      %v1338 = vrot.slane %v1300, 5
      %v1339 = vrot.slane %v1338, 4
      %v1340 = vrot.slane %v1301, 5
      %v1341 = vsel %vm1018, %v1339, %v1340
      %v1342 = vrot.slane %v1302, 5
      %v1343 = vrot.slane %v1342, 4
      %v1344 = vrot.slane %v1303, 5
      %v1345 = vsel %vm1018, %v1343, %v1344
      %v1346 = vrot.slane %v1304, 5
      %v1347 = vrot.slane %v1346, 4
      %v1348 = vrot.slane %v1305, 5
      %v1349 = vsel %vm1018, %v1347, %v1348
      %v1350 = vrot.slane %v1306, 5
      %v1351 = vrot.slane %v1350, 4
      %v1352 = vrot.slane %v1307, 5
      %v1353 = vsel %vm1018, %v1351, %v1352
      %v1354 = vrot.slane %v1308, 5
      %v1355 = vrot.slane %v1354, 4
      %v1356 = vrot.slane %v1309, 5
      %v1357 = vsel %vm1018, %v1355, %v1356
      %1358 = vrot.lane.b32.xlu0 %v1329, 40
      %v1359 = vpop.permute.xlu0 %1358
      %1360 = vrot.lane.b32.xlu0 %v1333, 40
      %v1361 = vpop.permute.xlu0 %1360
      %1362 = vrot.lane.b32.xlu0 %v1337, 40
      %v1363 = vpop.permute.xlu0 %1362
      %1364 = vrot.lane.b32.xlu0 %v1341, 40
      %v1365 = vpop.permute.xlu0 %1364
      %1366 = vrot.lane.b32.xlu0 %v1345, 40
      %v1367 = vpop.permute.xlu0 %1366
      %1368 = vrot.lane.b32.xlu0 %v1349, 40
      %v1369 = vpop.permute.xlu0 %1368
      %1370 = vrot.lane.b32.xlu0 %v1353, 40
      %v1371 = vpop.permute.xlu0 %1370
      %1372 = vrot.lane.b32.xlu0 %v1357, 40
      %v1373 = vpop.permute.xlu0 %1372
      %vm1382 = vcmask 388416
      %1383 = vst.msk [vmem:[#allocation3] sm:$0xf] %vm1382, %v1359
      %1384 = vst.msk [vmem:[#allocation3 + $0x4] sm:$0xf] %vm1382, %v1361
      %1385 = vst.msk [vmem:[#allocation3 + $0x8] sm:$0xf] %vm1382, %v1363
      %1386 = vst.msk [vmem:[#allocation3 + $0xc] sm:$0xf] %vm1382, %v1365
      %1387 = vst.msk [vmem:[#allocation3 + $0x10] sm:$0xf] %vm1382, %v1367
      %1388 = vst.msk [vmem:[#allocation3 + $0x14] sm:$0xf] %vm1382, %v1369
      %1389 = vst.msk [vmem:[#allocation3 + $0x18] sm:$0xf] %vm1382, %v1371
      %1390 = vst.msk [vmem:[#allocation3 + $0x1c] sm:$0xf] %vm1382, %v1373
      %s1391 = scalar_lea.vmem [#allocation2], 16
      %v1392 = vld [vmem:[%s1391] sm:$0xf]
      %v1393 = vld [vmem:[%s1391 + $0x8] sm:$0xf]
      %v1394 = vld [vmem:[%s1391 + $0x10] sm:$0xf]
      %v1395 = vld [vmem:[%s1391 + $0x18] sm:$0xf]
      %v1396 = vld [vmem:[%s1391 + $0x20] sm:$0xf]
      %v1397 = vld [vmem:[%s1391 + $0x28] sm:$0xf]
      %v1398 = vld [vmem:[%s1391 + $0x30] sm:$0xf]
      %v1399 = vld [vmem:[%s1391 + $0x38] sm:$0xf]
      %1408 = vrot.lane.b32.xlu0 %v1392, 48
      %v1409 = vpop.permute.xlu0 %1408
      %1410 = vrot.lane.b32.xlu0 %v1393, 48
      %v1411 = vpop.permute.xlu0 %1410
      %1412 = vrot.lane.b32.xlu0 %v1394, 48
      %v1413 = vpop.permute.xlu0 %1412
      %1414 = vrot.lane.b32.xlu0 %v1395, 48
      %v1415 = vpop.permute.xlu0 %1414
      %1416 = vrot.lane.b32.xlu0 %v1396, 48
      %v1417 = vpop.permute.xlu0 %1416
      %1418 = vrot.lane.b32.xlu0 %v1397, 48
      %v1419 = vpop.permute.xlu0 %1418
      %1420 = vrot.lane.b32.xlu0 %v1398, 48
      %v1421 = vpop.permute.xlu0 %1420
      %1422 = vrot.lane.b32.xlu0 %v1399, 48
      %v1423 = vpop.permute.xlu0 %1422
      %vm1432 = vcmask 454016
      %1433 = vst.msk [vmem:[#allocation3] sm:$0xf] %vm1432, %v1409
      %1434 = vst.msk [vmem:[#allocation3 + $0x4] sm:$0xf] %vm1432, %v1411
      %1435 = vst.msk [vmem:[#allocation3 + $0x8] sm:$0xf] %vm1432, %v1413
      %1436 = vst.msk [vmem:[#allocation3 + $0xc] sm:$0xf] %vm1432, %v1415
      %1437 = vst.msk [vmem:[#allocation3 + $0x10] sm:$0xf] %vm1432, %v1417
      %1438 = vst.msk [vmem:[#allocation3 + $0x14] sm:$0xf] %vm1432, %v1419
      %1439 = vst.msk [vmem:[#allocation3 + $0x18] sm:$0xf] %vm1432, %v1421
      %1440 = vst.msk [vmem:[#allocation3 + $0x1c] sm:$0xf] %vm1432, %v1423
      %v1441 = vld [vmem:[%s1391] sm:$0xf]
      %v1442 = vld [vmem:[%s1391 + $0x4] sm:$0x1]
      %v1443 = vld [vmem:[%s1391 + $0x8] sm:$0xf]
      %v1444 = vld [vmem:[%s1391 + $0xc] sm:$0x1]
      %v1445 = vld [vmem:[%s1391 + $0x10] sm:$0xf]
      %v1446 = vld [vmem:[%s1391 + $0x14] sm:$0x1]
      %v1447 = vld [vmem:[%s1391 + $0x18] sm:$0xf]
      %v1448 = vld [vmem:[%s1391 + $0x1c] sm:$0x1]
      %v1449 = vld [vmem:[%s1391 + $0x20] sm:$0xf]
      %v1450 = vld [vmem:[%s1391 + $0x24] sm:$0x1]
      %v1451 = vld [vmem:[%s1391 + $0x28] sm:$0xf]
      %v1452 = vld [vmem:[%s1391 + $0x2c] sm:$0x1]
      %v1453 = vld [vmem:[%s1391 + $0x30] sm:$0xf]
      %v1454 = vld [vmem:[%s1391 + $0x34] sm:$0x1]
      %v1455 = vld [vmem:[%s1391 + $0x38] sm:$0xf]
      %v1456 = vld [vmem:[%s1391 + $0x3c] sm:$0x1]
      %v1458 = vshrl.u32 %v1441, 16
      %v1460 = vrot.slane %v1458, 4
      %v1461 = vshll.u32 %v1441, 16
      %v1463 = vrot.slane %v1461, 5
      %v1464 = vor.u32 %v1460, %v1463
      %v1465 = vrot.slane %v1464, 4
      %v1467 = vshll.u32 %v1442, 16
      %v1469 = vrot.slane %v1467, 5
      %v1470 = vsel %vm838, %v1465, %v1469
      %v1472 = vshrl.u32 %v1443, 16
      %v1474 = vrot.slane %v1472, 4
      %v1475 = vshll.u32 %v1443, 16
      %v1477 = vrot.slane %v1475, 5
      %v1478 = vor.u32 %v1474, %v1477
      %v1479 = vrot.slane %v1478, 4
      %v1481 = vshll.u32 %v1444, 16
      %v1483 = vrot.slane %v1481, 5
      %v1484 = vsel %vm838, %v1479, %v1483
      %v1486 = vshrl.u32 %v1445, 16
      %v1488 = vrot.slane %v1486, 4
      %v1489 = vshll.u32 %v1445, 16
      %v1491 = vrot.slane %v1489, 5
      %v1492 = vor.u32 %v1488, %v1491
      %v1493 = vrot.slane %v1492, 4
      %v1495 = vshll.u32 %v1446, 16
      %v1497 = vrot.slane %v1495, 5
      %v1498 = vsel %vm838, %v1493, %v1497
      %v1500 = vshrl.u32 %v1447, 16
      %v1502 = vrot.slane %v1500, 4
      %v1503 = vshll.u32 %v1447, 16
      %v1505 = vrot.slane %v1503, 5
      %v1506 = vor.u32 %v1502, %v1505
      %v1507 = vrot.slane %v1506, 4
      %v1509 = vshll.u32 %v1448, 16
      %v1511 = vrot.slane %v1509, 5
      %v1512 = vsel %vm838, %v1507, %v1511
      %v1514 = vshrl.u32 %v1449, 16
      %v1516 = vrot.slane %v1514, 4
      %v1517 = vshll.u32 %v1449, 16
      %v1519 = vrot.slane %v1517, 5
      %v1520 = vor.u32 %v1516, %v1519
      %v1521 = vrot.slane %v1520, 4
      %v1523 = vshll.u32 %v1450, 16
      %v1525 = vrot.slane %v1523, 5
      %v1526 = vsel %vm838, %v1521, %v1525
      %v1528 = vshrl.u32 %v1451, 16
      %v1530 = vrot.slane %v1528, 4
      %v1531 = vshll.u32 %v1451, 16
      %v1533 = vrot.slane %v1531, 5
      %v1534 = vor.u32 %v1530, %v1533
      %v1535 = vrot.slane %v1534, 4
      %v1537 = vshll.u32 %v1452, 16
      %v1539 = vrot.slane %v1537, 5
      %v1540 = vsel %vm838, %v1535, %v1539
      %v1542 = vshrl.u32 %v1453, 16
      %v1544 = vrot.slane %v1542, 4
      %v1545 = vshll.u32 %v1453, 16
      %v1547 = vrot.slane %v1545, 5
      %v1548 = vor.u32 %v1544, %v1547
      %v1549 = vrot.slane %v1548, 4
      %v1551 = vshll.u32 %v1454, 16
      %v1553 = vrot.slane %v1551, 5
      %v1554 = vsel %vm838, %v1549, %v1553
      %v1556 = vshrl.u32 %v1455, 16
      %v1558 = vrot.slane %v1556, 4
      %v1559 = vshll.u32 %v1455, 16
      %v1561 = vrot.slane %v1559, 5
      %v1562 = vor.u32 %v1558, %v1561
      %v1563 = vrot.slane %v1562, 4
      %v1565 = vshll.u32 %v1456, 16
      %v1567 = vrot.slane %v1565, 5
      %v1568 = vsel %vm838, %v1563, %v1567
      %1569 = vrot.lane.b32.xlu0 %v1470, 56
      %v1570 = vpop.permute.xlu0 %1569
      %1571 = vrot.lane.b32.xlu0 %v1484, 56
      %v1572 = vpop.permute.xlu0 %1571
      %1573 = vrot.lane.b32.xlu0 %v1498, 56
      %v1574 = vpop.permute.xlu0 %1573
      %1575 = vrot.lane.b32.xlu0 %v1512, 56
      %v1576 = vpop.permute.xlu0 %1575
      %1577 = vrot.lane.b32.xlu0 %v1526, 56
      %v1578 = vpop.permute.xlu0 %1577
      %1579 = vrot.lane.b32.xlu0 %v1540, 56
      %v1580 = vpop.permute.xlu0 %1579
      %1581 = vrot.lane.b32.xlu0 %v1554, 56
      %v1582 = vpop.permute.xlu0 %1581
      %1583 = vrot.lane.b32.xlu0 %v1568, 56
      %v1584 = vpop.permute.xlu0 %1583
      %vm1593 = vcmask 519616
      %1594 = vst.msk [vmem:[#allocation3] sm:$0xf] %vm1593, %v1570
      %1595 = vst.msk [vmem:[#allocation3 + $0x4] sm:$0xf] %vm1593, %v1572
      %1596 = vst.msk [vmem:[#allocation3 + $0x8] sm:$0xf] %vm1593, %v1574
      %1597 = vst.msk [vmem:[#allocation3 + $0xc] sm:$0xf] %vm1593, %v1576
      %1598 = vst.msk [vmem:[#allocation3 + $0x10] sm:$0xf] %vm1593, %v1578
      %1599 = vst.msk [vmem:[#allocation3 + $0x14] sm:$0xf] %vm1593, %v1580
      %1600 = vst.msk [vmem:[#allocation3 + $0x18] sm:$0xf] %vm1593, %v1582
      %1601 = vst.msk [vmem:[#allocation3 + $0x1c] sm:$0xf] %vm1593, %v1584
      %v1602 = vld [vmem:[%s1391] sm:$0xe]
      %v1603 = vld [vmem:[%s1391 + $0x4] sm:$0x1]
      %v1604 = vld [vmem:[%s1391 + $0x8] sm:$0xe]
      %v1605 = vld [vmem:[%s1391 + $0xc] sm:$0x1]
      %v1606 = vld [vmem:[%s1391 + $0x10] sm:$0xe]
      %v1607 = vld [vmem:[%s1391 + $0x14] sm:$0x1]
      %v1608 = vld [vmem:[%s1391 + $0x18] sm:$0xe]
      %v1609 = vld [vmem:[%s1391 + $0x1c] sm:$0x1]
      %v1610 = vld [vmem:[%s1391 + $0x20] sm:$0xe]
      %v1611 = vld [vmem:[%s1391 + $0x24] sm:$0x1]
      %v1612 = vld [vmem:[%s1391 + $0x28] sm:$0xe]
      %v1613 = vld [vmem:[%s1391 + $0x2c] sm:$0x1]
      %v1614 = vld [vmem:[%s1391 + $0x30] sm:$0xe]
      %v1615 = vld [vmem:[%s1391 + $0x34] sm:$0x1]
      %v1616 = vld [vmem:[%s1391 + $0x38] sm:$0xe]
      %v1617 = vld [vmem:[%s1391 + $0x3c] sm:$0x1]
      %v1634 = vrot.slane %v1602, 5
      %v1635 = vrot.slane %v1634, 4
      %v1636 = vrot.slane %v1603, 5
      %v1637 = vsel %vm1018, %v1635, %v1636
      %v1638 = vrot.slane %v1604, 5
      %v1639 = vrot.slane %v1638, 4
      %v1640 = vrot.slane %v1605, 5
      %v1641 = vsel %vm1018, %v1639, %v1640
      %v1642 = vrot.slane %v1606, 5
      %v1643 = vrot.slane %v1642, 4
      %v1644 = vrot.slane %v1607, 5
      %v1645 = vsel %vm1018, %v1643, %v1644
      %v1646 = vrot.slane %v1608, 5
      %v1647 = vrot.slane %v1646, 4
      %v1648 = vrot.slane %v1609, 5
      %v1649 = vsel %vm1018, %v1647, %v1648
      %v1650 = vrot.slane %v1610, 5
      %v1651 = vrot.slane %v1650, 4
      %v1652 = vrot.slane %v1611, 5
      %v1653 = vsel %vm1018, %v1651, %v1652
      %v1654 = vrot.slane %v1612, 5
      %v1655 = vrot.slane %v1654, 4
      %v1656 = vrot.slane %v1613, 5
      %v1657 = vsel %vm1018, %v1655, %v1656
      %v1658 = vrot.slane %v1614, 5
      %v1659 = vrot.slane %v1658, 4
      %v1660 = vrot.slane %v1615, 5
      %v1661 = vsel %vm1018, %v1659, %v1660
      %v1662 = vrot.slane %v1616, 5
      %v1663 = vrot.slane %v1662, 4
      %v1664 = vrot.slane %v1617, 5
      %v1665 = vsel %vm1018, %v1663, %v1664
      %1666 = vrot.lane.b32.xlu0 %v1637, 64
      %v1667 = vpop.permute.xlu0 %1666
      %1668 = vrot.lane.b32.xlu0 %v1641, 64
      %v1669 = vpop.permute.xlu0 %1668
      %1670 = vrot.lane.b32.xlu0 %v1645, 64
      %v1671 = vpop.permute.xlu0 %1670
      %1672 = vrot.lane.b32.xlu0 %v1649, 64
      %v1673 = vpop.permute.xlu0 %1672
      %1674 = vrot.lane.b32.xlu0 %v1653, 64
      %v1675 = vpop.permute.xlu0 %1674
      %1676 = vrot.lane.b32.xlu0 %v1657, 64
      %v1677 = vpop.permute.xlu0 %1676
      %1678 = vrot.lane.b32.xlu0 %v1661, 64
      %v1679 = vpop.permute.xlu0 %1678
      %1680 = vrot.lane.b32.xlu0 %v1665, 64
      %v1681 = vpop.permute.xlu0 %1680
      %vm1690 = vcmask 585216
      %1691 = vst.msk [vmem:[#allocation3] sm:$0xf] %vm1690, %v1667
      %1692 = vst.msk [vmem:[#allocation3 + $0x4] sm:$0xf] %vm1690, %v1669
      %1693 = vst.msk [vmem:[#allocation3 + $0x8] sm:$0xf] %vm1690, %v1671
      %1694 = vst.msk [vmem:[#allocation3 + $0xc] sm:$0xf] %vm1690, %v1673
      %1695 = vst.msk [vmem:[#allocation3 + $0x10] sm:$0xf] %vm1690, %v1675
      %1696 = vst.msk [vmem:[#allocation3 + $0x14] sm:$0xf] %vm1690, %v1677
      %1697 = vst.msk [vmem:[#allocation3 + $0x18] sm:$0xf] %vm1690, %v1679
      %1698 = vst.msk [vmem:[#allocation3 + $0x1c] sm:$0xf] %vm1690, %v1681
      %v1699 = vld [vmem:[#allocation3] sm:$0xf]
      %v1700 = vld [vmem:[#allocation3 + $0x4] sm:$0xf]
      %v1701 = vld [vmem:[#allocation3 + $0x8] sm:$0xf]
      %v1702 = vld [vmem:[#allocation3 + $0xc] sm:$0xf]
      %v1703 = vld [vmem:[#allocation3 + $0x10] sm:$0xf]
      %v1704 = vld [vmem:[#allocation3 + $0x14] sm:$0xf]
      %v1705 = vld [vmem:[#allocation3 + $0x18] sm:$0xf]
      %v1706 = vld [vmem:[#allocation3 + $0x1c] sm:$0xf]
      %v1707 = vld [vmem:[%s3] sm:$0xf]
      %v1708 = vld [vmem:[%s3 + $0x4] sm:$0xf]
      %v1709 = vld [vmem:[%s3 + $0x8] sm:$0xf]
      %v1710 = vld [vmem:[%s3 + $0xc] sm:$0xf]
      %v1711 = vld [vmem:[%s3 + $0x10] sm:$0xf]
      %v1712 = vld [vmem:[%s3 + $0x14] sm:$0xf]
      %v1713 = vld [vmem:[%s3 + $0x18] sm:$0xf]
      %v1714 = vld [vmem:[%s3 + $0x1c] sm:$0xf]
      %v1715 = vld [vmem:[%s3 + $0x20] sm:$0xf]
      %v1724 = vunpack.c.l.b16 %v1699
      %v1725 = vunpack.c.l.b16 %v1700
      %v1726 = vunpack.c.l.b16 %v1701
      %v1727 = vunpack.c.l.b16 %v1702
      %v1728 = vunpack.c.l.b16 %v1703
      %v1729 = vunpack.c.l.b16 %v1704
      %v1730 = vunpack.c.l.b16 %v1705
      %v1731 = vunpack.c.l.b16 %v1706
      %v1732 = vpack.c.b16 %v1725, %v1724
      %v1733 = vpack.c.b16 %v1727, %v1726
      %v1734 = vpack.c.b16 %v1729, %v1728
      %v1735 = vpack.c.b16 %v1731, %v1730
      %v1745 = vunpack.c.l.b16 %v1707
      %v1746 = vunpack.c.l.b16 %v1708
      %v1747 = vunpack.c.l.b16 %v1709
      %v1748 = vunpack.c.l.b16 %v1710
      %v1749 = vunpack.c.l.b16 %v1711
      %v1750 = vunpack.c.l.b16 %v1712
      %v1751 = vunpack.c.l.b16 %v1713
      %v1752 = vunpack.c.l.b16 %v1714
      %v1753 = vunpack.c.l.b16 %v1715
      %v1754 = vpack.c.b16 %v1746, %v1745
      %v1755 = vpack.c.b16 %v1748, %v1747
      %v1756 = vpack.c.b16 %v1750, %v1749
      %v1757 = vpack.c.b16 %v1752, %v1751
      %v1758 = vpack.c.b16 %v1753, %v1753
      %vm1763 = vcmask 588800
      %v1765 = vsel %vm1763, %v1732, 0
      %v1768 = vsel %vm1763, %v1733, 0
      %v1771 = vsel %vm1763, %v1734, 0
      %v1774 = vsel %vm1763, %v1735, 0
      %vm1776 = vcmask 1043456
      %v1778 = vsel %vm1776, %v1758, 0
      %1780 = vmatprep.subr.bf16.mxu0 0
      %1781 = vmatpush1.bf16.msra.mxu0 0
      %1782 = vmatprep.subr.bf16.mxu0 0
      %1783 = vmatpush1.bf16.msra.mxu0 0
      %1784 = vmatprep.subr.bf16.mxu0 0
      %1785 = vmatpush1.bf16.msra.mxu0 0
      %1786 = vmatprep.subr.bf16.mxu0 0
      %1787 = vmatpush1.bf16.msra.mxu0 %v1778
      %1788 = vmatprep.subr.bf16.mxu0 0
      %1789 = vmatpush1.bf16.msra.mxu0 %v1757
      %1790 = vmatprep.subr.bf16.mxu0 0
      %1791 = vmatpush1.bf16.msra.mxu0 %v1756
      %1792 = vmatprep.subr.bf16.mxu0 0
      %1793 = vmatpush1.bf16.msra.mxu0 %v1755
      %1794 = vmatprep.subr.bf16.mxu0 0
      %1795 = vmatpush1.bf16.msra.mxu0 %v1754
      %1796 = vmatprep.subr.bf16.mxu0 0
      %1797 = vmatpush2.bf16.msra.mxu0 0
      %1798 = vmatprep.subr.bf16.mxu0 0
      %1799 = vmatpush2.bf16.msra.mxu0 0
      %1800 = vmatprep.subr.bf16.mxu0 0
      %1801 = vmatpush2.bf16.msra.mxu0 0
      %1802 = vmatprep.subr.bf16.mxu0 0
      %1803 = vmatpush2.bf16.msra.mxu0 0
      %1804 = vmatprep.subr.bf16.mxu0 0
      %1805 = vmatpush2.bf16.msra.mxu0 0
      %1806 = vmatprep.subr.bf16.mxu0 0
      %1807 = vmatpush2.bf16.msra.mxu0 0
      %1808 = vmatprep.subr.bf16.mxu0 0
      %1809 = vmatpush2.bf16.msra.mxu0 0
      %1810 = vmatprep.subr.bf16.mxu0 0
      %1811 = vmatpush2.bf16.msra.mxu0 0
      %1812 = vmatprep.mubr.bf16.mxu0 0
      %1813 = vmatmul.mubr.bf16.gmra.mxu0 %v1765
      %v1814 = vpop.f32.mrf.mxu0
      %v1815 = vadd.f32 0.0, %v1814
      %v1816 = vpop.f32.mrf.mxu0
      %v1817 = vpop.f32.mrf.mxu0
      %v1818 = vadd.f32 0.0, %v1817
      %v1819 = vpop.f32.mrf.mxu0
      %1820 = vmatprep.mubr.bf16.mxu0 0
      %1821 = vmatmul.mubr.bf16.gmra.mxu0 %v1768
      %v1822 = vpop.f32.mrf.mxu0
      %v1823 = vadd.f32 0.0, %v1822
      %v1824 = vpop.f32.mrf.mxu0
      %v1825 = vpop.f32.mrf.mxu0
      %v1826 = vadd.f32 0.0, %v1825
      %v1827 = vpop.f32.mrf.mxu0
      %1828 = vmatprep.mubr.bf16.mxu0 0
      %1829 = vmatmul.mubr.bf16.gmra.mxu0 %v1771
      %v1830 = vpop.f32.mrf.mxu0
      %v1831 = vadd.f32 0.0, %v1830
      %v1832 = vpop.f32.mrf.mxu0
      %v1833 = vpop.f32.mrf.mxu0
      %v1834 = vadd.f32 0.0, %v1833
      %v1835 = vpop.f32.mrf.mxu0
      %1836 = vmatprep.mubr.bf16.mxu0 0
      %1837 = vmatmul.mubr.bf16.gmra.mxu0 %v1774
      %v1838 = vpop.f32.mrf.mxu0
      %v1839 = vadd.f32 0.0, %v1838
      %v1840 = vpop.f32.mrf.mxu0
      %v1841 = vpop.f32.mrf.mxu0
      %v1842 = vadd.f32 0.0, %v1841
      %v1843 = vpop.f32.mrf.mxu0
      %1844 = vdwg.mxu0
      %vm1845 = vcmask 64512
      %v1846 = vsel %vm1845, %v1815, 0.0
      %v1847 = vsel %vm1845, %v1818, 0.0
      %v1848 = vadd.f32 %v1846, %v1847
      %v1849 = vsel %vm1845, %v1823, 0.0
      %v1850 = vadd.f32 %v1848, %v1849
      %v1851 = vsel %vm1845, %v1826, 0.0
      %v1852 = vadd.f32 %v1850, %v1851
      %v1853 = vsel %vm1845, %v1831, 0.0
      %v1854 = vadd.f32 %v1852, %v1853
      %v1855 = vsel %vm1845, %v1834, 0.0
      %v1856 = vadd.f32 %v1854, %v1855
      %v1857 = vsel %vm1845, %v1839, 0.0
      %v1858 = vadd.f32 %v1856, %v1857
      %v1859 = vsel %vm1845, %v1842, 0.0
      %v1860 = vadd.f32 %v1858, %v1859
      %v1861 = vrot.slane %v1860, 4
      %v1862 = vadd.f32 %v1860, %v1861
      %v1863 = vrot.slane %v1862, 2
      %v1864 = vadd.f32 %v1862, %v1863
      %v1865 = vrot.slane %v1864, 1
      %v1866 = vadd.f32 %v1864, %v1865
      %v1867 = vmul.f32 %v1866, 0.015625
      %v1868 = vsub.f32 %v1815, %v1867
      %v1869 = vsub.f32 %v1818, %v1867
      %v1870 = vsub.f32 %v1823, %v1867
      %v1871 = vsub.f32 %v1826, %v1867
      %v1872 = vsub.f32 %v1831, %v1867
      %v1873 = vsub.f32 %v1834, %v1867
      %v1874 = vsub.f32 %v1839, %v1867
      %v1875 = vsub.f32 %v1842, %v1867
      %1876 = vst.msk [vmem:[%s230] sm:$0x1] %vm254, %v1866
      %v1877 = vmul.f32 %v1868, %v1868
      %v1878 = vmul.f32 %v1869, %v1869
      %v1879 = vmul.f32 %v1870, %v1870
      %v1880 = vmul.f32 %v1871, %v1871
      %v1881 = vmul.f32 %v1872, %v1872
      %v1882 = vmul.f32 %v1873, %v1873
      %v1883 = vmul.f32 %v1874, %v1874
      %v1884 = vmul.f32 %v1875, %v1875
      %v1885 = vsel %vm1845, %v1877, 0.0
      %v1886 = vsel %vm1845, %v1878, 0.0
      %v1887 = vadd.f32 %v1885, %v1886
      %v1888 = vsel %vm1845, %v1879, 0.0
      %v1889 = vadd.f32 %v1887, %v1888
      %v1890 = vsel %vm1845, %v1880, 0.0
      %v1891 = vadd.f32 %v1889, %v1890
      %v1892 = vsel %vm1845, %v1881, 0.0
      %v1893 = vadd.f32 %v1891, %v1892
      %v1894 = vsel %vm1845, %v1882, 0.0
      %v1895 = vadd.f32 %v1893, %v1894
      %v1896 = vsel %vm1845, %v1883, 0.0
      %v1897 = vadd.f32 %v1895, %v1896
      %v1898 = vsel %vm1845, %v1884, 0.0
      %v1899 = vadd.f32 %v1897, %v1898
      %v1900 = vrot.slane %v1899, 4
      %v1901 = vadd.f32 %v1899, %v1900
      %v1902 = vrot.slane %v1901, 2
      %v1903 = vadd.f32 %v1901, %v1902
      %v1904 = vrot.slane %v1903, 1
      %v1905 = vadd.f32 %v1903, %v1904
      %1906 = vst.msk [vmem:[%s230 + $0x1] sm:$0x1] %vm254, %v1905
      %v1915 = vrot.slane %v1818, 7
      %vm1916 = vcmask 1041409
      %v1917 = vsel %vm1916, %v1915, %v1815
      %v1918 = vrot.slane %v1823, 6
      %vm1919 = vcmask 1042434
      %v1920 = vsel %vm1919, %v1918, %v1917
      %v1921 = vrot.slane %v1826, 5
      %vm1922 = vcmask 1043459
      %v1923 = vsel %vm1922, %v1921, %v1920
      %v1924 = vrot.slane %v1831, 4
      %vm1925 = vcmask 1044484
      %v1926 = vsel %vm1925, %v1924, %v1923
      %v1927 = vrot.slane %v1834, 3
      %vm1928 = vcmask 1045509
      %v1929 = vsel %vm1928, %v1927, %v1926
      %v1930 = vrot.slane %v1839, 2
      %vm1931 = vcmask 1046534
      %v1932 = vsel %vm1931, %v1930, %v1929
      %v1933 = vrot.slane %v1842, 1
      %vm1934 = vcmask 1047559
      %v1935 = vsel %vm1934, %v1933, %v1932
      %1937 = vst.msk [vmem:[%s226] sm:$0xff] %vm1845, %v1935
      %v1938 = vsel %vm1919, %v1915, %v1815
      %v1939 = vsel %vm1922, %v1918, %v1938
      %v1940 = vsel %vm1925, %v1921, %v1939
      %v1941 = vsel %vm1928, %v1924, %v1940
      %v1942 = vsel %vm1931, %v1927, %v1941
      %v1943 = vsel %vm1934, %v1930, %v1942
      %1944 = vrot.lane.b32.xlu0 %v1943, 8
      %v1945 = vpop.permute.xlu0 %1944
      %1946 = vrot.lane.b32.xlu0 %v1933, 8
      %v1947 = vpop.permute.xlu0 %1946
      %vm1950 = vcmask 130113
      %1951 = vst.msk [vmem:[%s226 - $0x1] sm:$0xfe] %vm1950, %v1945
      %vm1952 = vcmask 122944
      %1953 = vst.msk [vmem:[%s226 + $0x7] sm:$0x1] %vm1952, %v1947
      %v1954 = vsel %vm1922, %v1915, %v1815
      %v1955 = vsel %vm1925, %v1918, %v1954
      %v1956 = vsel %vm1928, %v1921, %v1955
      %v1957 = vsel %vm1931, %v1924, %v1956
      %v1958 = vsel %vm1934, %v1927, %v1957
      %v1959 = vsel %vm1916, %v1933, %v1930
      %1960 = vrot.lane.b32.xlu0 %v1958, 16
      %v1961 = vpop.permute.xlu0 %1960
      %1962 = vrot.lane.b32.xlu0 %v1959, 16
      %v1963 = vpop.permute.xlu0 %1962
      %vm1966 = vcmask 195714
      %1967 = vst.msk [vmem:[%s226 - $0x2] sm:$0xfc] %vm1966, %v1961
      %vm1968 = vcmask 189568
      %1969 = vst.msk [vmem:[%s226 + $0x6] sm:$0x3] %vm1968, %v1963
      %v1970 = vsel %vm1925, %v1915, %v1815
      %v1971 = vsel %vm1928, %v1918, %v1970
      %v1972 = vsel %vm1931, %v1921, %v1971
      %v1973 = vsel %vm1934, %v1924, %v1972
      %v1974 = vsel %vm1916, %v1930, %v1927
      %v1975 = vsel %vm1919, %v1933, %v1974
      %1976 = vrot.lane.b32.xlu0 %v1973, 24
      %v1977 = vpop.permute.xlu0 %1976
      %1978 = vrot.lane.b32.xlu0 %v1975, 24
      %v1979 = vpop.permute.xlu0 %1978
      %vm1982 = vcmask 261315
      %1983 = vst.msk [vmem:[%s226 - $0x3] sm:$0xf8] %vm1982, %v1977
      %vm1984 = vcmask 256192
      %1985 = vst.msk [vmem:[%s226 + $0x5] sm:$0x7] %vm1984, %v1979
      %v1986 = vsel %vm1928, %v1915, %v1815
      %v1987 = vsel %vm1931, %v1918, %v1986
      %v1988 = vsel %vm1934, %v1921, %v1987
      %v1989 = vsel %vm1916, %v1927, %v1924
      %v1990 = vsel %vm1919, %v1930, %v1989
      %v1991 = vsel %vm1922, %v1933, %v1990
      %1992 = vrot.lane.b32.xlu0 %v1988, 32
      %v1993 = vpop.permute.xlu0 %1992
      %1994 = vrot.lane.b32.xlu0 %v1991, 32
      %v1995 = vpop.permute.xlu0 %1994
      %vm1998 = vcmask 326916
      %1999 = vst.msk [vmem:[%s226 - $0x4] sm:$0xf0] %vm1998, %v1993
      %2000 = vst.msk [vmem:[%s226 + $0x4] sm:$0xf] %vm1285, %v1995
      %v2001 = vsel %vm1931, %v1915, %v1815
      %v2002 = vsel %vm1934, %v1918, %v2001
      %v2003 = vsel %vm1916, %v1924, %v1921
      %v2004 = vsel %vm1919, %v1927, %v2003
      %v2005 = vsel %vm1922, %v1930, %v2004
      %v2006 = vsel %vm1925, %v1933, %v2005
      %2007 = vrot.lane.b32.xlu0 %v2002, 40
      %v2008 = vpop.permute.xlu0 %2007
      %2009 = vrot.lane.b32.xlu0 %v2006, 40
      %v2010 = vpop.permute.xlu0 %2009
      %vm2013 = vcmask 392517
      %2014 = vst.msk [vmem:[%s226 - $0x5] sm:$0xe0] %vm2013, %v2008
      %vm2015 = vcmask 389440
      %2016 = vst.msk [vmem:[%s226 + $0x3] sm:$0x1f] %vm2015, %v2010
      %v2017 = vsel %vm1934, %v1915, %v1815
      %v2018 = vsel %vm1916, %v1921, %v1918
      %v2019 = vsel %vm1919, %v1924, %v2018
      %v2020 = vsel %vm1922, %v1927, %v2019
      %v2021 = vsel %vm1925, %v1930, %v2020
      %v2022 = vsel %vm1928, %v1933, %v2021
      %2023 = vrot.lane.b32.xlu0 %v2017, 48
      %v2024 = vpop.permute.xlu0 %2023
      %2025 = vrot.lane.b32.xlu0 %v2022, 48
      %v2026 = vpop.permute.xlu0 %2025
      %vm2029 = vcmask 458118
      %2030 = vst.msk [vmem:[%s226 - $0x6] sm:$0xc0] %vm2029, %v2024
      %vm2031 = vcmask 456064
      %2032 = vst.msk [vmem:[%s226 + $0x2] sm:$0x3f] %vm2031, %v2026
      %v2033 = vsel %vm1916, %v1918, %v1915
      %v2034 = vsel %vm1919, %v1921, %v2033
      %v2035 = vsel %vm1922, %v1924, %v2034
      %v2036 = vsel %vm1925, %v1927, %v2035
      %v2037 = vsel %vm1928, %v1930, %v2036
      %v2038 = vsel %vm1931, %v1933, %v2037
      %2039 = vrot.lane.b32.xlu0 %v1815, 56
      %v2040 = vpop.permute.xlu0 %2039
      %2041 = vrot.lane.b32.xlu0 %v2038, 56
      %v2042 = vpop.permute.xlu0 %2041
      %vm2045 = vcmask 523719
      %2046 = vst.msk [vmem:[%s226 - $0x7] sm:$0x80] %vm2045, %v2040
      %vm2047 = vcmask 522688
      %2048 = vst.msk [vmem:[%s226 + $0x1] sm:$0x7f] %vm2047, %v2042
      %p2049 = scmp.lt.s32.totalorder %s17, 1
      %s2050 = scalar_select %p2049, %s17, 1
      %s2051 = smul.addr %s2050, 8
      %s2052 = scalar_lea.vmem %s4, %s2051
      %p2053 = scmp.lt.s32.totalorder %s17, 1
      %s2054 = scalar_select %p2053, %s17, 1
      %s2055 = smul.addr %s2054, 2
      %s2056 = scalar_lea.vmem %s5, %s2055
      // Predicated region
      $region37: #{_lambda_.3} parent=35 // pred_check
        %p2057 = pneg %p124
      $region38: #{_lambda_.3} parent=35 // pred_check_branch
        %2059 = sbr.rel (%p2057) target = $region40
      $region39: #{_lambda_.3} parent=35 // pred_region
        _
      $region40: #{_lambda_.3} parent=35 // pred_fallthru
        _
      // Predicated region
      $region41: #{_lambda_.3} parent=35 // pred_check
        %p2060 = pneg %p150
      $region42: #{_lambda_.3} parent=35 // pred_check_branch
        %2062 = sbr.rel (%p2060) target = $region44
      $region43: #{_lambda_.3} parent=35 // pred_region
        _
      $region44: #{_lambda_.3} parent=35 // pred_fallthru
        _
    $region36: #{_lambda_.3} parent=5 // pred_fallthru
      _
    %p2063 = scmp.le.s32.totalorder 2, %s12
    // Predicated region
    $region45: #{_lambda_.3} parent=5 // pred_check
      %p2064 = pneg %p2063
    $region46: #{_lambda_.3} parent=5 // pred_check_branch
      %2066 = sbr.rel (%p2064) target = $region48
    $region47: #{_lambda_.3} parent=5 // pred_region
      %s2067 = ssub.s32 %s12, 2
      // Predicated region
      $region49: #{_lambda_.3} parent=47 // pred_check
        %p2068 = pneg %p130
      $region50: #{_lambda_.3} parent=47 // pred_check_branch
        %2070 = sbr.rel (%p2068) target = $region52
      $region51: #{_lambda_.3} parent=47 // pred_region
        %p2071 = scmp.lt.s32.totalorder %s18, 1
        %s2072 = scalar_select %p2071, %s18, 1
        %s2073 = smul.addr %s2072, 8
        %s2074 = scalar_lea.vmem %s4, %s2073
      $region52: #{_lambda_.3} parent=47 // pred_fallthru
        _
      // Predicated region
      $region53: #{_lambda_.3} parent=47 // pred_check
        %p2075 = pneg %p156
      $region54: #{_lambda_.3} parent=47 // pred_check_branch
        %2077 = sbr.rel (%p2075) target = $region56
      $region55: #{_lambda_.3} parent=47 // pred_region
        %p2078 = scmp.lt.s32.totalorder %s18, 1
        %s2079 = scalar_select %p2078, %s18, 1
        %s2080 = smul.addr %s2079, 2
        %s2081 = scalar_lea.vmem %s5, %s2080
      $region56: #{_lambda_.3} parent=47 // pred_fallthru
        _
    $region48: #{_lambda_.3} parent=5 // pred_fallthru
      _
  $region6: #{_lambda_.3} parent=0 // loop_footer
    %s16 = sadd.s32 1, %s12
  $region7: #{_lambda_.3} parent=0 // loop_footer_branch
    %11 = sbr.rel target = $region3
  $region8: #{_lambda_.3} parent=0 // loop_exit
    _

</llo_original>
